<compile_context>
chip_gen: v7x
topology: tpu7x:2x2x1
jax: 0.10.0
libtpu: 0.0.40
codegen_flags: <defaults>
</compile_context>

<pallas_src>
import jax
import jax.numpy as jnp
from jax.experimental import pallas as pl
from jax.experimental.pallas import tpu as pltpu

EPS = 1e-5                      # nn.BatchNorm2d default eps
MATMUL_DTYPE = jnp.bfloat16     # MXU operand dtype (f32 accumulate)


# ---------------------------------------------------------------------------
# In-kernel helpers (traced inside the Pallas kernel body)
# ---------------------------------------------------------------------------
def _bn_train_flat(x, gamma, beta):
    """Training-mode BatchNorm2d on a flattened (M, C) feature map.

    Single pass: sum and sum-of-squares, then one fused scale+shift.  Any
    per-channel bias added before this is cancelled by the mean subtraction,
    so conv biases are not applied in the kernel.
    """
    m = x.shape[0]
    inv_m = 1.0 / m
    mean = jnp.sum(x, axis=0, keepdims=True) * inv_m           # (1, C)
    ex2 = jnp.sum(x * x, axis=0, keepdims=True) * inv_m        # (1, C)
    var = jnp.maximum(ex2 - mean * mean, 0.0)                  # clamp cancellation
    inv = jax.lax.rsqrt(var + EPS)
    scale = gamma * inv
    shift = beta - mean * scale
    return x * scale + shift


def _maxpool2x2(x, wbuf_ref):
    """2x2 / stride-2 max pooling.

    H is pooled with a leading-dim-only reshape (layout-safe); W (the sublane
    dim) is pooled by staging through a VMEM scratch ref and reading it back
    with stride-2 sublane `pl.ds` slices.
    # TODO(synk): the W pool could use pltpu.roll + a single strided
    # downselect (one fewer strided gather); kept as the proven lowering.
    """
    n, h, w, c = x.shape
    xh = jnp.max(x.reshape(n, h // 2, 2, w, c), axis=2)        # (n, h//2, w, c)
    wbuf_ref[...] = xh
    even = wbuf_ref[:, :, pl.ds(0, w // 2, 2), :]
    odd = wbuf_ref[:, :, pl.ds(1, w // 2, 2), :]
    return jnp.maximum(even, odd)                              # (n, h//2, w//2, c)


# ---------------------------------------------------------------------------
# The Pallas kernel: full forward pass (all groups fused into lanes)
# ---------------------------------------------------------------------------
def convnet_kernel(p1_ref,                                     # (N*H*W, 9*Cin) bf16
                   w1_ref, g1_ref, be1_ref,                    # conv1 / bn1
                   w2_ref, g2_ref, be2_ref,                    # conv2 / bn2
                   w3_ref, g3_ref, be3_ref,                    # conv3 / bn3
                   fw1_ref, fb1_ref, fw2_ref, fb2_ref,         # fc1 / fc2
                   out_ref,                                    # (N, num_classes) f32
                   wbuf1_ref, pad_ref, wbuf2_ref):
    n, h2, wd, c1 = wbuf1_ref.shape                            # c1 = 16 * G
    wd2 = wd // 2
    h4, wd4 = h2 // 2, wd2 // 2
    c2 = w2_ref.shape[1]                                       # 32 * G
    c3 = w3_ref.shape[1]                                       # 64
    mm = w1_ref.dtype

    # ---- conv1 (patches built wrapper-side) -> bn1 -> pool1 -> relu ----
    y = jnp.dot(p1_ref[...], w1_ref[...], preferred_element_type=jnp.float32)
    y = _bn_train_flat(y, g1_ref[...], be1_ref[...])
    y = y.reshape(n, 2 * h2, wd, c1)
    pooled1 = jnp.maximum(_maxpool2x2(y, wbuf1_ref), 0.0)      # (n, h2, wd2, c1)

    # ---- halo-only zeroing of the conv2 pad buffer + direct interior store ----
    zrow = jnp.zeros((n, 1, wd2 + 2, c1), pad_ref.dtype)
    pad_ref[:, 0:1, :, :] = zrow
    pad_ref[:, h2 + 1:h2 + 2, :, :] = zrow
    zcol = jnp.zeros((n, h2, 1, c1), pad_ref.dtype)
    pad_ref[:, 1:h2 + 1, 0:1, :] = zcol
    pad_ref[:, 1:h2 + 1, wd2 + 1:wd2 + 2, :] = zcol
    pad_ref[:, 1:h2 + 1, 1:wd2 + 1, :] = pooled1

    # ---- conv2 (3x3): 9 shifted-view taps accumulated on the MXU ----
    # TODO(synk): staging pad_ref in MATMUL_DTYPE would drop the per-tap cast,
    # but packed-bf16 sublane-offset stores are a riskier lowering; kept f32.
    m2 = n * h2 * wd2
    acc = jnp.zeros((m2, c2), jnp.float32)
    k = 0
    for dy in range(3):
        for dx in range(3):
            tap = pad_ref[:, dy:dy + h2, dx:dx + wd2, :]       # (n, h2, wd2, c1)
            acc = acc + jnp.dot(tap.reshape(m2, c1).astype(mm),
                                w2_ref[k * c1:(k + 1) * c1, :],
                                preferred_element_type=jnp.float32)
            k += 1

    # ---- bn2 -> pool2 -> relu ----
    y = _bn_train_flat(acc, g2_ref[...], be2_ref[...])
    y = y.reshape(n, h2, wd2, c2)
    pooled2 = jnp.maximum(_maxpool2x2(y, wbuf2_ref), 0.0)      # (n, h4, wd4, c2)

    # ---- conv3 (1x1, groups=1) -> bn3 -> relu -> global average pool ----
    z = jnp.dot(pooled2.reshape(n * h4 * wd4, c2).astype(mm), w3_ref[...],
                preferred_element_type=jnp.float32)            # (N*H4*W4, 64)
    z = _bn_train_flat(z, g3_ref[...], be3_ref[...])
    z = jnp.maximum(z, 0.0)
    feat = jnp.mean(z.reshape(n, h4 * wd4, c3), axis=1)        # (N, 64)

    # ---- fc1 -> sigmoid -> fc2 ----
    hdn = jnp.dot(feat.astype(fw1_ref.dtype), fw1_ref[...],
                  preferred_element_type=jnp.float32) + fb1_ref[...]
    hdn = jax.nn.sigmoid(hdn)
    out_ref[...] = jnp.dot(hdn.astype(fw2_ref.dtype), fw2_ref[...],
                           preferred_element_type=jnp.float32) + fb2_ref[...]


# ---------------------------------------------------------------------------
# Plain-JAX glue: block-diagonal weight packing (groups -> lanes) + pallas_call
# ---------------------------------------------------------------------------
def pack_params(params, group_num):
    """Build dense, kernel-ready operands from per-group (PyTorch-style) params.

    Grouped convs become dense convs with block-diagonal weights in the
    (9*Cin, Cout) tap-major layout, cast to the MXU operand dtype.  Conv biases
    b1/b2/b3 are dropped: training-mode BN cancels them exactly.
    """
    G = group_num
    k1 = params["k1"]                      # (G, 3, 3, cin_g, 16)
    cin_g = k1.shape[3]
    cin = cin_g * G
    # Block-diagonal folding makes w2 (9*16G, 32G) with (G-1)/G zeros, so MXU
    # work grows ~G^2: fine at G=2.
    # TODO(synk): switch groups to a "parallel" grid axis well before 16*G
    # approaches 128.
    assert 16 * G <= 128

    w1 = jnp.zeros((3, 3, cin, 16 * G), jnp.float32)
    for g in range(G):
        w1 = w1.at[:, :, g * cin_g:(g + 1) * cin_g, g * 16:(g + 1) * 16].set(k1[g])
    w1 = w1.reshape(9 * cin, 16 * G)

    k2 = params["k2"]                      # (G, 3, 3, 16, 32)
    w2 = jnp.zeros((3, 3, 16 * G, 32 * G), jnp.float32)
    for g in range(G):
        w2 = w2.at[:, :, g * 16:(g + 1) * 16, g * 32:(g + 1) * 32].set(k2[g])
    w2 = w2.reshape(9 * 16 * G, 32 * G)

    w3 = params["k3"].reshape(32 * G, 64)  # 1x1 conv, groups=1

    mm = MATMUL_DTYPE
    return dict(
        w1=w1.astype(mm),
        g1=params["g1"].reshape(1, -1), be1=params["be1"].reshape(1, -1),
        w2=w2.astype(mm),
        g2=params["g2"].reshape(1, -1), be2=params["be2"].reshape(1, -1),
        w3=w3.astype(mm),
        g3=params["g3"].reshape(1, -1), be3=params["be3"].reshape(1, -1),
        # NOTE: fc weights are stored (in, out); transpose when importing from
        # a PyTorch nn.Linear ((out, in)).
        fw1=params["fw1"].astype(mm), fb1=params["fb1"],
        fw2=params["fw2"].astype(mm), fb2=params["fb2"],
    )


def convnet_forward(x_nchw, kp):
    x = jnp.transpose(x_nchw, (0, 2, 3, 1)).astype(jnp.float32)   # NCHW -> NHWC
    n, h, wd, cin = x.shape
    h2, wd2 = h // 2, wd // 2
    h4 = h2 // 2
    c1 = kp["w1"].shape[1]
    c2 = kp["w2"].shape[1]
    num_classes = kp["fw2"].shape[1]

    # conv1 im2col hoisted to XLA: lane-contiguous (N*H*W, 9*Cin) patches in
    # the MXU operand dtype (tap-major (dy, dx, ci), matching w1's row layout).
    xp = jnp.pad(x, ((0, 0), (1, 1), (1, 1), (0, 0)))             # conv1 padding=1
    taps = [xp[:, dy:dy + h, dx:dx + wd, :]
            for dy in range(3) for dx in range(3)]
    p1 = jnp.concatenate(taps, axis=-1).reshape(n * h * wd, 9 * cin)
    p1 = p1.astype(MATMUL_DTYPE)

    args = (p1,
            kp["w1"], kp["g1"], kp["be1"],
            kp["w2"], kp["g2"], kp["be2"],
            kp["w3"], kp["g3"], kp["be3"],
            kp["fw1"], kp["fb1"], kp["fw2"], kp["fb2"])

    vmem = pl.BlockSpec(memory_space=pltpu.MemorySpace.VMEM)

    # TODO(synk): a "parallel" batch grid (to use v7x's second TensorCore and
    # pipeline input DMA) is blocked by training-mode BatchNorm's whole-batch
    # statistics — it would need a two-pass / cross-core reduction; not worth
    # it at these toy shapes.
    return pl.pallas_call(
        convnet_kernel,
        out_shape=jax.ShapeDtypeStruct((n, num_classes), jnp.float32),
        in_specs=[vmem] * len(args),
        out_specs=vmem,
        scratch_shapes=[
            pltpu.VMEM((n, h2, wd, c1), jnp.float32),             # W-pool stage 1
            pltpu.VMEM((n, h2 + 2, wd2 + 2, c1), jnp.float32),    # padded conv2 input
            pltpu.VMEM((n, h4, wd2, c2), jnp.float32),            # W-pool stage 2
        ],
        compiler_params=pltpu.CompilerParams(
            vmem_limit_bytes=24 * 1024 * 1024),                   # v7x headroom
    )(*args)


# ---------------------------------------------------------------------------
# Deterministic parameter initialization (same shapes as the nn.Module)
# ---------------------------------------------------------------------------
def init_params(key, in_layers, num_classes, group_num):
    cin_g = in_layers // group_num
    ks = jax.random.split(key, 10)

    def u(k, shape, fan_in):
        bound = 1.0 / (fan_in ** 0.5)
        return jax.random.uniform(k, shape, jnp.float32, -bound, bound)

    return dict(
        # conv1: Conv2d(in_layers, 16*G, k=3, p=1, groups=G)
        k1=u(ks[0], (group_num, 3, 3, cin_g, 16), cin_g * 9),
        b1=u(ks[1], (group_num, 16), cin_g * 9),   # no-op under train-mode BN
        g1=jnp.ones((group_num, 16), jnp.float32),
        be1=jnp.zeros((group_num, 16), jnp.float32),
        # conv2: Conv2d(16*G, 32*G, k=3, p=1, groups=G)
        k2=u(ks[2], (group_num, 3, 3, 16, 32), 16 * 9),
        b2=u(ks[3], (group_num, 32), 16 * 9),      # no-op under train-mode BN
        g2=jnp.ones((group_num, 32), jnp.float32),
        be2=jnp.zeros((group_num, 32), jnp.float32),
        # conv3: Conv2d(32*G, 64, k=1, groups=1)
        k3=u(ks[4], (group_num, 32, 64), 32 * group_num),
        b3=u(ks[5], (1, 64), 32 * group_num),      # no-op under train-mode BN
        g3=jnp.ones((1, 64), jnp.float32),
        be3=jnp.zeros((1, 64), jnp.float32),
        # fc1: Linear(64, 32), fc2: Linear(32, num_classes)
        fw1=u(ks[6], (64, 32), 64),
        fb1=u(ks[7], (1, 32), 64),
        fw2=u(ks[8], (32, num_classes), 32),
        fb2=u(ks[9], (1, num_classes), 32),
    )


if __name__ == "__main__":
    in_layers, num_classes, block_size, group_num = 4, 10, 4, 2
    # TODO(synk): block_size is stored by the PyTorch module but never used in
    # forward(), so it is only kept here as an (unused) hyperparameter.

    key = jax.random.PRNGKey(0)
    kx, kp = jax.random.split(key)
    x = jax.random.normal(kx, (2, in_layers, 16, 16), jnp.float32)   # NCHW input
    params = init_params(kp, in_layers, num_classes, group_num)
    packed = pack_params(params, group_num)

    out = jax.jit(convnet_forward)(x, packed)
    out = jax.block_until_ready(out)
    assert out.shape == (2, num_classes) and out.dtype == jnp.float32
    assert bool(jnp.all(jnp.isfinite(out)))
    print("KERNEL_OK")
</pallas_src>

<mosaic_0001>
module attributes {stable_mosaic.version = 11 : i64} {
  func.func @convnet_kernel(%arg0: memref<512x36xbf16, #tpu.memory_space<vmem>>, %arg1: memref<36x32xbf16, #tpu.memory_space<vmem>>, %arg2: memref<1x32xf32, #tpu.memory_space<vmem>>, %arg3: memref<1x32xf32, #tpu.memory_space<vmem>>, %arg4: memref<288x64xbf16, #tpu.memory_space<vmem>>, %arg5: memref<1x64xf32, #tpu.memory_space<vmem>>, %arg6: memref<1x64xf32, #tpu.memory_space<vmem>>, %arg7: memref<64x64xbf16, #tpu.memory_space<vmem>>, %arg8: memref<1x64xf32, #tpu.memory_space<vmem>>, %arg9: memref<1x64xf32, #tpu.memory_space<vmem>>, %arg10: memref<64x32xbf16, #tpu.memory_space<vmem>>, %arg11: memref<1x32xf32, #tpu.memory_space<vmem>>, %arg12: memref<32x10xbf16, #tpu.memory_space<vmem>>, %arg13: memref<1x10xf32, #tpu.memory_space<vmem>>, %arg14: memref<2x10xf32, #tpu.memory_space<vmem>>, %arg15: memref<2x8x16x32xf32, #tpu.memory_space<vmem>>, %arg16: memref<2x10x10x32xf32, #tpu.memory_space<vmem>>, %arg17: memref<2x4x8x64xf32, #tpu.memory_space<vmem>>) attributes {dimension_semantics = [], scalar_prefetch = 0 : i64, scratch_operands = 3 : i64, tpu.core_type = #tpu.core_type<tc>} {
    %c0 = arith.constant 0 : index
    %c0_0 = arith.constant 0 : index
    %0 = vector.load %arg0[%c0, %c0_0] : memref<512x36xbf16, #tpu.memory_space<vmem>>, vector<512x36xbf16>
    %c0_1 = arith.constant 0 : index
    %c0_2 = arith.constant 0 : index
    %1 = vector.load %arg1[%c0_1, %c0_2] : memref<36x32xbf16, #tpu.memory_space<vmem>>, vector<36x32xbf16>
    %cst = arith.constant dense<0.000000e+00> : vector<512x32xf32>
    %2 = tpu.matmul %0, %1, %cst {dimension_numbers = #tpu.dot_dimension_numbers<[1], [0], [0], [1], [0, 0, 1, 1], [], []>} : vector<512x36xbf16>, vector<36x32xbf16>, vector<512x32xf32> -> vector<512x32xf32>
    %c0_3 = arith.constant 0 : index
    %c0_4 = arith.constant 0 : index
    %3 = vector.load %arg2[%c0_3, %c0_4] : memref<1x32xf32, #tpu.memory_space<vmem>>, vector<1x32xf32>
    %c0_5 = arith.constant 0 : index
    %c0_6 = arith.constant 0 : index
    %4 = vector.load %arg3[%c0_5, %c0_6] : memref<1x32xf32, #tpu.memory_space<vmem>>, vector<1x32xf32>
    %cst_7 = arith.constant dense<0.000000e+00> : vector<32xf32>
    %5 = vector.multi_reduction <add>, %2, %cst_7 [0] : vector<512x32xf32> to vector<32xf32>
    %6 = vector.shape_cast %5 : vector<32xf32> to vector<1x32xf32>
    %cst_8 = arith.constant 0.001953125 : f32
    %7 = vector.broadcast %cst_8 : f32 to vector<1x32xf32>
    %8 = arith.mulf %6, %7 : vector<1x32xf32>
    %9 = arith.mulf %2, %2 : vector<512x32xf32>
    %cst_9 = arith.constant dense<0.000000e+00> : vector<32xf32>
    %10 = vector.multi_reduction <add>, %9, %cst_9 [0] : vector<512x32xf32> to vector<32xf32>
    %11 = vector.shape_cast %10 : vector<32xf32> to vector<1x32xf32>
    %cst_10 = arith.constant 0.001953125 : f32
    %12 = vector.broadcast %cst_10 : f32 to vector<1x32xf32>
    %13 = arith.mulf %11, %12 : vector<1x32xf32>
    %14 = arith.mulf %8, %8 : vector<1x32xf32>
    %15 = arith.subf %13, %14 : vector<1x32xf32>
    %cst_11 = arith.constant 0.000000e+00 : f32
    %16 = vector.broadcast %cst_11 : f32 to vector<1x32xf32>
    %17 = arith.maximumf %15, %16 : vector<1x32xf32>
    %cst_12 = arith.constant 9.99999974E-6 : f32
    %18 = vector.broadcast %cst_12 : f32 to vector<1x32xf32>
    %19 = arith.addf %17, %18 : vector<1x32xf32>
    %20 = math.rsqrt %19 : vector<1x32xf32>
    %21 = arith.mulf %3, %20 : vector<1x32xf32>
    %22 = arith.mulf %8, %21 : vector<1x32xf32>
    %23 = arith.subf %4, %22 : vector<1x32xf32>
    %24 = vector.broadcast %21 : vector<1x32xf32> to vector<512x32xf32>
    %25 = arith.mulf %2, %24 : vector<512x32xf32>
    %26 = vector.broadcast %23 : vector<1x32xf32> to vector<512x32xf32>
    %27 = arith.addf %25, %26 : vector<512x32xf32>
    %28 = vector.shape_cast %27 : vector<512x32xf32> to vector<2x16x16x32xf32>
    %29 = vector.shape_cast %28 : vector<2x16x16x32xf32> to vector<2x8x2x16x32xf32>
    %cst_13 = arith.constant dense<0xFF800000> : vector<2x8x16x32xf32>
    %30 = vector.multi_reduction <maximumf>, %29, %cst_13 [2] : vector<2x8x2x16x32xf32> to vector<2x8x16x32xf32>
    %c0_14 = arith.constant 0 : index
    %c0_15 = arith.constant 0 : index
    %c0_16 = arith.constant 0 : index
    %c0_17 = arith.constant 0 : index
    %31 = vector.load %arg15[%c0_14, %c0_15, %c0_16, %c0_17] : memref<2x8x16x32xf32, #tpu.memory_space<vmem>>, vector<2x8x16x32xf32>
    tpu.vector_store %arg15[%c0_14, %c0_15, %c0_16, %c0_17], %30 {strides = array<i32>} : memref<2x8x16x32xf32, #tpu.memory_space<vmem>>, vector<2x8x16x32xf32>,
    %c0_18 = arith.constant 0 : index
    %c0_19 = arith.constant 0 : index
    %c0_20 = arith.constant 0 : index
    %c0_21 = arith.constant 0 : index
    %32 = tpu.strided_load %arg15[%c0_18, %c0_19, %c0_20, %c0_21] {strides = array<i32: 1, 1, 2, 1>} : memref<2x8x16x32xf32, #tpu.memory_space<vmem>>, vector<2x8x8x32xf32>
    %c0_22 = arith.constant 0 : index
    %c0_23 = arith.constant 0 : index
    %c1 = arith.constant 1 : index
    %c0_24 = arith.constant 0 : index
    %33 = tpu.strided_load %arg15[%c0_22, %c0_23, %c1, %c0_24] {strides = array<i32: 1, 1, 2, 1>} : memref<2x8x16x32xf32, #tpu.memory_space<vmem>>, vector<2x8x8x32xf32>
    %34 = arith.maximumf %32, %33 : vector<2x8x8x32xf32>
    %cst_25 = arith.constant 0.000000e+00 : f32
    %35 = vector.broadcast %cst_25 : f32 to vector<2x8x8x32xf32>
    %36 = arith.maximumf %34, %35 : vector<2x8x8x32xf32>
    %cst_26 = arith.constant 0.000000e+00 : f32
    %37 = vector.broadcast %cst_26 : f32 to vector<2x1x10x32xf32>
    %c0_27 = arith.constant 0 : index
    %c0_28 = arith.constant 0 : index
    %c0_29 = arith.constant 0 : index
    %c0_30 = arith.constant 0 : index
    %38 = vector.load %arg16[%c0_27, %c0_28, %c0_29, %c0_30] : memref<2x10x10x32xf32, #tpu.memory_space<vmem>>, vector<2x1x10x32xf32>
    tpu.vector_store %arg16[%c0_27, %c0_28, %c0_29, %c0_30], %37 {strides = array<i32>} : memref<2x10x10x32xf32, #tpu.memory_space<vmem>>, vector<2x1x10x32xf32>,
    %c0_31 = arith.constant 0 : index
    %c9 = arith.constant 9 : index
    %c0_32 = arith.constant 0 : index
    %c0_33 = arith.constant 0 : index
    %39 = vector.load %arg16[%c0_31, %c9, %c0_32, %c0_33] : memref<2x10x10x32xf32, #tpu.memory_space<vmem>>, vector<2x1x10x32xf32>
    tpu.vector_store %arg16[%c0_31, %c9, %c0_32, %c0_33], %37 {strides = array<i32>} : memref<2x10x10x32xf32, #tpu.memory_space<vmem>>, vector<2x1x10x32xf32>,
    %cst_34 = arith.constant 0.000000e+00 : f32
    %40 = vector.broadcast %cst_34 : f32 to vector<2x8x1x32xf32>
    %c0_35 = arith.constant 0 : index
    %c1_36 = arith.constant 1 : index
    %c0_37 = arith.constant 0 : index
    %c0_38 = arith.constant 0 : index
    %41 = vector.load %arg16[%c0_35, %c1_36, %c0_37, %c0_38] : memref<2x10x10x32xf32, #tpu.memory_space<vmem>>, vector<2x8x1x32xf32>
    tpu.vector_store %arg16[%c0_35, %c1_36, %c0_37, %c0_38], %40 {strides = array<i32>} : memref<2x10x10x32xf32, #tpu.memory_space<vmem>>, vector<2x8x1x32xf32>,
    %c0_39 = arith.constant 0 : index
    %c1_40 = arith.constant 1 : index
    %c9_41 = arith.constant 9 : index
    %c0_42 = arith.constant 0 : index
    %42 = vector.load %arg16[%c0_39, %c1_40, %c9_41, %c0_42] : memref<2x10x10x32xf32, #tpu.memory_space<vmem>>, vector<2x8x1x32xf32>
    tpu.vector_store %arg16[%c0_39, %c1_40, %c9_41, %c0_42], %40 {strides = array<i32>} : memref<2x10x10x32xf32, #tpu.memory_space<vmem>>, vector<2x8x1x32xf32>,
    %c0_43 = arith.constant 0 : index
    %c1_44 = arith.constant 1 : index
    %c1_45 = arith.constant 1 : index
    %c0_46 = arith.constant 0 : index
    %43 = vector.load %arg16[%c0_43, %c1_44, %c1_45, %c0_46] : memref<2x10x10x32xf32, #tpu.memory_space<vmem>>, vector<2x8x8x32xf32>
    tpu.vector_store %arg16[%c0_43, %c1_44, %c1_45, %c0_46], %36 {strides = array<i32>} : memref<2x10x10x32xf32, #tpu.memory_space<vmem>>, vector<2x8x8x32xf32>,
    %cst_47 = arith.constant 0.000000e+00 : f32
    %44 = vector.broadcast %cst_47 : f32 to vector<128x64xf32>
    %c0_48 = arith.constant 0 : index
    %c0_49 = arith.constant 0 : index
    %c0_50 = arith.constant 0 : index
    %c0_51 = arith.constant 0 : index
    %45 = vector.load %arg16[%c0_48, %c0_49, %c0_50, %c0_51] : memref<2x10x10x32xf32, #tpu.memory_space<vmem>>, vector<2x8x8x32xf32>
    %46 = vector.shape_cast %45 : vector<2x8x8x32xf32> to vector<128x32xf32>
    %47 = arith.truncf %46 : vector<128x32xf32> to vector<128x32xbf16>
    %c0_52 = arith.constant 0 : index
    %c0_53 = arith.constant 0 : index
    %48 = vector.load %arg4[%c0_52, %c0_53] : memref<288x64xbf16, #tpu.memory_space<vmem>>, vector<32x64xbf16>
    %cst_54 = arith.constant dense<0.000000e+00> : vector<128x64xf32>
    %49 = tpu.matmul %47, %48, %cst_54 {dimension_numbers = #tpu.dot_dimension_numbers<[1], [0], [0], [1], [0, 0, 1, 1], [], []>} : vector<128x32xbf16>, vector<32x64xbf16>, vector<128x64xf32> -> vector<128x64xf32>
    %50 = arith.addf %44, %49 : vector<128x64xf32>
    %c0_55 = arith.constant 0 : index
    %c0_56 = arith.constant 0 : index
    %c1_57 = arith.constant 1 : index
    %c0_58 = arith.constant 0 : index
    %51 = vector.load %arg16[%c0_55, %c0_56, %c1_57, %c0_58] : memref<2x10x10x32xf32, #tpu.memory_space<vmem>>, vector<2x8x8x32xf32>
    %52 = vector.shape_cast %51 : vector<2x8x8x32xf32> to vector<128x32xf32>
    %53 = arith.truncf %52 : vector<128x32xf32> to vector<128x32xbf16>
    %c32 = arith.constant 32 : index
    %c0_59 = arith.constant 0 : index
    %54 = vector.load %arg4[%c32, %c0_59] : memref<288x64xbf16, #tpu.memory_space<vmem>>, vector<32x64xbf16>
    %cst_60 = arith.constant dense<0.000000e+00> : vector<128x64xf32>
    %55 = tpu.matmul %53, %54, %cst_60 {dimension_numbers = #tpu.dot_dimension_numbers<[1], [0], [0], [1], [0, 0, 1, 1], [], []>} : vector<128x32xbf16>, vector<32x64xbf16>, vector<128x64xf32> -> vector<128x64xf32>
    %56 = arith.addf %50, %55 : vector<128x64xf32>
    %c0_61 = arith.constant 0 : index
    %c0_62 = arith.constant 0 : index
    %c2 = arith.constant 2 : index
    %c0_63 = arith.constant 0 : index
    %57 = vector.load %arg16[%c0_61, %c0_62, %c2, %c0_63] : memref<2x10x10x32xf32, #tpu.memory_space<vmem>>, vector<2x8x8x32xf32>
    %58 = vector.shape_cast %57 : vector<2x8x8x32xf32> to vector<128x32xf32>
    %59 = arith.truncf %58 : vector<128x32xf32> to vector<128x32xbf16>
    %c64 = arith.constant 64 : index
    %c0_64 = arith.constant 0 : index
    %60 = vector.load %arg4[%c64, %c0_64] : memref<288x64xbf16, #tpu.memory_space<vmem>>, vector<32x64xbf16>
    %cst_65 = arith.constant dense<0.000000e+00> : vector<128x64xf32>
    %61 = tpu.matmul %59, %60, %cst_65 {dimension_numbers = #tpu.dot_dimension_numbers<[1], [0], [0], [1], [0, 0, 1, 1], [], []>} : vector<128x32xbf16>, vector<32x64xbf16>, vector<128x64xf32> -> vector<128x64xf32>
    %62 = arith.addf %56, %61 : vector<128x64xf32>
    %c0_66 = arith.constant 0 : index
    %c1_67 = arith.constant 1 : index
    %c0_68 = arith.constant 0 : index
    %c0_69 = arith.constant 0 : index
    %63 = vector.load %arg16[%c0_66, %c1_67, %c0_68, %c0_69] : memref<2x10x10x32xf32, #tpu.memory_space<vmem>>, vector<2x8x8x32xf32>
    %64 = vector.shape_cast %63 : vector<2x8x8x32xf32> to vector<128x32xf32>
    %65 = arith.truncf %64 : vector<128x32xf32> to vector<128x32xbf16>
    %c96 = arith.constant 96 : index
    %c0_70 = arith.constant 0 : index
    %66 = vector.load %arg4[%c96, %c0_70] : memref<288x64xbf16, #tpu.memory_space<vmem>>, vector<32x64xbf16>
    %cst_71 = arith.constant dense<0.000000e+00> : vector<128x64xf32>
    %67 = tpu.matmul %65, %66, %cst_71 {dimension_numbers = #tpu.dot_dimension_numbers<[1], [0], [0], [1], [0, 0, 1, 1], [], []>} : vector<128x32xbf16>, vector<32x64xbf16>, vector<128x64xf32> -> vector<128x64xf32>
    %68 = arith.addf %62, %67 : vector<128x64xf32>
    %c0_72 = arith.constant 0 : index
    %c1_73 = arith.constant 1 : index
    %c1_74 = arith.constant 1 : index
    %c0_75 = arith.constant 0 : index
    %69 = vector.load %arg16[%c0_72, %c1_73, %c1_74, %c0_75] : memref<2x10x10x32xf32, #tpu.memory_space<vmem>>, vector<2x8x8x32xf32>
    %70 = vector.shape_cast %69 : vector<2x8x8x32xf32> to vector<128x32xf32>
    %71 = arith.truncf %70 : vector<128x32xf32> to vector<128x32xbf16>
    %c128 = arith.constant 128 : index
    %c0_76 = arith.constant 0 : index
    %72 = vector.load %arg4[%c128, %c0_76] : memref<288x64xbf16, #tpu.memory_space<vmem>>, vector<32x64xbf16>
    %cst_77 = arith.constant dense<0.000000e+00> : vector<128x64xf32>
    %73 = tpu.matmul %71, %72, %cst_77 {dimension_numbers = #tpu.dot_dimension_numbers<[1], [0], [0], [1], [0, 0, 1, 1], [], []>} : vector<128x32xbf16>, vector<32x64xbf16>, vector<128x64xf32> -> vector<128x64xf32>
    %74 = arith.addf %68, %73 : vector<128x64xf32>
    %c0_78 = arith.constant 0 : index
    %c1_79 = arith.constant 1 : index
    %c2_80 = arith.constant 2 : index
    %c0_81 = arith.constant 0 : index
    %75 = vector.load %arg16[%c0_78, %c1_79, %c2_80, %c0_81] : memref<2x10x10x32xf32, #tpu.memory_space<vmem>>, vector<2x8x8x32xf32>
    %76 = vector.shape_cast %75 : vector<2x8x8x32xf32> to vector<128x32xf32>
    %77 = arith.truncf %76 : vector<128x32xf32> to vector<128x32xbf16>
    %c160 = arith.constant 160 : index
    %c0_82 = arith.constant 0 : index
    %78 = vector.load %arg4[%c160, %c0_82] : memref<288x64xbf16, #tpu.memory_space<vmem>>, vector<32x64xbf16>
    %cst_83 = arith.constant dense<0.000000e+00> : vector<128x64xf32>
    %79 = tpu.matmul %77, %78, %cst_83 {dimension_numbers = #tpu.dot_dimension_numbers<[1], [0], [0], [1], [0, 0, 1, 1], [], []>} : vector<128x32xbf16>, vector<32x64xbf16>, vector<128x64xf32> -> vector<128x64xf32>
    %80 = arith.addf %74, %79 : vector<128x64xf32>
    %c0_84 = arith.constant 0 : index
    %c2_85 = arith.constant 2 : index
    %c0_86 = arith.constant 0 : index
    %c0_87 = arith.constant 0 : index
    %81 = vector.load %arg16[%c0_84, %c2_85, %c0_86, %c0_87] : memref<2x10x10x32xf32, #tpu.memory_space<vmem>>, vector<2x8x8x32xf32>
    %82 = vector.shape_cast %81 : vector<2x8x8x32xf32> to vector<128x32xf32>
    %83 = arith.truncf %82 : vector<128x32xf32> to vector<128x32xbf16>
    %c192 = arith.constant 192 : index
    %c0_88 = arith.constant 0 : index
    %84 = vector.load %arg4[%c192, %c0_88] : memref<288x64xbf16, #tpu.memory_space<vmem>>, vector<32x64xbf16>
    %cst_89 = arith.constant dense<0.000000e+00> : vector<128x64xf32>
    %85 = tpu.matmul %83, %84, %cst_89 {dimension_numbers = #tpu.dot_dimension_numbers<[1], [0], [0], [1], [0, 0, 1, 1], [], []>} : vector<128x32xbf16>, vector<32x64xbf16>, vector<128x64xf32> -> vector<128x64xf32>
    %86 = arith.addf %80, %85 : vector<128x64xf32>
    %c0_90 = arith.constant 0 : index
    %c2_91 = arith.constant 2 : index
    %c1_92 = arith.constant 1 : index
    %c0_93 = arith.constant 0 : index
    %87 = vector.load %arg16[%c0_90, %c2_91, %c1_92, %c0_93] : memref<2x10x10x32xf32, #tpu.memory_space<vmem>>, vector<2x8x8x32xf32>
    %88 = vector.shape_cast %87 : vector<2x8x8x32xf32> to vector<128x32xf32>
    %89 = arith.truncf %88 : vector<128x32xf32> to vector<128x32xbf16>
    %c224 = arith.constant 224 : index
    %c0_94 = arith.constant 0 : index
    %90 = vector.load %arg4[%c224, %c0_94] : memref<288x64xbf16, #tpu.memory_space<vmem>>, vector<32x64xbf16>
    %cst_95 = arith.constant dense<0.000000e+00> : vector<128x64xf32>
    %91 = tpu.matmul %89, %90, %cst_95 {dimension_numbers = #tpu.dot_dimension_numbers<[1], [0], [0], [1], [0, 0, 1, 1], [], []>} : vector<128x32xbf16>, vector<32x64xbf16>, vector<128x64xf32> -> vector<128x64xf32>
    %92 = arith.addf %86, %91 : vector<128x64xf32>
    %c0_96 = arith.constant 0 : index
    %c2_97 = arith.constant 2 : index
    %c2_98 = arith.constant 2 : index
    %c0_99 = arith.constant 0 : index
    %93 = vector.load %arg16[%c0_96, %c2_97, %c2_98, %c0_99] : memref<2x10x10x32xf32, #tpu.memory_space<vmem>>, vector<2x8x8x32xf32>
    %94 = vector.shape_cast %93 : vector<2x8x8x32xf32> to vector<128x32xf32>
    %95 = arith.truncf %94 : vector<128x32xf32> to vector<128x32xbf16>
    %c256 = arith.constant 256 : index
    %c0_100 = arith.constant 0 : index
    %96 = vector.load %arg4[%c256, %c0_100] : memref<288x64xbf16, #tpu.memory_space<vmem>>, vector<32x64xbf16>
    %cst_101 = arith.constant dense<0.000000e+00> : vector<128x64xf32>
    %97 = tpu.matmul %95, %96, %cst_101 {dimension_numbers = #tpu.dot_dimension_numbers<[1], [0], [0], [1], [0, 0, 1, 1], [], []>} : vector<128x32xbf16>, vector<32x64xbf16>, vector<128x64xf32> -> vector<128x64xf32>
    %98 = arith.addf %92, %97 : vector<128x64xf32>
    %c0_102 = arith.constant 0 : index
    %c0_103 = arith.constant 0 : index
    %99 = vector.load %arg5[%c0_102, %c0_103] : memref<1x64xf32, #tpu.memory_space<vmem>>, vector<1x64xf32>
    %c0_104 = arith.constant 0 : index
    %c0_105 = arith.constant 0 : index
    %100 = vector.load %arg6[%c0_104, %c0_105] : memref<1x64xf32, #tpu.memory_space<vmem>>, vector<1x64xf32>
    %cst_106 = arith.constant dense<0.000000e+00> : vector<64xf32>
    %101 = vector.multi_reduction <add>, %98, %cst_106 [0] : vector<128x64xf32> to vector<64xf32>
    %102 = vector.shape_cast %101 : vector<64xf32> to vector<1x64xf32>
    %cst_107 = arith.constant 7.812500e-03 : f32
    %103 = vector.broadcast %cst_107 : f32 to vector<1x64xf32>
    %104 = arith.mulf %102, %103 : vector<1x64xf32>
    %105 = arith.mulf %98, %98 : vector<128x64xf32>
    %cst_108 = arith.constant dense<0.000000e+00> : vector<64xf32>
    %106 = vector.multi_reduction <add>, %105, %cst_108 [0] : vector<128x64xf32> to vector<64xf32>
    %107 = vector.shape_cast %106 : vector<64xf32> to vector<1x64xf32>
    %cst_109 = arith.constant 7.812500e-03 : f32
    %108 = vector.broadcast %cst_109 : f32 to vector<1x64xf32>
    %109 = arith.mulf %107, %108 : vector<1x64xf32>
    %110 = arith.mulf %104, %104 : vector<1x64xf32>
    %111 = arith.subf %109, %110 : vector<1x64xf32>
    %cst_110 = arith.constant 0.000000e+00 : f32
    %112 = vector.broadcast %cst_110 : f32 to vector<1x64xf32>
    %113 = arith.maximumf %111, %112 : vector<1x64xf32>
    %cst_111 = arith.constant 9.99999974E-6 : f32
    %114 = vector.broadcast %cst_111 : f32 to vector<1x64xf32>
    %115 = arith.addf %113, %114 : vector<1x64xf32>
    %116 = math.rsqrt %115 : vector<1x64xf32>
    %117 = arith.mulf %99, %116 : vector<1x64xf32>
    %118 = arith.mulf %104, %117 : vector<1x64xf32>
    %119 = arith.subf %100, %118 : vector<1x64xf32>
    %120 = vector.broadcast %117 : vector<1x64xf32> to vector<128x64xf32>
    %121 = arith.mulf %98, %120 : vector<128x64xf32>
    %122 = vector.broadcast %119 : vector<1x64xf32> to vector<128x64xf32>
    %123 = arith.addf %121, %122 : vector<128x64xf32>
    %124 = vector.shape_cast %123 : vector<128x64xf32> to vector<2x8x8x64xf32>
    %125 = vector.shape_cast %124 : vector<2x8x8x64xf32> to vector<2x4x2x8x64xf32>
    %cst_112 = arith.constant dense<0xFF800000> : vector<2x4x8x64xf32>
    %126 = vector.multi_reduction <maximumf>, %125, %cst_112 [2] : vector<2x4x2x8x64xf32> to vector<2x4x8x64xf32>
    %c0_113 = arith.constant 0 : index
    %c0_114 = arith.constant 0 : index
    %c0_115 = arith.constant 0 : index
    %c0_116 = arith.constant 0 : index
    %127 = vector.load %arg17[%c0_113, %c0_114, %c0_115, %c0_116] : memref<2x4x8x64xf32, #tpu.memory_space<vmem>>, vector<2x4x8x64xf32>
    tpu.vector_store %arg17[%c0_113, %c0_114, %c0_115, %c0_116], %126 {strides = array<i32>} : memref<2x4x8x64xf32, #tpu.memory_space<vmem>>, vector<2x4x8x64xf32>,
    %c0_117 = arith.constant 0 : index
    %c0_118 = arith.constant 0 : index
    %c0_119 = arith.constant 0 : index
    %c0_120 = arith.constant 0 : index
    %128 = tpu.strided_load %arg17[%c0_117, %c0_118, %c0_119, %c0_120] {strides = array<i32: 1, 1, 2, 1>} : memref<2x4x8x64xf32, #tpu.memory_space<vmem>>, vector<2x4x4x64xf32>
    %c0_121 = arith.constant 0 : index
    %c0_122 = arith.constant 0 : index
    %c1_123 = arith.constant 1 : index
    %c0_124 = arith.constant 0 : index
    %129 = tpu.strided_load %arg17[%c0_121, %c0_122, %c1_123, %c0_124] {strides = array<i32: 1, 1, 2, 1>} : memref<2x4x8x64xf32, #tpu.memory_space<vmem>>, vector<2x4x4x64xf32>
    %130 = arith.maximumf %128, %129 : vector<2x4x4x64xf32>
    %cst_125 = arith.constant 0.000000e+00 : f32
    %131 = vector.broadcast %cst_125 : f32 to vector<2x4x4x64xf32>
    %132 = arith.maximumf %130, %131 : vector<2x4x4x64xf32>
    %133 = vector.shape_cast %132 : vector<2x4x4x64xf32> to vector<32x64xf32>
    %134 = arith.truncf %133 : vector<32x64xf32> to vector<32x64xbf16>
    %c0_126 = arith.constant 0 : index
    %c0_127 = arith.constant 0 : index
    %135 = vector.load %arg7[%c0_126, %c0_127] : memref<64x64xbf16, #tpu.memory_space<vmem>>, vector<64x64xbf16>
    %cst_128 = arith.constant dense<0.000000e+00> : vector<32x64xf32>
    %136 = tpu.matmul %134, %135, %cst_128 {dimension_numbers = #tpu.dot_dimension_numbers<[1], [0], [0], [1], [0, 0, 1, 1], [], []>} : vector<32x64xbf16>, vector<64x64xbf16>, vector<32x64xf32> -> vector<32x64xf32>
    %c0_129 = arith.constant 0 : index
    %c0_130 = arith.constant 0 : index
    %137 = vector.load %arg8[%c0_129, %c0_130] : memref<1x64xf32, #tpu.memory_space<vmem>>, vector<1x64xf32>
    %c0_131 = arith.constant 0 : index
    %c0_132 = arith.constant 0 : index
    %138 = vector.load %arg9[%c0_131, %c0_132] : memref<1x64xf32, #tpu.memory_space<vmem>>, vector<1x64xf32>
    %cst_133 = arith.constant dense<0.000000e+00> : vector<64xf32>
    %139 = vector.multi_reduction <add>, %136, %cst_133 [0] : vector<32x64xf32> to vector<64xf32>
    %140 = vector.shape_cast %139 : vector<64xf32> to vector<1x64xf32>
    %cst_134 = arith.constant 3.125000e-02 : f32
    %141 = vector.broadcast %cst_134 : f32 to vector<1x64xf32>
    %142 = arith.mulf %140, %141 : vector<1x64xf32>
    %143 = arith.mulf %136, %136 : vector<32x64xf32>
    %cst_135 = arith.constant dense<0.000000e+00> : vector<64xf32>
    %144 = vector.multi_reduction <add>, %143, %cst_135 [0] : vector<32x64xf32> to vector<64xf32>
    %145 = vector.shape_cast %144 : vector<64xf32> to vector<1x64xf32>
    %cst_136 = arith.constant 3.125000e-02 : f32
    %146 = vector.broadcast %cst_136 : f32 to vector<1x64xf32>
    %147 = arith.mulf %145, %146 : vector<1x64xf32>
    %148 = arith.mulf %142, %142 : vector<1x64xf32>
    %149 = arith.subf %147, %148 : vector<1x64xf32>
    %cst_137 = arith.constant 0.000000e+00 : f32
    %150 = vector.broadcast %cst_137 : f32 to vector<1x64xf32>
    %151 = arith.maximumf %149, %150 : vector<1x64xf32>
    %cst_138 = arith.constant 9.99999974E-6 : f32
    %152 = vector.broadcast %cst_138 : f32 to vector<1x64xf32>
    %153 = arith.addf %151, %152 : vector<1x64xf32>
    %154 = math.rsqrt %153 : vector<1x64xf32>
    %155 = arith.mulf %137, %154 : vector<1x64xf32>
    %156 = arith.mulf %142, %155 : vector<1x64xf32>
    %157 = arith.subf %138, %156 : vector<1x64xf32>
    %158 = vector.broadcast %155 : vector<1x64xf32> to vector<32x64xf32>
    %159 = arith.mulf %136, %158 : vector<32x64xf32>
    %160 = vector.broadcast %157 : vector<1x64xf32> to vector<32x64xf32>
    %161 = arith.addf %159, %160 : vector<32x64xf32>
    %cst_139 = arith.constant 0.000000e+00 : f32
    %162 = vector.broadcast %cst_139 : f32 to vector<32x64xf32>
    %163 = arith.maximumf %161, %162 : vector<32x64xf32>
    %164 = vector.shape_cast %163 : vector<32x64xf32> to vector<2x16x64xf32>
    %cst_140 = arith.constant dense<0.000000e+00> : vector<2x64xf32>
    %165 = vector.multi_reduction <add>, %164, %cst_140 [1] : vector<2x16x64xf32> to vector<2x64xf32>
    %cst_141 = arith.constant 1.600000e+01 : f32
    %166 = vector.broadcast %cst_141 : f32 to vector<2x64xf32>
    %167 = arith.divf %165, %166 : vector<2x64xf32>
    %168 = arith.truncf %167 : vector<2x64xf32> to vector<2x64xbf16>
    %c0_142 = arith.constant 0 : index
    %c0_143 = arith.constant 0 : index
    %169 = vector.load %arg10[%c0_142, %c0_143] : memref<64x32xbf16, #tpu.memory_space<vmem>>, vector<64x32xbf16>
    %cst_144 = arith.constant dense<0.000000e+00> : vector<2x32xf32>
    %170 = tpu.matmul %168, %169, %cst_144 {dimension_numbers = #tpu.dot_dimension_numbers<[1], [0], [0], [1], [0, 0, 1, 1], [], []>} : vector<2x64xbf16>, vector<64x32xbf16>, vector<2x32xf32> -> vector<2x32xf32>
    %c0_145 = arith.constant 0 : index
    %c0_146 = arith.constant 0 : index
    %171 = vector.load %arg11[%c0_145, %c0_146] : memref<1x32xf32, #tpu.memory_space<vmem>>, vector<1x32xf32>
    %172 = vector.broadcast %171 : vector<1x32xf32> to vector<2x32xf32>
    %173 = arith.addf %170, %172 : vector<2x32xf32>
    %174 = arith.negf %173 : vector<2x32xf32>
    %175 = math.exp %174 : vector<2x32xf32>
    %cst_147 = arith.constant 1.000000e+00 : f32
    %176 = vector.broadcast %cst_147 : f32 to vector<2x32xf32>
    %177 = arith.addf %176, %175 : vector<2x32xf32>
    %178 = arith.divf %176, %177 : vector<2x32xf32>
    %179 = arith.truncf %178 : vector<2x32xf32> to vector<2x32xbf16>
    %c0_148 = arith.constant 0 : index
    %c0_149 = arith.constant 0 : index
    %180 = vector.load %arg12[%c0_148, %c0_149] : memref<32x10xbf16, #tpu.memory_space<vmem>>, vector<32x10xbf16>
    %cst_150 = arith.constant dense<0.000000e+00> : vector<2x10xf32>
    %181 = tpu.matmul %179, %180, %cst_150 {dimension_numbers = #tpu.dot_dimension_numbers<[1], [0], [0], [1], [0, 0, 1, 1], [], []>} : vector<2x32xbf16>, vector<32x10xbf16>, vector<2x10xf32> -> vector<2x10xf32>
    %c0_151 = arith.constant 0 : index
    %c0_152 = arith.constant 0 : index
    %182 = vector.load %arg13[%c0_151, %c0_152] : memref<1x10xf32, #tpu.memory_space<vmem>>, vector<1x10xf32>
    %183 = vector.broadcast %182 : vector<1x10xf32> to vector<2x10xf32>
    %184 = arith.addf %181, %183 : vector<2x10xf32>
    %c0_153 = arith.constant 0 : index
    %c0_154 = arith.constant 0 : index
    %185 = vector.load %arg14[%c0_153, %c0_154] : memref<2x10xf32, #tpu.memory_space<vmem>>, vector<2x10xf32>
    tpu.vector_store %arg14[%c0_153, %c0_154], %184 {strides = array<i32>} : memref<2x10xf32, #tpu.memory_space<vmem>>, vector<2x10xf32>,
    return
  }
}

</mosaic_0001>

<llo_original>
// kernel: convnet_forward.1
$region0: #{convnet_forward.1}
  #allocation0 [shape = 'u32[]', space=smem, size = 0x4, offset = 0x4, fixed_abs, tag = 'smem constant byte address 0x4 - core index']
  #allocation1 [shape = 'u32[144,128]{1,0:T(1,128)}', space=vmem, size = 0x12000, scoped, tag = 'internal scratch']
  #allocation2 [shape = 'f32[2,8,16,32]{3,2,1,0:T(8,128)}', space=vmem, size = 0x20000, scoped, tag = 'scratch operand']
  #allocation3 [shape = 'f32[2,10,10,32]{3,2,1,0:T(8,128)}', space=vmem, size = 0x28000, scoped, tag = 'scratch operand']
  #allocation4 [shape = 'f32[2,4,8,64]{3,2,1,0:T(8,128)}', space=vmem, size = 0x8000, scoped, tag = 'scratch operand']
  %s0 = inlined_call_operand.vmem [shape: bf16[512,36], index: 0, kind: input, shape index: {}]
  %s1 = inlined_call_operand.vmem [shape: bf16[36,32], index: 1, kind: input, shape index: {}]
  %s2 = inlined_call_operand.vmem [shape: f32[1,32], index: 2, kind: input, shape index: {}]
  %s3 = inlined_call_operand.vmem [shape: f32[1,32], index: 3, kind: input, shape index: {}]
  %s4 = inlined_call_operand.vmem [shape: bf16[288,64], index: 4, kind: input, shape index: {}]
  %s5 = inlined_call_operand.vmem [shape: f32[1,64], index: 5, kind: input, shape index: {}]
  %s6 = inlined_call_operand.vmem [shape: f32[1,64], index: 6, kind: input, shape index: {}]
  %s7 = inlined_call_operand.vmem [shape: bf16[64,64], index: 7, kind: input, shape index: {}]
  %s8 = inlined_call_operand.vmem [shape: f32[1,64], index: 8, kind: input, shape index: {}]
  %s9 = inlined_call_operand.vmem [shape: f32[1,64], index: 9, kind: input, shape index: {}]
  %s10 = inlined_call_operand.vmem [shape: bf16[64,32], index: 10, kind: input, shape index: {}]
  %s11 = inlined_call_operand.vmem [shape: f32[1,32], index: 11, kind: input, shape index: {}]
  %s12 = inlined_call_operand.vmem [shape: bf16[32,10], index: 12, kind: input, shape index: {}]
  %s13 = inlined_call_operand.vmem [shape: f32[1,10], index: 13, kind: input, shape index: {}]
  %s14 = inlined_call_operand.hbm [shape: f32[2,10], index: 14, kind: output, shape index: {}]
  %s15 = sld [smem:[#allocation0]]
  $region66: #{convnet_forward.1} parent=0
    _
  %s17 = ssub.s32 1, %s15
  %s18 = scalar_select 0, %s17, %s15
  $region1: #{convnet_forward.1} parent=0
    #allocation5 [shape = 'u8[1024]{0}', space=vmem, size = 0x400, scoped, tag = 'output window, operand 0, single buffered']
    #allocation6 [shape = 's32[1]{0}', space=sflag, size = 0x4, scoped, tag = 'scoped memory for convnet_forward.1']
    %19 = vsyncpa [#allocation6], 0
    // Predicated region
    $region2: #{convnet_forward.1} parent=1 // pred_check
      _
    $region3: #{convnet_forward.1} parent=1 // pred_check_branch
      %21 = sbr.rel (0) target = $region5
    $region4: #{convnet_forward.1} parent=1 // pred_region
      _
    $region5: #{convnet_forward.1} parent=1 // pred_fallthru
      _
    // Predicated region
    $region6: #{convnet_forward.1} parent=1 // pred_check
      _
    $region7: #{convnet_forward.1} parent=1 // pred_check_branch
      %23 = sbr.rel (0) target = $region9
    $region8: #{convnet_forward.1} parent=1 // pred_region
      _
    $region9: #{convnet_forward.1} parent=1 // pred_fallthru
      _
    // Predicated region
    $region10: #{convnet_forward.1} parent=1 // pred_check
      _
    $region11: #{convnet_forward.1} parent=1 // pred_check_branch
      %25 = sbr.rel (0) target = $region13
    $region12: #{convnet_forward.1} parent=1 // pred_region
      _
    $region13: #{convnet_forward.1} parent=1 // pred_fallthru
      _
    // Predicated region
    $region14: #{convnet_forward.1} parent=1 // pred_check
      _
    $region15: #{convnet_forward.1} parent=1 // pred_check_branch
      %27 = sbr.rel (0) target = $region17
    $region16: #{convnet_forward.1} parent=1 // pred_region
      _
    $region17: #{convnet_forward.1} parent=1 // pred_fallthru
      _
    // Predicated region
    $region18: #{convnet_forward.1} parent=1 // pred_check
      _
    $region19: #{convnet_forward.1} parent=1 // pred_check_branch
      %29 = sbr.rel (0) target = $region21
    $region20: #{convnet_forward.1} parent=1 // pred_region
      _
    $region21: #{convnet_forward.1} parent=1 // pred_fallthru
      _
    // Predicated region
    $region22: #{convnet_forward.1} parent=1 // pred_check
      _
    $region23: #{convnet_forward.1} parent=1 // pred_check_branch
      %31 = sbr.rel (0) target = $region25
    $region24: #{convnet_forward.1} parent=1 // pred_region
      _
    $region25: #{convnet_forward.1} parent=1 // pred_fallthru
      _
    // Predicated region
    $region26: #{convnet_forward.1} parent=1 // pred_check
      _
    $region27: #{convnet_forward.1} parent=1 // pred_check_branch
      %33 = sbr.rel (0) target = $region29
    $region28: #{convnet_forward.1} parent=1 // pred_region
      _
    $region29: #{convnet_forward.1} parent=1 // pred_fallthru
      _
    // Predicated region
    $region30: #{convnet_forward.1} parent=1 // pred_check
      _
    $region31: #{convnet_forward.1} parent=1 // pred_check_branch
      %35 = sbr.rel (0) target = $region33
    $region32: #{convnet_forward.1} parent=1 // pred_region
      _
    $region33: #{convnet_forward.1} parent=1 // pred_fallthru
      _
    // Predicated region
    $region34: #{convnet_forward.1} parent=1 // pred_check
      _
    $region35: #{convnet_forward.1} parent=1 // pred_check_branch
      %37 = sbr.rel (0) target = $region37
    $region36: #{convnet_forward.1} parent=1 // pred_region
      _
    $region37: #{convnet_forward.1} parent=1 // pred_fallthru
      _
    // Predicated region
    $region38: #{convnet_forward.1} parent=1 // pred_check
      _
    $region39: #{convnet_forward.1} parent=1 // pred_check_branch
      %39 = sbr.rel (0) target = $region41
    $region40: #{convnet_forward.1} parent=1 // pred_region
      _
    $region41: #{convnet_forward.1} parent=1 // pred_fallthru
      _
    // Predicated region
    $region42: #{convnet_forward.1} parent=1 // pred_check
      _
    $region43: #{convnet_forward.1} parent=1 // pred_check_branch
      %41 = sbr.rel (0) target = $region45
    $region44: #{convnet_forward.1} parent=1 // pred_region
      _
    $region45: #{convnet_forward.1} parent=1 // pred_fallthru
      _
    // Predicated region
    $region46: #{convnet_forward.1} parent=1 // pred_check
      _
    $region47: #{convnet_forward.1} parent=1 // pred_check_branch
      %43 = sbr.rel (0) target = $region49
    $region48: #{convnet_forward.1} parent=1 // pred_region
      _
    $region49: #{convnet_forward.1} parent=1 // pred_fallthru
      _
    // Predicated region
    $region50: #{convnet_forward.1} parent=1 // pred_check
      _
    $region51: #{convnet_forward.1} parent=1 // pred_check_branch
      %45 = sbr.rel (0) target = $region53
    $region52: #{convnet_forward.1} parent=1 // pred_region
      _
    $region53: #{convnet_forward.1} parent=1 // pred_fallthru
      _
    // Predicated region
    $region54: #{convnet_forward.1} parent=1 // pred_check
      _
    $region55: #{convnet_forward.1} parent=1 // pred_check_branch
      %47 = sbr.rel (0) target = $region57
    $region56: #{convnet_forward.1} parent=1 // pred_region
      _
    $region57: #{convnet_forward.1} parent=1 // pred_fallthru
      _
    %v49 = vld [vmem:[%s0] sm:$0xf]
    %v50 = vld [vmem:[%s0 + $0x4] sm:$0xf]
    %v51 = vld [vmem:[%s0 + $0x8] sm:$0xf]
    %v52 = vld [vmem:[%s0 + $0xc] sm:$0xf]
    %v53 = vld [vmem:[%s0 + $0x10] sm:$0xf]
    %v54 = vld [vmem:[%s0 + $0x14] sm:$0xf]
    %v55 = vld [vmem:[%s0 + $0x18] sm:$0xf]
    %v56 = vld [vmem:[%s0 + $0x1c] sm:$0xf]
    %v57 = vld [vmem:[%s0 + $0x20] sm:$0xf]
    %v58 = vld [vmem:[%s0 + $0x24] sm:$0xf]
    %v59 = vld [vmem:[%s0 + $0x28] sm:$0xf]
    %v60 = vld [vmem:[%s0 + $0x2c] sm:$0xf]
    %v61 = vld [vmem:[%s0 + $0x30] sm:$0xf]
    %v62 = vld [vmem:[%s0 + $0x34] sm:$0xf]
    %v63 = vld [vmem:[%s0 + $0x38] sm:$0xf]
    %v64 = vld [vmem:[%s0 + $0x3c] sm:$0xf]
    %v65 = vld [vmem:[%s0 + $0x40] sm:$0xf]
    %v66 = vld [vmem:[%s0 + $0x44] sm:$0xf]
    %v67 = vld [vmem:[%s0 + $0x48] sm:$0xf]
    %v68 = vld [vmem:[%s0 + $0x4c] sm:$0xf]
    %v69 = vld [vmem:[%s0 + $0x50] sm:$0xf]
    %v70 = vld [vmem:[%s0 + $0x54] sm:$0xf]
    %v71 = vld [vmem:[%s0 + $0x58] sm:$0xf]
    %v72 = vld [vmem:[%s0 + $0x5c] sm:$0xf]
    %v73 = vld [vmem:[%s0 + $0x60] sm:$0xf]
    %v74 = vld [vmem:[%s0 + $0x64] sm:$0xf]
    %v75 = vld [vmem:[%s0 + $0x68] sm:$0xf]
    %v76 = vld [vmem:[%s0 + $0x6c] sm:$0xf]
    %v77 = vld [vmem:[%s0 + $0x70] sm:$0xf]
    %v78 = vld [vmem:[%s0 + $0x74] sm:$0xf]
    %v79 = vld [vmem:[%s0 + $0x78] sm:$0xf]
    %v80 = vld [vmem:[%s0 + $0x7c] sm:$0xf]
    %v81 = vld [vmem:[%s0 + $0x80] sm:$0xf]
    %v82 = vld [vmem:[%s0 + $0x84] sm:$0xf]
    %v83 = vld [vmem:[%s0 + $0x88] sm:$0xf]
    %v84 = vld [vmem:[%s0 + $0x8c] sm:$0xf]
    %v85 = vld [vmem:[%s0 + $0x90] sm:$0xf]
    %v86 = vld [vmem:[%s0 + $0x94] sm:$0xf]
    %v87 = vld [vmem:[%s0 + $0x98] sm:$0xf]
    %v88 = vld [vmem:[%s0 + $0x9c] sm:$0xf]
    %v89 = vld [vmem:[%s0 + $0xa0] sm:$0xf]
    %v90 = vld [vmem:[%s0 + $0xa4] sm:$0xf]
    %v91 = vld [vmem:[%s0 + $0xa8] sm:$0xf]
    %v92 = vld [vmem:[%s0 + $0xac] sm:$0xf]
    %v93 = vld [vmem:[%s0 + $0xb0] sm:$0xf]
    %v94 = vld [vmem:[%s0 + $0xb4] sm:$0xf]
    %v95 = vld [vmem:[%s0 + $0xb8] sm:$0xf]
    %v96 = vld [vmem:[%s0 + $0xbc] sm:$0xf]
    %v97 = vld [vmem:[%s0 + $0xc0] sm:$0xf]
    %v98 = vld [vmem:[%s0 + $0xc4] sm:$0xf]
    %v99 = vld [vmem:[%s0 + $0xc8] sm:$0xf]
    %v100 = vld [vmem:[%s0 + $0xcc] sm:$0xf]
    %v101 = vld [vmem:[%s0 + $0xd0] sm:$0xf]
    %v102 = vld [vmem:[%s0 + $0xd4] sm:$0xf]
    %v103 = vld [vmem:[%s0 + $0xd8] sm:$0xf]
    %v104 = vld [vmem:[%s0 + $0xdc] sm:$0xf]
    %v105 = vld [vmem:[%s0 + $0xe0] sm:$0xf]
    %v106 = vld [vmem:[%s0 + $0xe4] sm:$0xf]
    %v107 = vld [vmem:[%s0 + $0xe8] sm:$0xf]
    %v108 = vld [vmem:[%s0 + $0xec] sm:$0xf]
    %v109 = vld [vmem:[%s0 + $0xf0] sm:$0xf]
    %v110 = vld [vmem:[%s0 + $0xf4] sm:$0xf]
    %v111 = vld [vmem:[%s0 + $0xf8] sm:$0xf]
    %v112 = vld [vmem:[%s0 + $0xfc] sm:$0xf]
    %v113 = vld [vmem:[%s1] sm:$0xf]
    %v114 = vld [vmem:[%s1 + $0x4] sm:$0xf]
    %v115 = vld [vmem:[%s1 + $0x8] sm:$0xf]
    %v116 = vld [vmem:[%s1 + $0xc] sm:$0xf]
    %v117 = vld [vmem:[%s1 + $0x10] sm:$0x3]
    %v182 = vunpack.c.l.b16 %v49
    %v183 = vunpack.c.l.b16 %v50
    %v184 = vunpack.c.l.b16 %v51
    %v185 = vunpack.c.l.b16 %v52
    %v186 = vunpack.c.l.b16 %v53
    %v187 = vunpack.c.l.b16 %v54
    %v188 = vunpack.c.l.b16 %v55
    %v189 = vunpack.c.l.b16 %v56
    %v190 = vunpack.c.l.b16 %v57
    %v191 = vunpack.c.l.b16 %v58
    %v192 = vunpack.c.l.b16 %v59
    %v193 = vunpack.c.l.b16 %v60
    %v194 = vunpack.c.l.b16 %v61
    %v195 = vunpack.c.l.b16 %v62
    %v196 = vunpack.c.l.b16 %v63
    %v197 = vunpack.c.l.b16 %v64
    %v198 = vunpack.c.l.b16 %v65
    %v199 = vunpack.c.l.b16 %v66
    %v200 = vunpack.c.l.b16 %v67
    %v201 = vunpack.c.l.b16 %v68
    %v202 = vunpack.c.l.b16 %v69
    %v203 = vunpack.c.l.b16 %v70
    %v204 = vunpack.c.l.b16 %v71
    %v205 = vunpack.c.l.b16 %v72
    %v206 = vunpack.c.l.b16 %v73
    %v207 = vunpack.c.l.b16 %v74
    %v208 = vunpack.c.l.b16 %v75
    %v209 = vunpack.c.l.b16 %v76
    %v210 = vunpack.c.l.b16 %v77
    %v211 = vunpack.c.l.b16 %v78
    %v212 = vunpack.c.l.b16 %v79
    %v213 = vunpack.c.l.b16 %v80
    %v214 = vunpack.c.l.b16 %v81
    %v215 = vunpack.c.l.b16 %v82
    %v216 = vunpack.c.l.b16 %v83
    %v217 = vunpack.c.l.b16 %v84
    %v218 = vunpack.c.l.b16 %v85
    %v219 = vunpack.c.l.b16 %v86
    %v220 = vunpack.c.l.b16 %v87
    %v221 = vunpack.c.l.b16 %v88
    %v222 = vunpack.c.l.b16 %v89
    %v223 = vunpack.c.l.b16 %v90
    %v224 = vunpack.c.l.b16 %v91
    %v225 = vunpack.c.l.b16 %v92
    %v226 = vunpack.c.l.b16 %v93
    %v227 = vunpack.c.l.b16 %v94
    %v228 = vunpack.c.l.b16 %v95
    %v229 = vunpack.c.l.b16 %v96
    %v230 = vunpack.c.l.b16 %v97
    %v231 = vunpack.c.l.b16 %v98
    %v232 = vunpack.c.l.b16 %v99
    %v233 = vunpack.c.l.b16 %v100
    %v234 = vunpack.c.l.b16 %v101
    %v235 = vunpack.c.l.b16 %v102
    %v236 = vunpack.c.l.b16 %v103
    %v237 = vunpack.c.l.b16 %v104
    %v238 = vunpack.c.l.b16 %v105
    %v239 = vunpack.c.l.b16 %v106
    %v240 = vunpack.c.l.b16 %v107
    %v241 = vunpack.c.l.b16 %v108
    %v242 = vunpack.c.l.b16 %v109
    %v243 = vunpack.c.l.b16 %v110
    %v244 = vunpack.c.l.b16 %v111
    %v245 = vunpack.c.l.b16 %v112
    %v246 = vpack.c.b16 %v183, %v182
    %v247 = vpack.c.b16 %v185, %v184
    %v248 = vpack.c.b16 %v187, %v186
    %v249 = vpack.c.b16 %v189, %v188
    %v250 = vpack.c.b16 %v191, %v190
    %v251 = vpack.c.b16 %v193, %v192
    %v252 = vpack.c.b16 %v195, %v194
    %v253 = vpack.c.b16 %v197, %v196
    %v254 = vpack.c.b16 %v199, %v198
    %v255 = vpack.c.b16 %v201, %v200
    %v256 = vpack.c.b16 %v203, %v202
    %v257 = vpack.c.b16 %v205, %v204
    %v258 = vpack.c.b16 %v207, %v206
    %v259 = vpack.c.b16 %v209, %v208
    %v260 = vpack.c.b16 %v211, %v210
    %v261 = vpack.c.b16 %v213, %v212
    %v262 = vpack.c.b16 %v215, %v214
    %v263 = vpack.c.b16 %v217, %v216
    %v264 = vpack.c.b16 %v219, %v218
    %v265 = vpack.c.b16 %v221, %v220
    %v266 = vpack.c.b16 %v223, %v222
    %v267 = vpack.c.b16 %v225, %v224
    %v268 = vpack.c.b16 %v227, %v226
    %v269 = vpack.c.b16 %v229, %v228
    %v270 = vpack.c.b16 %v231, %v230
    %v271 = vpack.c.b16 %v233, %v232
    %v272 = vpack.c.b16 %v235, %v234
    %v273 = vpack.c.b16 %v237, %v236
    %v274 = vpack.c.b16 %v239, %v238
    %v275 = vpack.c.b16 %v241, %v240
    %v276 = vpack.c.b16 %v243, %v242
    %v277 = vpack.c.b16 %v245, %v244
    %v283 = vunpack.c.l.b16 %v113
    %v284 = vunpack.c.l.b16 %v114
    %v285 = vunpack.c.l.b16 %v115
    %v286 = vunpack.c.l.b16 %v116
    %v287 = vunpack.c.l.b16 %v117
    %v288 = vpack.c.b16 %v284, %v283
    %v289 = vpack.c.b16 %v286, %v285
    %v290 = vpack.c.b16 %v287, %v287
    %vm293 = vcmask 293888
    %v295 = vsel %vm293, %v246, 0
    %v298 = vsel %vm293, %v247, 0
    %v301 = vsel %vm293, %v248, 0
    %v304 = vsel %vm293, %v249, 0
    %v307 = vsel %vm293, %v250, 0
    %v310 = vsel %vm293, %v251, 0
    %v313 = vsel %vm293, %v252, 0
    %v316 = vsel %vm293, %v253, 0
    %v319 = vsel %vm293, %v254, 0
    %v322 = vsel %vm293, %v255, 0
    %v325 = vsel %vm293, %v256, 0
    %v328 = vsel %vm293, %v257, 0
    %v331 = vsel %vm293, %v258, 0
    %v334 = vsel %vm293, %v259, 0
    %v337 = vsel %vm293, %v260, 0
    %v340 = vsel %vm293, %v261, 0
    %v343 = vsel %vm293, %v262, 0
    %v346 = vsel %vm293, %v263, 0
    %v349 = vsel %vm293, %v264, 0
    %v352 = vsel %vm293, %v265, 0
    %v355 = vsel %vm293, %v266, 0
    %v358 = vsel %vm293, %v267, 0
    %v361 = vsel %vm293, %v268, 0
    %v364 = vsel %vm293, %v269, 0
    %v367 = vsel %vm293, %v270, 0
    %v370 = vsel %vm293, %v271, 0
    %v373 = vsel %vm293, %v272, 0
    %v376 = vsel %vm293, %v273, 0
    %v379 = vsel %vm293, %v274, 0
    %v382 = vsel %vm293, %v275, 0
    %v385 = vsel %vm293, %v276, 0
    %v388 = vsel %vm293, %v277, 0
    %vm390 = vcmask 1041408
    %v392 = vsel %vm390, %v290, 0
    %394 = vmatprep.subr.bf16.mxu0 0
    %395 = vmatpush1.bf16.msra.mxu0 %v288
    %396 = vmatprep.subr.bf16.mxu0 0
    %397 = vmatpush1.bf16.msra.mxu0 %v289
    %398 = vmatprep.subr.bf16.mxu0 0
    %399 = vmatpush1.bf16.msra.mxu0 %v392
    %400 = vmatprep.subr.bf16.mxu0 0
    %401 = vmatpush1.bf16.msra.mxu0 0
    %402 = vmatprep.subr.bf16.mxu0 0
    %403 = vmatpush1.bf16.msra.mxu0 0
    %404 = vmatprep.subr.bf16.mxu0 0
    %405 = vmatpush1.bf16.msra.mxu0 0
    %406 = vmatprep.subr.bf16.mxu0 0
    %407 = vmatpush1.bf16.msra.mxu0 0
    %408 = vmatprep.subr.bf16.mxu0 0
    %409 = vmatpush1.bf16.msra.mxu0 0
    %410 = vmatprep.subr.bf16.mxu0 0
    %411 = vmatpush1.bf16.msra.mxu0 0
    %412 = vmatprep.subr.bf16.mxu0 0
    %413 = vmatpush1.bf16.msra.mxu0 0
    %414 = vmatprep.subr.bf16.mxu0 0
    %415 = vmatpush1.bf16.msra.mxu0 0
    %416 = vmatprep.subr.bf16.mxu0 0
    %417 = vmatpush1.bf16.msra.mxu0 0
    %418 = vmatprep.subr.bf16.mxu0 0
    %419 = vmatpush1.bf16.msra.mxu0 0
    %420 = vmatprep.subr.bf16.mxu0 0
    %421 = vmatpush1.bf16.msra.mxu0 0
    %422 = vmatprep.subr.bf16.mxu0 0
    %423 = vmatpush1.bf16.msra.mxu0 0
    %424 = vmatprep.subr.bf16.mxu0 0
    %425 = vmatpush1.bf16.msra.mxu0 0
    %426 = vmatprep.mubr.bf16.mxu0 0
    %427 = vmatmul.mubr.bf16.gmra.mrb[0].mxu0 %v295
    %v428 = vpop.f32.mrb[0].mxu0
    %v429 = vadd.f32 0.0, %v428
    %v430 = vpop.f32.mrb[0].mxu0
    %v431 = vpop.f32.mrb[0].mxu0
    %v432 = vadd.f32 0.0, %v431
    %v433 = vpop.f32.mrb[0].mxu0
    %434 = vmatprep.mubr.bf16.mxu0 0
    %435 = vmatmul.mubr.bf16.gmra.mrb[0].mxu0 %v298
    %v436 = vpop.f32.mrb[0].mxu0
    %v437 = vadd.f32 0.0, %v436
    %v438 = vpop.f32.mrb[0].mxu0
    %v439 = vpop.f32.mrb[0].mxu0
    %v440 = vadd.f32 0.0, %v439
    %v441 = vpop.f32.mrb[0].mxu0
    %442 = vmatprep.mubr.bf16.mxu0 0
    %443 = vmatmul.mubr.bf16.gmra.mrb[0].mxu0 %v301
    %v444 = vpop.f32.mrb[0].mxu0
    %v445 = vadd.f32 0.0, %v444
    %v446 = vpop.f32.mrb[0].mxu0
    %v447 = vpop.f32.mrb[0].mxu0
    %v448 = vadd.f32 0.0, %v447
    %v449 = vpop.f32.mrb[0].mxu0
    %450 = vmatprep.mubr.bf16.mxu0 0
    %451 = vmatmul.mubr.bf16.gmra.mrb[0].mxu0 %v304
    %v452 = vpop.f32.mrb[0].mxu0
    %v453 = vadd.f32 0.0, %v452
    %v454 = vpop.f32.mrb[0].mxu0
    %v455 = vpop.f32.mrb[0].mxu0
    %v456 = vadd.f32 0.0, %v455
    %v457 = vpop.f32.mrb[0].mxu0
    %458 = vmatprep.mubr.bf16.mxu0 0
    %459 = vmatmul.mubr.bf16.gmra.mrb[0].mxu0 %v307
    %v460 = vpop.f32.mrb[0].mxu0
    %v461 = vadd.f32 0.0, %v460
    %v462 = vpop.f32.mrb[0].mxu0
    %v463 = vpop.f32.mrb[0].mxu0
    %v464 = vadd.f32 0.0, %v463
    %v465 = vpop.f32.mrb[0].mxu0
    %466 = vmatprep.mubr.bf16.mxu0 0
    %467 = vmatmul.mubr.bf16.gmra.mrb[0].mxu0 %v310
    %v468 = vpop.f32.mrb[0].mxu0
    %v469 = vadd.f32 0.0, %v468
    %v470 = vpop.f32.mrb[0].mxu0
    %v471 = vpop.f32.mrb[0].mxu0
    %v472 = vadd.f32 0.0, %v471
    %v473 = vpop.f32.mrb[0].mxu0
    %474 = vmatprep.mubr.bf16.mxu0 0
    %475 = vmatmul.mubr.bf16.gmra.mrb[0].mxu0 %v313
    %v476 = vpop.f32.mrb[0].mxu0
    %v477 = vadd.f32 0.0, %v476
    %v478 = vpop.f32.mrb[0].mxu0
    %v479 = vpop.f32.mrb[0].mxu0
    %v480 = vadd.f32 0.0, %v479
    %v481 = vpop.f32.mrb[0].mxu0
    %482 = vmatprep.mubr.bf16.mxu0 0
    %483 = vmatmul.mubr.bf16.gmra.mrb[0].mxu0 %v316
    %v484 = vpop.f32.mrb[0].mxu0
    %v485 = vadd.f32 0.0, %v484
    %v486 = vpop.f32.mrb[0].mxu0
    %v487 = vpop.f32.mrb[0].mxu0
    %v488 = vadd.f32 0.0, %v487
    %v489 = vpop.f32.mrb[0].mxu0
    %490 = vmatprep.mubr.bf16.mxu0 0
    %491 = vmatmul.mubr.bf16.gmra.mrb[0].mxu0 %v319
    %v492 = vpop.f32.mrb[0].mxu0
    %v493 = vadd.f32 0.0, %v492
    %v494 = vpop.f32.mrb[0].mxu0
    %v495 = vpop.f32.mrb[0].mxu0
    %v496 = vadd.f32 0.0, %v495
    %v497 = vpop.f32.mrb[0].mxu0
    %498 = vmatprep.mubr.bf16.mxu0 0
    %499 = vmatmul.mubr.bf16.gmra.mrb[0].mxu0 %v322
    %v500 = vpop.f32.mrb[0].mxu0
    %v501 = vadd.f32 0.0, %v500
    %v502 = vpop.f32.mrb[0].mxu0
    %v503 = vpop.f32.mrb[0].mxu0
    %v504 = vadd.f32 0.0, %v503
    %v505 = vpop.f32.mrb[0].mxu0
    %506 = vmatprep.mubr.bf16.mxu0 0
    %507 = vmatmul.mubr.bf16.gmra.mrb[0].mxu0 %v325
    %v508 = vpop.f32.mrb[0].mxu0
    %v509 = vadd.f32 0.0, %v508
    %v510 = vpop.f32.mrb[0].mxu0
    %v511 = vpop.f32.mrb[0].mxu0
    %v512 = vadd.f32 0.0, %v511
    %v513 = vpop.f32.mrb[0].mxu0
    %514 = vmatprep.mubr.bf16.mxu0 0
    %515 = vmatmul.mubr.bf16.gmra.mrb[0].mxu0 %v328
    %v516 = vpop.f32.mrb[0].mxu0
    %v517 = vadd.f32 0.0, %v516
    %v518 = vpop.f32.mrb[0].mxu0
    %v519 = vpop.f32.mrb[0].mxu0
    %v520 = vadd.f32 0.0, %v519
    %v521 = vpop.f32.mrb[0].mxu0
    %522 = vmatprep.mubr.bf16.mxu0 0
    %523 = vmatmul.mubr.bf16.gmra.mrb[0].mxu0 %v331
    %v524 = vpop.f32.mrb[0].mxu0
    %v525 = vadd.f32 0.0, %v524
    %v526 = vpop.f32.mrb[0].mxu0
    %v527 = vpop.f32.mrb[0].mxu0
    %v528 = vadd.f32 0.0, %v527
    %v529 = vpop.f32.mrb[0].mxu0
    %530 = vmatprep.mubr.bf16.mxu0 0
    %531 = vmatmul.mubr.bf16.gmra.mrb[0].mxu0 %v334
    %v532 = vpop.f32.mrb[0].mxu0
    %v533 = vadd.f32 0.0, %v532
    %v534 = vpop.f32.mrb[0].mxu0
    %v535 = vpop.f32.mrb[0].mxu0
    %v536 = vadd.f32 0.0, %v535
    %v537 = vpop.f32.mrb[0].mxu0
    %538 = vmatprep.mubr.bf16.mxu0 0
    %539 = vmatmul.mubr.bf16.gmra.mrb[0].mxu0 %v337
    %v540 = vpop.f32.mrb[0].mxu0
    %v541 = vadd.f32 0.0, %v540
    %v542 = vpop.f32.mrb[0].mxu0
    %v543 = vpop.f32.mrb[0].mxu0
    %v544 = vadd.f32 0.0, %v543
    %v545 = vpop.f32.mrb[0].mxu0
    %546 = vmatprep.mubr.bf16.mxu0 0
    %547 = vmatmul.mubr.bf16.gmra.mrb[0].mxu0 %v340
    %v548 = vpop.f32.mrb[0].mxu0
    %v549 = vadd.f32 0.0, %v548
    %v550 = vpop.f32.mrb[0].mxu0
    %v551 = vpop.f32.mrb[0].mxu0
    %v552 = vadd.f32 0.0, %v551
    %v553 = vpop.f32.mrb[0].mxu0
    %554 = vmatprep.mubr.bf16.mxu0 0
    %555 = vmatmul.mubr.bf16.gmra.mrb[0].mxu0 %v343
    %v556 = vpop.f32.mrb[0].mxu0
    %v557 = vadd.f32 0.0, %v556
    %v558 = vpop.f32.mrb[0].mxu0
    %v559 = vpop.f32.mrb[0].mxu0
    %v560 = vadd.f32 0.0, %v559
    %v561 = vpop.f32.mrb[0].mxu0
    %562 = vmatprep.mubr.bf16.mxu0 0
    %563 = vmatmul.mubr.bf16.gmra.mrb[0].mxu0 %v346
    %v564 = vpop.f32.mrb[0].mxu0
    %v565 = vadd.f32 0.0, %v564
    %v566 = vpop.f32.mrb[0].mxu0
    %v567 = vpop.f32.mrb[0].mxu0
    %v568 = vadd.f32 0.0, %v567
    %v569 = vpop.f32.mrb[0].mxu0
    %570 = vmatprep.mubr.bf16.mxu0 0
    %571 = vmatmul.mubr.bf16.gmra.mrb[0].mxu0 %v349
    %v572 = vpop.f32.mrb[0].mxu0
    %v573 = vadd.f32 0.0, %v572
    %v574 = vpop.f32.mrb[0].mxu0
    %v575 = vpop.f32.mrb[0].mxu0
    %v576 = vadd.f32 0.0, %v575
    %v577 = vpop.f32.mrb[0].mxu0
    %578 = vmatprep.mubr.bf16.mxu0 0
    %579 = vmatmul.mubr.bf16.gmra.mrb[0].mxu0 %v352
    %v580 = vpop.f32.mrb[0].mxu0
    %v581 = vadd.f32 0.0, %v580
    %v582 = vpop.f32.mrb[0].mxu0
    %v583 = vpop.f32.mrb[0].mxu0
    %v584 = vadd.f32 0.0, %v583
    %v585 = vpop.f32.mrb[0].mxu0
    %586 = vmatprep.mubr.bf16.mxu0 0
    %587 = vmatmul.mubr.bf16.gmra.mrb[0].mxu0 %v355
    %v588 = vpop.f32.mrb[0].mxu0
    %v589 = vadd.f32 0.0, %v588
    %v590 = vpop.f32.mrb[0].mxu0
    %v591 = vpop.f32.mrb[0].mxu0
    %v592 = vadd.f32 0.0, %v591
    %v593 = vpop.f32.mrb[0].mxu0
    %594 = vmatprep.mubr.bf16.mxu0 0
    %595 = vmatmul.mubr.bf16.gmra.mrb[0].mxu0 %v358
    %v596 = vpop.f32.mrb[0].mxu0
    %v597 = vadd.f32 0.0, %v596
    %v598 = vpop.f32.mrb[0].mxu0
    %v599 = vpop.f32.mrb[0].mxu0
    %v600 = vadd.f32 0.0, %v599
    %v601 = vpop.f32.mrb[0].mxu0
    %602 = vmatprep.mubr.bf16.mxu0 0
    %603 = vmatmul.mubr.bf16.gmra.mrb[0].mxu0 %v361
    %v604 = vpop.f32.mrb[0].mxu0
    %v605 = vadd.f32 0.0, %v604
    %v606 = vpop.f32.mrb[0].mxu0
    %v607 = vpop.f32.mrb[0].mxu0
    %v608 = vadd.f32 0.0, %v607
    %v609 = vpop.f32.mrb[0].mxu0
    %610 = vmatprep.mubr.bf16.mxu0 0
    %611 = vmatmul.mubr.bf16.gmra.mrb[0].mxu0 %v364
    %v612 = vpop.f32.mrb[0].mxu0
    %v613 = vadd.f32 0.0, %v612
    %v614 = vpop.f32.mrb[0].mxu0
    %v615 = vpop.f32.mrb[0].mxu0
    %v616 = vadd.f32 0.0, %v615
    %v617 = vpop.f32.mrb[0].mxu0
    %618 = vmatprep.mubr.bf16.mxu0 0
    %619 = vmatmul.mubr.bf16.gmra.mrb[0].mxu0 %v367
    %v620 = vpop.f32.mrb[0].mxu0
    %v621 = vadd.f32 0.0, %v620
    %v622 = vpop.f32.mrb[0].mxu0
    %v623 = vpop.f32.mrb[0].mxu0
    %v624 = vadd.f32 0.0, %v623
    %v625 = vpop.f32.mrb[0].mxu0
    %626 = vmatprep.mubr.bf16.mxu0 0
    %627 = vmatmul.mubr.bf16.gmra.mrb[0].mxu0 %v370
    %v628 = vpop.f32.mrb[0].mxu0
    %v629 = vadd.f32 0.0, %v628
    %v630 = vpop.f32.mrb[0].mxu0
    %v631 = vpop.f32.mrb[0].mxu0
    %v632 = vadd.f32 0.0, %v631
    %v633 = vpop.f32.mrb[0].mxu0
    %634 = vmatprep.mubr.bf16.mxu0 0
    %635 = vmatmul.mubr.bf16.gmra.mrb[0].mxu0 %v373
    %v636 = vpop.f32.mrb[0].mxu0
    %v637 = vadd.f32 0.0, %v636
    %v638 = vpop.f32.mrb[0].mxu0
    %v639 = vpop.f32.mrb[0].mxu0
    %v640 = vadd.f32 0.0, %v639
    %v641 = vpop.f32.mrb[0].mxu0
    %642 = vmatprep.mubr.bf16.mxu0 0
    %643 = vmatmul.mubr.bf16.gmra.mrb[0].mxu0 %v376
    %v644 = vpop.f32.mrb[0].mxu0
    %v645 = vadd.f32 0.0, %v644
    %v646 = vpop.f32.mrb[0].mxu0
    %v647 = vpop.f32.mrb[0].mxu0
    %v648 = vadd.f32 0.0, %v647
    %v649 = vpop.f32.mrb[0].mxu0
    %650 = vmatprep.mubr.bf16.mxu0 0
    %651 = vmatmul.mubr.bf16.gmra.mrb[0].mxu0 %v379
    %v652 = vpop.f32.mrb[0].mxu0
    %v653 = vadd.f32 0.0, %v652
    %v654 = vpop.f32.mrb[0].mxu0
    %v655 = vpop.f32.mrb[0].mxu0
    %v656 = vadd.f32 0.0, %v655
    %v657 = vpop.f32.mrb[0].mxu0
    %658 = vmatprep.mubr.bf16.mxu0 0
    %659 = vmatmul.mubr.bf16.gmra.mrb[0].mxu0 %v382
    %v660 = vpop.f32.mrb[0].mxu0
    %v661 = vadd.f32 0.0, %v660
    %v662 = vpop.f32.mrb[0].mxu0
    %v663 = vpop.f32.mrb[0].mxu0
    %v664 = vadd.f32 0.0, %v663
    %v665 = vpop.f32.mrb[0].mxu0
    %666 = vmatprep.mubr.bf16.mxu0 0
    %667 = vmatmul.mubr.bf16.gmra.mrb[0].mxu0 %v385
    %v668 = vpop.f32.mrb[0].mxu0
    %v669 = vadd.f32 0.0, %v668
    %v670 = vpop.f32.mrb[0].mxu0
    %v671 = vpop.f32.mrb[0].mxu0
    %v672 = vadd.f32 0.0, %v671
    %v673 = vpop.f32.mrb[0].mxu0
    %674 = vmatprep.mubr.bf16.mxu0 0
    %675 = vmatmul.mubr.bf16.gmra.mrb[0].mxu0 %v388
    %v676 = vpop.f32.mrb[0].mxu0
    %v677 = vadd.f32 0.0, %v676
    %v678 = vpop.f32.mrb[0].mxu0
    %v679 = vpop.f32.mrb[0].mxu0
    %v680 = vadd.f32 0.0, %v679
    %v681 = vpop.f32.mrb[0].mxu0
    %682 = vdwg.mxu0
    %v683 = vld [vmem:[%s2] sm:$0x1]
    %v684 = vld [vmem:[%s3] sm:$0x1]
    %vm685 = vcmask 261120
    %v686 = vsel %vm685, %v429, 0.0
    %v687 = vsel %vm685, %v432, 0.0
    %v688 = vadd.f32 %v686, %v687
    %v689 = vsel %vm685, %v437, 0.0
    %v690 = vadd.f32 %v688, %v689
    %v691 = vsel %vm685, %v440, 0.0
    %v692 = vadd.f32 %v690, %v691
    %v693 = vsel %vm685, %v445, 0.0
    %v694 = vadd.f32 %v692, %v693
    %v695 = vsel %vm685, %v448, 0.0
    %v696 = vadd.f32 %v694, %v695
    %v697 = vsel %vm685, %v453, 0.0
    %v698 = vadd.f32 %v696, %v697
    %v699 = vsel %vm685, %v456, 0.0
    %v700 = vadd.f32 %v698, %v699
    %v701 = vsel %vm685, %v461, 0.0
    %v702 = vadd.f32 %v700, %v701
    %v703 = vsel %vm685, %v464, 0.0
    %v704 = vadd.f32 %v702, %v703
    %v705 = vsel %vm685, %v469, 0.0
    %v706 = vadd.f32 %v704, %v705
    %v707 = vsel %vm685, %v472, 0.0
    %v708 = vadd.f32 %v706, %v707
    %v709 = vsel %vm685, %v477, 0.0
    %v710 = vadd.f32 %v708, %v709
    %v711 = vsel %vm685, %v480, 0.0
    %v712 = vadd.f32 %v710, %v711
    %v713 = vsel %vm685, %v485, 0.0
    %v714 = vadd.f32 %v712, %v713
    %v715 = vsel %vm685, %v488, 0.0
    %v716 = vadd.f32 %v714, %v715
    %v717 = vsel %vm685, %v493, 0.0
    %v718 = vadd.f32 %v716, %v717
    %v719 = vsel %vm685, %v496, 0.0
    %v720 = vadd.f32 %v718, %v719
    %v721 = vsel %vm685, %v501, 0.0
    %v722 = vadd.f32 %v720, %v721
    %v723 = vsel %vm685, %v504, 0.0
    %v724 = vadd.f32 %v722, %v723
    %v725 = vsel %vm685, %v509, 0.0
    %v726 = vadd.f32 %v724, %v725
    %v727 = vsel %vm685, %v512, 0.0
    %v728 = vadd.f32 %v726, %v727
    %v729 = vsel %vm685, %v517, 0.0
    %v730 = vadd.f32 %v728, %v729
    %v731 = vsel %vm685, %v520, 0.0
    %v732 = vadd.f32 %v730, %v731
    %v733 = vsel %vm685, %v525, 0.0
    %v734 = vadd.f32 %v732, %v733
    %v735 = vsel %vm685, %v528, 0.0
    %v736 = vadd.f32 %v734, %v735
    %v737 = vsel %vm685, %v533, 0.0
    %v738 = vadd.f32 %v736, %v737
    %v739 = vsel %vm685, %v536, 0.0
    %v740 = vadd.f32 %v738, %v739
    %v741 = vsel %vm685, %v541, 0.0
    %v742 = vadd.f32 %v740, %v741
    %v743 = vsel %vm685, %v544, 0.0
    %v744 = vadd.f32 %v742, %v743
    %v745 = vsel %vm685, %v549, 0.0
    %v746 = vadd.f32 %v744, %v745
    %v747 = vsel %vm685, %v552, 0.0
    %v748 = vadd.f32 %v746, %v747
    %v749 = vsel %vm685, %v557, 0.0
    %v750 = vadd.f32 %v748, %v749
    %v751 = vsel %vm685, %v560, 0.0
    %v752 = vadd.f32 %v750, %v751
    %v753 = vsel %vm685, %v565, 0.0
    %v754 = vadd.f32 %v752, %v753
    %v755 = vsel %vm685, %v568, 0.0
    %v756 = vadd.f32 %v754, %v755
    %v757 = vsel %vm685, %v573, 0.0
    %v758 = vadd.f32 %v756, %v757
    %v759 = vsel %vm685, %v576, 0.0
    %v760 = vadd.f32 %v758, %v759
    %v761 = vsel %vm685, %v581, 0.0
    %v762 = vadd.f32 %v760, %v761
    %v763 = vsel %vm685, %v584, 0.0
    %v764 = vadd.f32 %v762, %v763
    %v765 = vsel %vm685, %v589, 0.0
    %v766 = vadd.f32 %v764, %v765
    %v767 = vsel %vm685, %v592, 0.0
    %v768 = vadd.f32 %v766, %v767
    %v769 = vsel %vm685, %v597, 0.0
    %v770 = vadd.f32 %v768, %v769
    %v771 = vsel %vm685, %v600, 0.0
    %v772 = vadd.f32 %v770, %v771
    %v773 = vsel %vm685, %v605, 0.0
    %v774 = vadd.f32 %v772, %v773
    %v775 = vsel %vm685, %v608, 0.0
    %v776 = vadd.f32 %v774, %v775
    %v777 = vsel %vm685, %v613, 0.0
    %v778 = vadd.f32 %v776, %v777
    %v779 = vsel %vm685, %v616, 0.0
    %v780 = vadd.f32 %v778, %v779
    %v781 = vsel %vm685, %v621, 0.0
    %v782 = vadd.f32 %v780, %v781
    %v783 = vsel %vm685, %v624, 0.0
    %v784 = vadd.f32 %v782, %v783
    %v785 = vsel %vm685, %v629, 0.0
    %v786 = vadd.f32 %v784, %v785
    %v787 = vsel %vm685, %v632, 0.0
    %v788 = vadd.f32 %v786, %v787
    %v789 = vsel %vm685, %v637, 0.0
    %v790 = vadd.f32 %v788, %v789
    %v791 = vsel %vm685, %v640, 0.0
    %v792 = vadd.f32 %v790, %v791
    %v793 = vsel %vm685, %v645, 0.0
    %v794 = vadd.f32 %v792, %v793
    %v795 = vsel %vm685, %v648, 0.0
    %v796 = vadd.f32 %v794, %v795
    %v797 = vsel %vm685, %v653, 0.0
    %v798 = vadd.f32 %v796, %v797
    %v799 = vsel %vm685, %v656, 0.0
    %v800 = vadd.f32 %v798, %v799
    %v801 = vsel %vm685, %v661, 0.0
    %v802 = vadd.f32 %v800, %v801
    %v803 = vsel %vm685, %v664, 0.0
    %v804 = vadd.f32 %v802, %v803
    %v805 = vsel %vm685, %v669, 0.0
    %v806 = vadd.f32 %v804, %v805
    %v807 = vsel %vm685, %v672, 0.0
    %v808 = vadd.f32 %v806, %v807
    %v809 = vsel %vm685, %v677, 0.0
    %v810 = vadd.f32 %v808, %v809
    %v811 = vsel %vm685, %v680, 0.0
    %v812 = vadd.f32 %v810, %v811
    %v813 = vrot.slane %v812, 4
    %v814 = vadd.f32 %v812, %v813
    %v815 = vrot.slane %v814, 2
    %v816 = vadd.f32 %v814, %v815
    %v817 = vrot.slane %v816, 1
    %v818 = vadd.f32 %v816, %v817
    %v819 = vmul.f32 %v818, 0.001953125
    %v820 = vmul.f32 %v429, %v429
    %v821 = vmul.f32 %v432, %v432
    %v822 = vmul.f32 %v437, %v437
    %v823 = vmul.f32 %v440, %v440
    %v824 = vmul.f32 %v445, %v445
    %v825 = vmul.f32 %v448, %v448
    %v826 = vmul.f32 %v453, %v453
    %v827 = vmul.f32 %v456, %v456
    %v828 = vmul.f32 %v461, %v461
    %v829 = vmul.f32 %v464, %v464
    %v830 = vmul.f32 %v469, %v469
    %v831 = vmul.f32 %v472, %v472
    %v832 = vmul.f32 %v477, %v477
    %v833 = vmul.f32 %v480, %v480
    %v834 = vmul.f32 %v485, %v485
    %v835 = vmul.f32 %v488, %v488
    %v836 = vmul.f32 %v493, %v493
    %v837 = vmul.f32 %v496, %v496
    %v838 = vmul.f32 %v501, %v501
    %v839 = vmul.f32 %v504, %v504
    %v840 = vmul.f32 %v509, %v509
    %v841 = vmul.f32 %v512, %v512
    %v842 = vmul.f32 %v517, %v517
    %v843 = vmul.f32 %v520, %v520
    %v844 = vmul.f32 %v525, %v525
    %v845 = vmul.f32 %v528, %v528
    %v846 = vmul.f32 %v533, %v533
    %v847 = vmul.f32 %v536, %v536
    %v848 = vmul.f32 %v541, %v541
    %v849 = vmul.f32 %v544, %v544
    %v850 = vmul.f32 %v549, %v549
    %v851 = vmul.f32 %v552, %v552
    %v852 = vmul.f32 %v557, %v557
    %v853 = vmul.f32 %v560, %v560
    %v854 = vmul.f32 %v565, %v565
    %v855 = vmul.f32 %v568, %v568
    %v856 = vmul.f32 %v573, %v573
    %v857 = vmul.f32 %v576, %v576
    %v858 = vmul.f32 %v581, %v581
    %v859 = vmul.f32 %v584, %v584
    %v860 = vmul.f32 %v589, %v589
    %v861 = vmul.f32 %v592, %v592
    %v862 = vmul.f32 %v597, %v597
    %v863 = vmul.f32 %v600, %v600
    %v864 = vmul.f32 %v605, %v605
    %v865 = vmul.f32 %v608, %v608
    %v866 = vmul.f32 %v613, %v613
    %v867 = vmul.f32 %v616, %v616
    %v868 = vmul.f32 %v621, %v621
    %v869 = vmul.f32 %v624, %v624
    %v870 = vmul.f32 %v629, %v629
    %v871 = vmul.f32 %v632, %v632
    %v872 = vmul.f32 %v637, %v637
    %v873 = vmul.f32 %v640, %v640
    %v874 = vmul.f32 %v645, %v645
    %v875 = vmul.f32 %v648, %v648
    %v876 = vmul.f32 %v653, %v653
    %v877 = vmul.f32 %v656, %v656
    %v878 = vmul.f32 %v661, %v661
    %v879 = vmul.f32 %v664, %v664
    %v880 = vmul.f32 %v669, %v669
    %v881 = vmul.f32 %v672, %v672
    %v882 = vmul.f32 %v677, %v677
    %v883 = vmul.f32 %v680, %v680
    %v884 = vsel %vm685, %v820, 0.0
    %v885 = vsel %vm685, %v821, 0.0
    %v886 = vadd.f32 %v884, %v885
    %v887 = vsel %vm685, %v822, 0.0
    %v888 = vadd.f32 %v886, %v887
    %v889 = vsel %vm685, %v823, 0.0
    %v890 = vadd.f32 %v888, %v889
    %v891 = vsel %vm685, %v824, 0.0
    %v892 = vadd.f32 %v890, %v891
    %v893 = vsel %vm685, %v825, 0.0
    %v894 = vadd.f32 %v892, %v893
    %v895 = vsel %vm685, %v826, 0.0
    %v896 = vadd.f32 %v894, %v895
    %v897 = vsel %vm685, %v827, 0.0
    %v898 = vadd.f32 %v896, %v897
    %v899 = vsel %vm685, %v828, 0.0
    %v900 = vadd.f32 %v898, %v899
    %v901 = vsel %vm685, %v829, 0.0
    %v902 = vadd.f32 %v900, %v901
    %v903 = vsel %vm685, %v830, 0.0
    %v904 = vadd.f32 %v902, %v903
    %v905 = vsel %vm685, %v831, 0.0
    %v906 = vadd.f32 %v904, %v905
    %v907 = vsel %vm685, %v832, 0.0
    %v908 = vadd.f32 %v906, %v907
    %v909 = vsel %vm685, %v833, 0.0
    %v910 = vadd.f32 %v908, %v909
    %v911 = vsel %vm685, %v834, 0.0
    %v912 = vadd.f32 %v910, %v911
    %v913 = vsel %vm685, %v835, 0.0
    %v914 = vadd.f32 %v912, %v913
    %v915 = vsel %vm685, %v836, 0.0
    %v916 = vadd.f32 %v914, %v915
    %v917 = vsel %vm685, %v837, 0.0
    %v918 = vadd.f32 %v916, %v917
    %v919 = vsel %vm685, %v838, 0.0
    %v920 = vadd.f32 %v918, %v919
    %v921 = vsel %vm685, %v839, 0.0
    %v922 = vadd.f32 %v920, %v921
    %v923 = vsel %vm685, %v840, 0.0
    %v924 = vadd.f32 %v922, %v923
    %v925 = vsel %vm685, %v841, 0.0
    %v926 = vadd.f32 %v924, %v925
    %v927 = vsel %vm685, %v842, 0.0
    %v928 = vadd.f32 %v926, %v927
    %v929 = vsel %vm685, %v843, 0.0
    %v930 = vadd.f32 %v928, %v929
    %v931 = vsel %vm685, %v844, 0.0
    %v932 = vadd.f32 %v930, %v931
    %v933 = vsel %vm685, %v845, 0.0
    %v934 = vadd.f32 %v932, %v933
    %v935 = vsel %vm685, %v846, 0.0
    %v936 = vadd.f32 %v934, %v935
    %v937 = vsel %vm685, %v847, 0.0
    %v938 = vadd.f32 %v936, %v937
    %v939 = vsel %vm685, %v848, 0.0
    %v940 = vadd.f32 %v938, %v939
    %v941 = vsel %vm685, %v849, 0.0
    %v942 = vadd.f32 %v940, %v941
    %v943 = vsel %vm685, %v850, 0.0
    %v944 = vadd.f32 %v942, %v943
    %v945 = vsel %vm685, %v851, 0.0
    %v946 = vadd.f32 %v944, %v945
    %v947 = vsel %vm685, %v852, 0.0
    %v948 = vadd.f32 %v946, %v947
    %v949 = vsel %vm685, %v853, 0.0
    %v950 = vadd.f32 %v948, %v949
    %v951 = vsel %vm685, %v854, 0.0
    %v952 = vadd.f32 %v950, %v951
    %v953 = vsel %vm685, %v855, 0.0
    %v954 = vadd.f32 %v952, %v953
    %v955 = vsel %vm685, %v856, 0.0
    %v956 = vadd.f32 %v954, %v955
    %v957 = vsel %vm685, %v857, 0.0
    %v958 = vadd.f32 %v956, %v957
    %v959 = vsel %vm685, %v858, 0.0
    %v960 = vadd.f32 %v958, %v959
    %v961 = vsel %vm685, %v859, 0.0
    %v962 = vadd.f32 %v960, %v961
    %v963 = vsel %vm685, %v860, 0.0
    %v964 = vadd.f32 %v962, %v963
    %v965 = vsel %vm685, %v861, 0.0
    %v966 = vadd.f32 %v964, %v965
    %v967 = vsel %vm685, %v862, 0.0
    %v968 = vadd.f32 %v966, %v967
    %v969 = vsel %vm685, %v863, 0.0
    %v970 = vadd.f32 %v968, %v969
    %v971 = vsel %vm685, %v864, 0.0
    %v972 = vadd.f32 %v970, %v971
    %v973 = vsel %vm685, %v865, 0.0
    %v974 = vadd.f32 %v972, %v973
    %v975 = vsel %vm685, %v866, 0.0
    %v976 = vadd.f32 %v974, %v975
    %v977 = vsel %vm685, %v867, 0.0
    %v978 = vadd.f32 %v976, %v977
    %v979 = vsel %vm685, %v868, 0.0
    %v980 = vadd.f32 %v978, %v979
    %v981 = vsel %vm685, %v869, 0.0
    %v982 = vadd.f32 %v980, %v981
    %v983 = vsel %vm685, %v870, 0.0
    %v984 = vadd.f32 %v982, %v983
    %v985 = vsel %vm685, %v871, 0.0
    %v986 = vadd.f32 %v984, %v985
    %v987 = vsel %vm685, %v872, 0.0
    %v988 = vadd.f32 %v986, %v987
    %v989 = vsel %vm685, %v873, 0.0
    %v990 = vadd.f32 %v988, %v989
    %v991 = vsel %vm685, %v874, 0.0
    %v992 = vadd.f32 %v990, %v991
    %v993 = vsel %vm685, %v875, 0.0
    %v994 = vadd.f32 %v992, %v993
    %v995 = vsel %vm685, %v876, 0.0
    %v996 = vadd.f32 %v994, %v995
    %v997 = vsel %vm685, %v877, 0.0
    %v998 = vadd.f32 %v996, %v997
    %v999 = vsel %vm685, %v878, 0.0
    %v1000 = vadd.f32 %v998, %v999
    %v1001 = vsel %vm685, %v879, 0.0
    %v1002 = vadd.f32 %v1000, %v1001
    %v1003 = vsel %vm685, %v880, 0.0
    %v1004 = vadd.f32 %v1002, %v1003
    %v1005 = vsel %vm685, %v881, 0.0
    %v1006 = vadd.f32 %v1004, %v1005
    %v1007 = vsel %vm685, %v882, 0.0
    %v1008 = vadd.f32 %v1006, %v1007
    %v1009 = vsel %vm685, %v883, 0.0
    %v1010 = vadd.f32 %v1008, %v1009
    %v1011 = vrot.slane %v1010, 4
    %v1012 = vadd.f32 %v1010, %v1011
    %v1013 = vrot.slane %v1012, 2
    %v1014 = vadd.f32 %v1012, %v1013
    %v1015 = vrot.slane %v1014, 1
    %v1016 = vadd.f32 %v1014, %v1015
    %v1017 = vmul.f32 %v1016, 0.001953125
    %v1018 = vmul.f32 %v819, %v819
    %v1019 = vsub.f32 %v1017, %v1018
    %v1020 = vmax.f32 %v1019, 0.0
    %v1021 = vadd.f32 %v1020, 1e-05
    %v1022 = vrsqrt.pop %v1021
    %v1023 = vmul.f32 %v683, %v1022
    %v1024 = vmul.f32 %v819, %v1023
    %v1025 = vsub.f32 %v684, %v1024
    %v1027 = vlaneseq
    %v1028 = vshrl.u32 %v1027, 7
    %v1029 = vsub.s32 0, %v1028
    %v1030 = vrot.slane %v1023, %v1029
    %v1032 = vmul.f32 %v429, %v1030
    %v1033 = vmul.f32 %v432, %v1030
    %v1034 = vmul.f32 %v437, %v1030
    %v1035 = vmul.f32 %v440, %v1030
    %v1036 = vmul.f32 %v445, %v1030
    %v1037 = vmul.f32 %v448, %v1030
    %v1038 = vmul.f32 %v453, %v1030
    %v1039 = vmul.f32 %v456, %v1030
    %v1040 = vmul.f32 %v461, %v1030
    %v1041 = vmul.f32 %v464, %v1030
    %v1042 = vmul.f32 %v469, %v1030
    %v1043 = vmul.f32 %v472, %v1030
    %v1044 = vmul.f32 %v477, %v1030
    %v1045 = vmul.f32 %v480, %v1030
    %v1046 = vmul.f32 %v485, %v1030
    %v1047 = vmul.f32 %v488, %v1030
    %v1048 = vmul.f32 %v493, %v1030
    %v1049 = vmul.f32 %v496, %v1030
    %v1050 = vmul.f32 %v501, %v1030
    %v1051 = vmul.f32 %v504, %v1030
    %v1052 = vmul.f32 %v509, %v1030
    %v1053 = vmul.f32 %v512, %v1030
    %v1054 = vmul.f32 %v517, %v1030
    %v1055 = vmul.f32 %v520, %v1030
    %v1056 = vmul.f32 %v525, %v1030
    %v1057 = vmul.f32 %v528, %v1030
    %v1058 = vmul.f32 %v533, %v1030
    %v1059 = vmul.f32 %v536, %v1030
    %v1060 = vmul.f32 %v541, %v1030
    %v1061 = vmul.f32 %v544, %v1030
    %v1062 = vmul.f32 %v549, %v1030
    %v1063 = vmul.f32 %v552, %v1030
    %v1064 = vmul.f32 %v557, %v1030
    %v1065 = vmul.f32 %v560, %v1030
    %v1066 = vmul.f32 %v565, %v1030
    %v1067 = vmul.f32 %v568, %v1030
    %v1068 = vmul.f32 %v573, %v1030
    %v1069 = vmul.f32 %v576, %v1030
    %v1070 = vmul.f32 %v581, %v1030
    %v1071 = vmul.f32 %v584, %v1030
    %v1072 = vmul.f32 %v589, %v1030
    %v1073 = vmul.f32 %v592, %v1030
    %v1074 = vmul.f32 %v597, %v1030
    %v1075 = vmul.f32 %v600, %v1030
    %v1076 = vmul.f32 %v605, %v1030
    %v1077 = vmul.f32 %v608, %v1030
    %v1078 = vmul.f32 %v613, %v1030
    %v1079 = vmul.f32 %v616, %v1030
    %v1080 = vmul.f32 %v621, %v1030
    %v1081 = vmul.f32 %v624, %v1030
    %v1082 = vmul.f32 %v629, %v1030
    %v1083 = vmul.f32 %v632, %v1030
    %v1084 = vmul.f32 %v637, %v1030
    %v1085 = vmul.f32 %v640, %v1030
    %v1086 = vmul.f32 %v645, %v1030
    %v1087 = vmul.f32 %v648, %v1030
    %v1088 = vmul.f32 %v653, %v1030
    %v1089 = vmul.f32 %v656, %v1030
    %v1090 = vmul.f32 %v661, %v1030
    %v1091 = vmul.f32 %v664, %v1030
    %v1092 = vmul.f32 %v669, %v1030
    %v1093 = vmul.f32 %v672, %v1030
    %v1094 = vmul.f32 %v677, %v1030
    %v1095 = vmul.f32 %v680, %v1030
    %v1097 = vlaneseq
    %v1098 = vshrl.u32 %v1097, 7
    %v1099 = vsub.s32 0, %v1098
    %v1100 = vrot.slane %v1025, %v1099
    %v1102 = vadd.f32 %v1032, %v1100
    %v1103 = vadd.f32 %v1033, %v1100
    %v1104 = vadd.f32 %v1034, %v1100
    %v1105 = vadd.f32 %v1035, %v1100
    %v1106 = vadd.f32 %v1036, %v1100
    %v1107 = vadd.f32 %v1037, %v1100
    %v1108 = vadd.f32 %v1038, %v1100
    %v1109 = vadd.f32 %v1039, %v1100
    %v1110 = vadd.f32 %v1040, %v1100
    %v1111 = vadd.f32 %v1041, %v1100
    %v1112 = vadd.f32 %v1042, %v1100
    %v1113 = vadd.f32 %v1043, %v1100
    %v1114 = vadd.f32 %v1044, %v1100
    %v1115 = vadd.f32 %v1045, %v1100
    %v1116 = vadd.f32 %v1046, %v1100
    %v1117 = vadd.f32 %v1047, %v1100
    %v1118 = vadd.f32 %v1048, %v1100
    %v1119 = vadd.f32 %v1049, %v1100
    %v1120 = vadd.f32 %v1050, %v1100
    %v1121 = vadd.f32 %v1051, %v1100
    %v1122 = vadd.f32 %v1052, %v1100
    %v1123 = vadd.f32 %v1053, %v1100
    %v1124 = vadd.f32 %v1054, %v1100
    %v1125 = vadd.f32 %v1055, %v1100
    %v1126 = vadd.f32 %v1056, %v1100
    %v1127 = vadd.f32 %v1057, %v1100
    %v1128 = vadd.f32 %v1058, %v1100
    %v1129 = vadd.f32 %v1059, %v1100
    %v1130 = vadd.f32 %v1060, %v1100
    %v1131 = vadd.f32 %v1061, %v1100
    %v1132 = vadd.f32 %v1062, %v1100
    %v1133 = vadd.f32 %v1063, %v1100
    %v1134 = vadd.f32 %v1064, %v1100
    %v1135 = vadd.f32 %v1065, %v1100
    %v1136 = vadd.f32 %v1066, %v1100
    %v1137 = vadd.f32 %v1067, %v1100
    %v1138 = vadd.f32 %v1068, %v1100
    %v1139 = vadd.f32 %v1069, %v1100
    %v1140 = vadd.f32 %v1070, %v1100
    %v1141 = vadd.f32 %v1071, %v1100
    %v1142 = vadd.f32 %v1072, %v1100
    %v1143 = vadd.f32 %v1073, %v1100
    %v1144 = vadd.f32 %v1074, %v1100
    %v1145 = vadd.f32 %v1075, %v1100
    %v1146 = vadd.f32 %v1076, %v1100
    %v1147 = vadd.f32 %v1077, %v1100
    %v1148 = vadd.f32 %v1078, %v1100
    %v1149 = vadd.f32 %v1079, %v1100
    %v1150 = vadd.f32 %v1080, %v1100
    %v1151 = vadd.f32 %v1081, %v1100
    %v1152 = vadd.f32 %v1082, %v1100
    %v1153 = vadd.f32 %v1083, %v1100
    %v1154 = vadd.f32 %v1084, %v1100
    %v1155 = vadd.f32 %v1085, %v1100
    %v1156 = vadd.f32 %v1086, %v1100
    %v1157 = vadd.f32 %v1087, %v1100
    %v1158 = vadd.f32 %v1088, %v1100
    %v1159 = vadd.f32 %v1089, %v1100
    %v1160 = vadd.f32 %v1090, %v1100
    %v1161 = vadd.f32 %v1091, %v1100
    %v1162 = vadd.f32 %v1092, %v1100
    %v1163 = vadd.f32 %v1093, %v1100
    %v1164 = vadd.f32 %v1094, %v1100
    %v1165 = vadd.f32 %v1095, %v1100
    %v1166 = vsel %vm685, %v1102, -inf
    %v1167 = vsel %vm685, %v1104, -inf
    %v1168 = vmax.f32 %v1166, %v1167
    %v1169 = vsel %vm685, %v1103, -inf
    %v1170 = vsel %vm685, %v1105, -inf
    %v1171 = vmax.f32 %v1169, %v1170
    %v1172 = vsel %vm685, %v1106, -inf
    %v1173 = vsel %vm685, %v1108, -inf
    %v1174 = vmax.f32 %v1172, %v1173
    %v1175 = vsel %vm685, %v1107, -inf
    %v1176 = vsel %vm685, %v1109, -inf
    %v1177 = vmax.f32 %v1175, %v1176
    %v1178 = vsel %vm685, %v1110, -inf
    %v1179 = vsel %vm685, %v1112, -inf
    %v1180 = vmax.f32 %v1178, %v1179
    %v1181 = vsel %vm685, %v1111, -inf
    %v1182 = vsel %vm685, %v1113, -inf
    %v1183 = vmax.f32 %v1181, %v1182
    %v1184 = vsel %vm685, %v1114, -inf
    %v1185 = vsel %vm685, %v1116, -inf
    %v1186 = vmax.f32 %v1184, %v1185
    %v1187 = vsel %vm685, %v1115, -inf
    %v1188 = vsel %vm685, %v1117, -inf
    %v1189 = vmax.f32 %v1187, %v1188
    %v1190 = vsel %vm685, %v1118, -inf
    %v1191 = vsel %vm685, %v1120, -inf
    %v1192 = vmax.f32 %v1190, %v1191
    %v1193 = vsel %vm685, %v1119, -inf
    %v1194 = vsel %vm685, %v1121, -inf
    %v1195 = vmax.f32 %v1193, %v1194
    %v1196 = vsel %vm685, %v1122, -inf
    %v1197 = vsel %vm685, %v1124, -inf
    %v1198 = vmax.f32 %v1196, %v1197
    %v1199 = vsel %vm685, %v1123, -inf
    %v1200 = vsel %vm685, %v1125, -inf
    %v1201 = vmax.f32 %v1199, %v1200
    %v1202 = vsel %vm685, %v1126, -inf
    %v1203 = vsel %vm685, %v1128, -inf
    %v1204 = vmax.f32 %v1202, %v1203
    %v1205 = vsel %vm685, %v1127, -inf
    %v1206 = vsel %vm685, %v1129, -inf
    %v1207 = vmax.f32 %v1205, %v1206
    %v1208 = vsel %vm685, %v1130, -inf
    %v1209 = vsel %vm685, %v1132, -inf
    %v1210 = vmax.f32 %v1208, %v1209
    %v1211 = vsel %vm685, %v1131, -inf
    %v1212 = vsel %vm685, %v1133, -inf
    %v1213 = vmax.f32 %v1211, %v1212
    %v1214 = vsel %vm685, %v1134, -inf
    %v1215 = vsel %vm685, %v1136, -inf
    %v1216 = vmax.f32 %v1214, %v1215
    %v1217 = vsel %vm685, %v1135, -inf
    %v1218 = vsel %vm685, %v1137, -inf
    %v1219 = vmax.f32 %v1217, %v1218
    %v1220 = vsel %vm685, %v1138, -inf
    %v1221 = vsel %vm685, %v1140, -inf
    %v1222 = vmax.f32 %v1220, %v1221
    %v1223 = vsel %vm685, %v1139, -inf
    %v1224 = vsel %vm685, %v1141, -inf
    %v1225 = vmax.f32 %v1223, %v1224
    %v1226 = vsel %vm685, %v1142, -inf
    %v1227 = vsel %vm685, %v1144, -inf
    %v1228 = vmax.f32 %v1226, %v1227
    %v1229 = vsel %vm685, %v1143, -inf
    %v1230 = vsel %vm685, %v1145, -inf
    %v1231 = vmax.f32 %v1229, %v1230
    %v1232 = vsel %vm685, %v1146, -inf
    %v1233 = vsel %vm685, %v1148, -inf
    %v1234 = vmax.f32 %v1232, %v1233
    %v1235 = vsel %vm685, %v1147, -inf
    %v1236 = vsel %vm685, %v1149, -inf
    %v1237 = vmax.f32 %v1235, %v1236
    %v1238 = vsel %vm685, %v1150, -inf
    %v1239 = vsel %vm685, %v1152, -inf
    %v1240 = vmax.f32 %v1238, %v1239
    %v1241 = vsel %vm685, %v1151, -inf
    %v1242 = vsel %vm685, %v1153, -inf
    %v1243 = vmax.f32 %v1241, %v1242
    %v1244 = vsel %vm685, %v1154, -inf
    %v1245 = vsel %vm685, %v1156, -inf
    %v1246 = vmax.f32 %v1244, %v1245
    %v1247 = vsel %vm685, %v1155, -inf
    %v1248 = vsel %vm685, %v1157, -inf
    %v1249 = vmax.f32 %v1247, %v1248
    %v1250 = vsel %vm685, %v1158, -inf
    %v1251 = vsel %vm685, %v1160, -inf
    %v1252 = vmax.f32 %v1250, %v1251
    %v1253 = vsel %vm685, %v1159, -inf
    %v1254 = vsel %vm685, %v1161, -inf
    %v1255 = vmax.f32 %v1253, %v1254
    %v1256 = vsel %vm685, %v1162, -inf
    %v1257 = vsel %vm685, %v1164, -inf
    %v1258 = vmax.f32 %v1256, %v1257
    %v1259 = vsel %vm685, %v1163, -inf
    %v1260 = vsel %vm685, %v1165, -inf
    %v1261 = vmax.f32 %v1259, %v1260
    %1262 = vst.msk [vmem:[#allocation2] sm:$0xff] %vm685, %v1168
    %1263 = vst.msk [vmem:[#allocation2 + $0x8] sm:$0xff] %vm685, %v1171
    %1264 = vst.msk [vmem:[#allocation2 + $0x10] sm:$0xff] %vm685, %v1174
    %1265 = vst.msk [vmem:[#allocation2 + $0x18] sm:$0xff] %vm685, %v1177
    %1266 = vst.msk [vmem:[#allocation2 + $0x20] sm:$0xff] %vm685, %v1180
    %1267 = vst.msk [vmem:[#allocation2 + $0x28] sm:$0xff] %vm685, %v1183
    %1268 = vst.msk [vmem:[#allocation2 + $0x30] sm:$0xff] %vm685, %v1186
    %1269 = vst.msk [vmem:[#allocation2 + $0x38] sm:$0xff] %vm685, %v1189
    %1270 = vst.msk [vmem:[#allocation2 + $0x40] sm:$0xff] %vm685, %v1192
    %1271 = vst.msk [vmem:[#allocation2 + $0x48] sm:$0xff] %vm685, %v1195
    %1272 = vst.msk [vmem:[#allocation2 + $0x50] sm:$0xff] %vm685, %v1198
    %1273 = vst.msk [vmem:[#allocation2 + $0x58] sm:$0xff] %vm685, %v1201
    %1274 = vst.msk [vmem:[#allocation2 + $0x60] sm:$0xff] %vm685, %v1204
    %1275 = vst.msk [vmem:[#allocation2 + $0x68] sm:$0xff] %vm685, %v1207
    %1276 = vst.msk [vmem:[#allocation2 + $0x70] sm:$0xff] %vm685, %v1210
    %1277 = vst.msk [vmem:[#allocation2 + $0x78] sm:$0xff] %vm685, %v1213
    %1278 = vst.msk [vmem:[#allocation2 + $0x80] sm:$0xff] %vm685, %v1216
    %1279 = vst.msk [vmem:[#allocation2 + $0x88] sm:$0xff] %vm685, %v1219
    %1280 = vst.msk [vmem:[#allocation2 + $0x90] sm:$0xff] %vm685, %v1222
    %1281 = vst.msk [vmem:[#allocation2 + $0x98] sm:$0xff] %vm685, %v1225
    %1282 = vst.msk [vmem:[#allocation2 + $0xa0] sm:$0xff] %vm685, %v1228
    %1283 = vst.msk [vmem:[#allocation2 + $0xa8] sm:$0xff] %vm685, %v1231
    %1284 = vst.msk [vmem:[#allocation2 + $0xb0] sm:$0xff] %vm685, %v1234
    %1285 = vst.msk [vmem:[#allocation2 + $0xb8] sm:$0xff] %vm685, %v1237
    %1286 = vst.msk [vmem:[#allocation2 + $0xc0] sm:$0xff] %vm685, %v1240
    %1287 = vst.msk [vmem:[#allocation2 + $0xc8] sm:$0xff] %vm685, %v1243
    %1288 = vst.msk [vmem:[#allocation2 + $0xd0] sm:$0xff] %vm685, %v1246
    %1289 = vst.msk [vmem:[#allocation2 + $0xd8] sm:$0xff] %vm685, %v1249
    %1290 = vst.msk [vmem:[#allocation2 + $0xe0] sm:$0xff] %vm685, %v1252
    %1291 = vst.msk [vmem:[#allocation2 + $0xe8] sm:$0xff] %vm685, %v1255
    %1292 = vst.msk [vmem:[#allocation2 + $0xf0] sm:$0xff] %vm685, %v1258
    %1293 = vst.msk [vmem:[#allocation2 + $0xf8] sm:$0xff] %vm685, %v1261
    %v1294 = vld [vmem:[#allocation2] ss:$2 sm:$0xff]
    %s1295 = scalar_lea.vmem [#allocation2], 16
    %v1296 = vld [vmem:[%s1295] ss:$2 sm:$0xff]
    %s1297 = scalar_lea.vmem [#allocation2], 32
    %v1298 = vld [vmem:[%s1297] ss:$2 sm:$0xff]
    %s1299 = scalar_lea.vmem [#allocation2], 48
    %v1300 = vld [vmem:[%s1299] ss:$2 sm:$0xff]
    %s1301 = scalar_lea.vmem [#allocation2], 64
    %v1302 = vld [vmem:[%s1301] ss:$2 sm:$0xff]
    %s1303 = scalar_lea.vmem [#allocation2], 80
    %v1304 = vld [vmem:[%s1303] ss:$2 sm:$0xff]
    %s1305 = scalar_lea.vmem [#allocation2], 96
    %v1306 = vld [vmem:[%s1305] ss:$2 sm:$0xff]
    %s1307 = scalar_lea.vmem [#allocation2], 112
    %v1308 = vld [vmem:[%s1307] ss:$2 sm:$0xff]
    %s1309 = scalar_lea.vmem [#allocation2], 128
    %v1310 = vld [vmem:[%s1309] ss:$2 sm:$0xff]
    %s1311 = scalar_lea.vmem [#allocation2], 144
    %v1312 = vld [vmem:[%s1311] ss:$2 sm:$0xff]
    %s1313 = scalar_lea.vmem [#allocation2], 160
    %v1314 = vld [vmem:[%s1313] ss:$2 sm:$0xff]
    %s1315 = scalar_lea.vmem [#allocation2], 176
    %v1316 = vld [vmem:[%s1315] ss:$2 sm:$0xff]
    %s1317 = scalar_lea.vmem [#allocation2], 192
    %v1318 = vld [vmem:[%s1317] ss:$2 sm:$0xff]
    %s1319 = scalar_lea.vmem [#allocation2], 208
    %v1320 = vld [vmem:[%s1319] ss:$2 sm:$0xff]
    %s1321 = scalar_lea.vmem [#allocation2], 224
    %v1322 = vld [vmem:[%s1321] ss:$2 sm:$0xff]
    %s1323 = scalar_lea.vmem [#allocation2], 240
    %v1324 = vld [vmem:[%s1323] ss:$2 sm:$0xff]
    %s1325 = scalar_lea.vmem [#allocation2], 1
    %v1326 = vld [vmem:[%s1325] ss:$2 sm:$0xff]
    %s1327 = scalar_lea.vmem [#allocation2], 17
    %v1328 = vld [vmem:[%s1327] ss:$2 sm:$0xff]
    %s1329 = scalar_lea.vmem [#allocation2], 33
    %v1330 = vld [vmem:[%s1329] ss:$2 sm:$0xff]
    %s1331 = scalar_lea.vmem [#allocation2], 49
    %v1332 = vld [vmem:[%s1331] ss:$2 sm:$0xff]
    %s1333 = scalar_lea.vmem [#allocation2], 65
    %v1334 = vld [vmem:[%s1333] ss:$2 sm:$0xff]
    %s1335 = scalar_lea.vmem [#allocation2], 81
    %v1336 = vld [vmem:[%s1335] ss:$2 sm:$0xff]
    %s1337 = scalar_lea.vmem [#allocation2], 97
    %v1338 = vld [vmem:[%s1337] ss:$2 sm:$0xff]
    %s1339 = scalar_lea.vmem [#allocation2], 113
    %v1340 = vld [vmem:[%s1339] ss:$2 sm:$0xff]
    %s1341 = scalar_lea.vmem [#allocation2], 129
    %v1342 = vld [vmem:[%s1341] ss:$2 sm:$0xff]
    %s1343 = scalar_lea.vmem [#allocation2], 145
    %v1344 = vld [vmem:[%s1343] ss:$2 sm:$0xff]
    %s1345 = scalar_lea.vmem [#allocation2], 161
    %v1346 = vld [vmem:[%s1345] ss:$2 sm:$0xff]
    %s1347 = scalar_lea.vmem [#allocation2], 177
    %v1348 = vld [vmem:[%s1347] ss:$2 sm:$0xff]
    %s1349 = scalar_lea.vmem [#allocation2], 193
    %v1350 = vld [vmem:[%s1349] ss:$2 sm:$0xff]
    %s1351 = scalar_lea.vmem [#allocation2], 209
    %v1352 = vld [vmem:[%s1351] ss:$2 sm:$0xff]
    %s1353 = scalar_lea.vmem [#allocation2], 225
    %v1354 = vld [vmem:[%s1353] ss:$2 sm:$0xff]
    %s1355 = scalar_lea.vmem [#allocation2], 241
    %v1356 = vld [vmem:[%s1355] ss:$2 sm:$0xff]
    %v1357 = vmax.f32 %v1294, %v1326
    %v1358 = vmax.f32 %v1296, %v1328
    %v1359 = vmax.f32 %v1298, %v1330
    %v1360 = vmax.f32 %v1300, %v1332
    %v1361 = vmax.f32 %v1302, %v1334
    %v1362 = vmax.f32 %v1304, %v1336
    %v1363 = vmax.f32 %v1306, %v1338
    %v1364 = vmax.f32 %v1308, %v1340
    %v1365 = vmax.f32 %v1310, %v1342
    %v1366 = vmax.f32 %v1312, %v1344
    %v1367 = vmax.f32 %v1314, %v1346
    %v1368 = vmax.f32 %v1316, %v1348
    %v1369 = vmax.f32 %v1318, %v1350
    %v1370 = vmax.f32 %v1320, %v1352
    %v1371 = vmax.f32 %v1322, %v1354
    %v1372 = vmax.f32 %v1324, %v1356
    %v1373 = vmax.f32 %v1357, 0.0
    %v1374 = vmax.f32 %v1358, 0.0
    %v1375 = vmax.f32 %v1359, 0.0
    %v1376 = vmax.f32 %v1360, 0.0
    %v1377 = vmax.f32 %v1361, 0.0
    %v1378 = vmax.f32 %v1362, 0.0
    %v1379 = vmax.f32 %v1363, 0.0
    %v1380 = vmax.f32 %v1364, 0.0
    %v1381 = vmax.f32 %v1365, 0.0
    %v1382 = vmax.f32 %v1366, 0.0
    %v1383 = vmax.f32 %v1367, 0.0
    %v1384 = vmax.f32 %v1368, 0.0
    %v1385 = vmax.f32 %v1369, 0.0
    %v1386 = vmax.f32 %v1370, 0.0
    %v1387 = vmax.f32 %v1371, 0.0
    %v1388 = vmax.f32 %v1372, 0.0
    %1389 = vst.msk [vmem:[#allocation3] sm:$0xff] %vm685, 0.0
    %vm1390 = vcmask 254976
    %1391 = vst.msk [vmem:[#allocation3 + $0x8] sm:$0x3] %vm1390, 0.0
    %1392 = vst.msk [vmem:[#allocation3 + $0xa0] sm:$0xff] %vm685, 0.0
    %1393 = vst.msk [vmem:[#allocation3 + $0xa8] sm:$0x3] %vm1390, 0.0
    %s1394 = scalar_lea.vmem [#allocation3], 144
    %1395 = vst.msk [vmem:[%s1394] sm:$0xff] %vm685, 0.0
    %1396 = vst.msk [vmem:[%s1394 + $0x8] sm:$0x3] %vm1390, 0.0
    %1397 = vst.msk [vmem:[%s1394 + $0xa0] sm:$0xff] %vm685, 0.0
    %1398 = vst.msk [vmem:[%s1394 + $0xa8] sm:$0x3] %vm1390, 0.0
    %s1399 = scalar_lea.vmem [#allocation3], 16
    %vm1400 = vcmask 253952
    %1401 = vst.msk [vmem:[%s1399] sm:$0x1] %vm1400, 0.0
    %1402 = vst.msk [vmem:[%s1399 + $0x10] sm:$0x1] %vm1400, 0.0
    %1403 = vst.msk [vmem:[%s1399 + $0x20] sm:$0x1] %vm1400, 0.0
    %1404 = vst.msk [vmem:[%s1399 + $0x30] sm:$0x1] %vm1400, 0.0
    %1405 = vst.msk [vmem:[%s1399 + $0x40] sm:$0x1] %vm1400, 0.0
    %1406 = vst.msk [vmem:[%s1399 + $0x50] sm:$0x1] %vm1400, 0.0
    %1407 = vst.msk [vmem:[%s1399 + $0x60] sm:$0x1] %vm1400, 0.0
    %1408 = vst.msk [vmem:[%s1399 + $0x70] sm:$0x1] %vm1400, 0.0
    %1409 = vst.msk [vmem:[%s1399 + $0xa0] sm:$0x1] %vm1400, 0.0
    %1410 = vst.msk [vmem:[%s1399 + $0xb0] sm:$0x1] %vm1400, 0.0
    %1411 = vst.msk [vmem:[%s1399 + $0xc0] sm:$0x1] %vm1400, 0.0
    %1412 = vst.msk [vmem:[%s1399 + $0xd0] sm:$0x1] %vm1400, 0.0
    %1413 = vst.msk [vmem:[%s1399 + $0xe0] sm:$0x1] %vm1400, 0.0
    %1414 = vst.msk [vmem:[%s1399 + $0xf0] sm:$0x1] %vm1400, 0.0
    %1415 = vst.msk [vmem:[%s1399 + $0x100] sm:$0x1] %vm1400, 0.0
    %1416 = vst.msk [vmem:[%s1399 + $0x110] sm:$0x1] %vm1400, 0.0
    %1417 = vst.msk [vmem:[%s1399 + $0x9] sm:$0x1] %vm1400, 0.0
    %1418 = vst.msk [vmem:[%s1399 + $0x19] sm:$0x1] %vm1400, 0.0
    %1419 = vst.msk [vmem:[%s1399 + $0x29] sm:$0x1] %vm1400, 0.0
    %1420 = vst.msk [vmem:[%s1399 + $0x39] sm:$0x1] %vm1400, 0.0
    %1421 = vst.msk [vmem:[%s1399 + $0x49] sm:$0x1] %vm1400, 0.0
    %1422 = vst.msk [vmem:[%s1399 + $0x59] sm:$0x1] %vm1400, 0.0
    %1423 = vst.msk [vmem:[%s1399 + $0x69] sm:$0x1] %vm1400, 0.0
    %1424 = vst.msk [vmem:[%s1399 + $0x79] sm:$0x1] %vm1400, 0.0
    %1425 = vst.msk [vmem:[%s1399 + $0xa9] sm:$0x1] %vm1400, 0.0
    %1426 = vst.msk [vmem:[%s1399 + $0xb9] sm:$0x1] %vm1400, 0.0
    %1427 = vst.msk [vmem:[%s1399 + $0xc9] sm:$0x1] %vm1400, 0.0
    %1428 = vst.msk [vmem:[%s1399 + $0xd9] sm:$0x1] %vm1400, 0.0
    %1429 = vst.msk [vmem:[%s1399 + $0xe9] sm:$0x1] %vm1400, 0.0
    %1430 = vst.msk [vmem:[%s1399 + $0xf9] sm:$0x1] %vm1400, 0.0
    %1431 = vst.msk [vmem:[%s1399 + $0x109] sm:$0x1] %vm1400, 0.0
    %1432 = vst.msk [vmem:[%s1399 + $0x119] sm:$0x1] %vm1400, 0.0
    %1433 = vst.msk [vmem:[%s1399 + $0x1] sm:$0xff] %vm685, %v1373
    %1434 = vst.msk [vmem:[%s1399 + $0x11] sm:$0xff] %vm685, %v1374
    %1435 = vst.msk [vmem:[%s1399 + $0x21] sm:$0xff] %vm685, %v1375
    %1436 = vst.msk [vmem:[%s1399 + $0x31] sm:$0xff] %vm685, %v1376
    %1437 = vst.msk [vmem:[%s1399 + $0x41] sm:$0xff] %vm685, %v1377
    %1438 = vst.msk [vmem:[%s1399 + $0x51] sm:$0xff] %vm685, %v1378
    %1439 = vst.msk [vmem:[%s1399 + $0x61] sm:$0xff] %vm685, %v1379
    %1440 = vst.msk [vmem:[%s1399 + $0x71] sm:$0xff] %vm685, %v1380
    %1441 = vst.msk [vmem:[%s1399 + $0xa1] sm:$0xff] %vm685, %v1381
    %1442 = vst.msk [vmem:[%s1399 + $0xb1] sm:$0xff] %vm685, %v1382
    %1443 = vst.msk [vmem:[%s1399 + $0xc1] sm:$0xff] %vm685, %v1383
    %1444 = vst.msk [vmem:[%s1399 + $0xd1] sm:$0xff] %vm685, %v1384
    %1445 = vst.msk [vmem:[%s1399 + $0xe1] sm:$0xff] %vm685, %v1385
    %1446 = vst.msk [vmem:[%s1399 + $0xf1] sm:$0xff] %vm685, %v1386
    %1447 = vst.msk [vmem:[%s1399 + $0x101] sm:$0xff] %vm685, %v1387
    %1448 = vst.msk [vmem:[%s1399 + $0x111] sm:$0xff] %vm685, %v1388
    %v1449 = vld [vmem:[#allocation3] sm:$0xff]
    %v1450 = vld [vmem:[#allocation3 + $0x10] sm:$0xff]
    %v1451 = vld [vmem:[#allocation3 + $0x20] sm:$0xff]
    %v1452 = vld [vmem:[#allocation3 + $0x30] sm:$0xff]
    %v1453 = vld [vmem:[#allocation3 + $0x40] sm:$0xff]
    %v1454 = vld [vmem:[#allocation3 + $0x50] sm:$0xff]
    %v1455 = vld [vmem:[#allocation3 + $0x60] sm:$0xff]
    %v1456 = vld [vmem:[#allocation3 + $0x70] sm:$0xff]
    %v1457 = vld [vmem:[#allocation3 + $0xa0] sm:$0xff]
    %v1458 = vld [vmem:[#allocation3 + $0xb0] sm:$0xff]
    %v1459 = vld [vmem:[#allocation3 + $0xc0] sm:$0xff]
    %v1460 = vld [vmem:[#allocation3 + $0xd0] sm:$0xff]
    %v1461 = vld [vmem:[#allocation3 + $0xe0] sm:$0xff]
    %v1462 = vld [vmem:[#allocation3 + $0xf0] sm:$0xff]
    %v1463 = vld [vmem:[#allocation3 + $0x100] sm:$0xff]
    %v1464 = vld [vmem:[#allocation3 + $0x110] sm:$0xff]
    %v1465 = vpack.c.bf16 %v1450, %v1449
    %v1466 = vpack.c.bf16 %v1452, %v1451
    %v1467 = vpack.c.bf16 %v1454, %v1453
    %v1468 = vpack.c.bf16 %v1456, %v1455
    %v1469 = vpack.c.bf16 %v1458, %v1457
    %v1470 = vpack.c.bf16 %v1460, %v1459
    %v1471 = vpack.c.bf16 %v1462, %v1461
    %v1472 = vpack.c.bf16 %v1464, %v1463
    %v1473 = vld [vmem:[%s4] sm:$0xf]
    %v1474 = vld [vmem:[%s4 + $0x4] sm:$0xf]
    %v1475 = vld [vmem:[%s4 + $0x8] sm:$0xf]
    %v1476 = vld [vmem:[%s4 + $0xc] sm:$0xf]
    %v1477 = vld [vmem:[#allocation3 + $0x1] sm:$0xff]
    %v1478 = vld [vmem:[#allocation3 + $0x11] sm:$0xff]
    %v1479 = vld [vmem:[#allocation3 + $0x21] sm:$0xff]
    %v1480 = vld [vmem:[#allocation3 + $0x31] sm:$0xff]
    %v1481 = vld [vmem:[#allocation3 + $0x41] sm:$0xff]
    %v1482 = vld [vmem:[#allocation3 + $0x51] sm:$0xff]
    %v1483 = vld [vmem:[#allocation3 + $0x61] sm:$0xff]
    %v1484 = vld [vmem:[#allocation3 + $0x71] sm:$0xff]
    %v1485 = vld [vmem:[#allocation3 + $0xa1] sm:$0xff]
    %v1486 = vld [vmem:[#allocation3 + $0xb1] sm:$0xff]
    %v1487 = vld [vmem:[#allocation3 + $0xc1] sm:$0xff]
    %v1488 = vld [vmem:[#allocation3 + $0xd1] sm:$0xff]
    %v1489 = vld [vmem:[#allocation3 + $0xe1] sm:$0xff]
    %v1490 = vld [vmem:[#allocation3 + $0xf1] sm:$0xff]
    %v1491 = vld [vmem:[#allocation3 + $0x101] sm:$0xff]
    %v1492 = vld [vmem:[#allocation3 + $0x111] sm:$0xff]
    %v1493 = vpack.c.bf16 %v1478, %v1477
    %v1494 = vpack.c.bf16 %v1480, %v1479
    %v1495 = vpack.c.bf16 %v1482, %v1481
    %v1496 = vpack.c.bf16 %v1484, %v1483
    %v1497 = vpack.c.bf16 %v1486, %v1485
    %v1498 = vpack.c.bf16 %v1488, %v1487
    %v1499 = vpack.c.bf16 %v1490, %v1489
    %v1500 = vpack.c.bf16 %v1492, %v1491
    %v1501 = vld [vmem:[%s4 + $0x10] sm:$0xf]
    %v1502 = vld [vmem:[%s4 + $0x14] sm:$0xf]
    %v1503 = vld [vmem:[%s4 + $0x18] sm:$0xf]
    %v1504 = vld [vmem:[%s4 + $0x1c] sm:$0xf]
    %v1509 = vunpack.c.l.b16 %v1501
    %v1510 = vunpack.c.l.b16 %v1502
    %v1511 = vunpack.c.l.b16 %v1503
    %v1512 = vunpack.c.l.b16 %v1504
    %v1513 = vpack.c.b16 %v1510, %v1509
    %v1514 = vpack.c.b16 %v1512, %v1511
    %v1518 = vsel %vm685, %v1493, 0
    %v1521 = vsel %vm685, %v1494, 0
    %v1524 = vsel %vm685, %v1495, 0
    %v1527 = vsel %vm685, %v1496, 0
    %v1530 = vsel %vm685, %v1497, 0
    %v1533 = vsel %vm685, %v1498, 0
    %v1536 = vsel %vm685, %v1499, 0
    %v1539 = vsel %vm685, %v1500, 0
    %1541 = vmatprep.subr.bf16.mxu0 0
    %1542 = vmatpush1.bf16.msra.mxu0 %v1513
    %1543 = vmatprep.subr.bf16.mxu0 0
    %1544 = vmatpush1.bf16.msra.mxu0 %v1514
    %1545 = vmatprep.subr.bf16.mxu0 0
    %1546 = vmatpush1.bf16.msra.mxu0 0
    %1547 = vmatprep.subr.bf16.mxu0 0
    %1548 = vmatpush1.bf16.msra.mxu0 0
    %1549 = vmatprep.subr.bf16.mxu0 0
    %1550 = vmatpush1.bf16.msra.mxu0 0
    %1551 = vmatprep.subr.bf16.mxu0 0
    %1552 = vmatpush1.bf16.msra.mxu0 0
    %1553 = vmatprep.subr.bf16.mxu0 0
    %1554 = vmatpush1.bf16.msra.mxu0 0
    %1555 = vmatprep.subr.bf16.mxu0 0
    %1556 = vmatpush1.bf16.msra.mxu0 0
    %1557 = vmatprep.subr.bf16.mxu0 0
    %1558 = vmatpush1.bf16.msra.mxu0 0
    %1559 = vmatprep.subr.bf16.mxu0 0
    %1560 = vmatpush1.bf16.msra.mxu0 0
    %1561 = vmatprep.subr.bf16.mxu0 0
    %1562 = vmatpush1.bf16.msra.mxu0 0
    %1563 = vmatprep.subr.bf16.mxu0 0
    %1564 = vmatpush1.bf16.msra.mxu0 0
    %1565 = vmatprep.subr.bf16.mxu0 0
    %1566 = vmatpush1.bf16.msra.mxu0 0
    %1567 = vmatprep.subr.bf16.mxu0 0
    %1568 = vmatpush1.bf16.msra.mxu0 0
    %1569 = vmatprep.subr.bf16.mxu0 0
    %1570 = vmatpush1.bf16.msra.mxu0 0
    %1571 = vmatprep.subr.bf16.mxu0 0
    %1572 = vmatpush1.bf16.msra.mxu0 0
    %1573 = vmatprep.mubr.bf16.mxu0 0
    %1574 = vmatmul.mubr.bf16.gmra.mrb[0].mxu0 %v1518
    %v1575 = vpop.f32.mrb[0].mxu0
    %v1576 = vadd.f32 0.0, %v1575
    %v1577 = vpop.f32.mrb[0].mxu0
    %v1578 = vpop.f32.mrb[0].mxu0
    %v1579 = vadd.f32 0.0, %v1578
    %v1580 = vpop.f32.mrb[0].mxu0
    %1581 = vmatprep.mubr.bf16.mxu0 0
    %1582 = vmatmul.mubr.bf16.gmra.mrb[0].mxu0 %v1521
    %v1583 = vpop.f32.mrb[0].mxu0
    %v1584 = vadd.f32 0.0, %v1583
    %v1585 = vpop.f32.mrb[0].mxu0
    %v1586 = vpop.f32.mrb[0].mxu0
    %v1587 = vadd.f32 0.0, %v1586
    %v1588 = vpop.f32.mrb[0].mxu0
    %1589 = vmatprep.mubr.bf16.mxu0 0
    %1590 = vmatmul.mubr.bf16.gmra.mrb[0].mxu0 %v1524
    %v1591 = vpop.f32.mrb[0].mxu0
    %v1592 = vadd.f32 0.0, %v1591
    %v1593 = vpop.f32.mrb[0].mxu0
    %v1594 = vpop.f32.mrb[0].mxu0
    %v1595 = vadd.f32 0.0, %v1594
    %v1596 = vpop.f32.mrb[0].mxu0
    %1597 = vmatprep.mubr.bf16.mxu0 0
    %1598 = vmatmul.mubr.bf16.gmra.mrb[0].mxu0 %v1527
    %v1599 = vpop.f32.mrb[0].mxu0
    %v1600 = vadd.f32 0.0, %v1599
    %v1601 = vpop.f32.mrb[0].mxu0
    %v1602 = vpop.f32.mrb[0].mxu0
    %v1603 = vadd.f32 0.0, %v1602
    %v1604 = vpop.f32.mrb[0].mxu0
    %1605 = vmatprep.mubr.bf16.mxu0 0
    %1606 = vmatmul.mubr.bf16.gmra.mrb[0].mxu0 %v1530
    %v1607 = vpop.f32.mrb[0].mxu0
    %v1608 = vadd.f32 0.0, %v1607
    %v1609 = vpop.f32.mrb[0].mxu0
    %v1610 = vpop.f32.mrb[0].mxu0
    %v1611 = vadd.f32 0.0, %v1610
    %v1612 = vpop.f32.mrb[0].mxu0
    %1613 = vmatprep.mubr.bf16.mxu0 0
    %1614 = vmatmul.mubr.bf16.gmra.mrb[0].mxu0 %v1533
    %v1615 = vpop.f32.mrb[0].mxu0
    %v1616 = vadd.f32 0.0, %v1615
    %v1617 = vpop.f32.mrb[0].mxu0
    %v1618 = vpop.f32.mrb[0].mxu0
    %v1619 = vadd.f32 0.0, %v1618
    %v1620 = vpop.f32.mrb[0].mxu0
    %1621 = vmatprep.mubr.bf16.mxu0 0
    %1622 = vmatmul.mubr.bf16.gmra.mrb[0].mxu0 %v1536
    %v1623 = vpop.f32.mrb[0].mxu0
    %v1624 = vadd.f32 0.0, %v1623
    %v1625 = vpop.f32.mrb[0].mxu0
    %v1626 = vpop.f32.mrb[0].mxu0
    %v1627 = vadd.f32 0.0, %v1626
    %v1628 = vpop.f32.mrb[0].mxu0
    %1629 = vmatprep.mubr.bf16.mxu0 0
    %1630 = vmatmul.mubr.bf16.gmra.mrb[0].mxu0 %v1539
    %v1631 = vpop.f32.mrb[0].mxu0
    %v1632 = vadd.f32 0.0, %v1631
    %v1633 = vpop.f32.mrb[0].mxu0
    %v1634 = vpop.f32.mrb[0].mxu0
    %v1635 = vadd.f32 0.0, %v1634
    %v1636 = vpop.f32.mrb[0].mxu0
    %1637 = vdwg.mxu0
    %v1642 = vunpack.c.l.b16 %v1473
    %v1643 = vunpack.c.l.b16 %v1474
    %v1644 = vunpack.c.l.b16 %v1475
    %v1645 = vunpack.c.l.b16 %v1476
    %v1646 = vpack.c.b16 %v1643, %v1642
    %v1647 = vpack.c.b16 %v1645, %v1644
    %v1651 = vsel %vm685, %v1465, 0
    %v1654 = vsel %vm685, %v1466, 0
    %v1657 = vsel %vm685, %v1467, 0
    %v1660 = vsel %vm685, %v1468, 0
    %v1663 = vsel %vm685, %v1469, 0
    %v1666 = vsel %vm685, %v1470, 0
    %v1669 = vsel %vm685, %v1471, 0
    %v1672 = vsel %vm685, %v1472, 0
    %1674 = vmatprep.subr.bf16.mxu0 0
    %1675 = vmatpush1.bf16.msra.mxu0 %v1646
    %1676 = vmatprep.subr.bf16.mxu0 0
    %1677 = vmatpush1.bf16.msra.mxu0 %v1647
    %1678 = vmatprep.subr.bf16.mxu0 0
    %1679 = vmatpush1.bf16.msra.mxu0 0
    %1680 = vmatprep.subr.bf16.mxu0 0
    %1681 = vmatpush1.bf16.msra.mxu0 0
    %1682 = vmatprep.subr.bf16.mxu0 0
    %1683 = vmatpush1.bf16.msra.mxu0 0
    %1684 = vmatprep.subr.bf16.mxu0 0
    %1685 = vmatpush1.bf16.msra.mxu0 0
    %1686 = vmatprep.subr.bf16.mxu0 0
    %1687 = vmatpush1.bf16.msra.mxu0 0
    %1688 = vmatprep.subr.bf16.mxu0 0
    %1689 = vmatpush1.bf16.msra.mxu0 0
    %1690 = vmatprep.subr.bf16.mxu0 0
    %1691 = vmatpush1.bf16.msra.mxu0 0
    %1692 = vmatprep.subr.bf16.mxu0 0
    %1693 = vmatpush1.bf16.msra.mxu0 0
    %1694 = vmatprep.subr.bf16.mxu0 0
    %1695 = vmatpush1.bf16.msra.mxu0 0
    %1696 = vmatprep.subr.bf16.mxu0 0
    %1697 = vmatpush1.bf16.msra.mxu0 0
    %1698 = vmatprep.subr.bf16.mxu0 0
    %1699 = vmatpush1.bf16.msra.mxu0 0
    %1700 = vmatprep.subr.bf16.mxu0 0
    %1701 = vmatpush1.bf16.msra.mxu0 0
    %1702 = vmatprep.subr.bf16.mxu0 0
    %1703 = vmatpush1.bf16.msra.mxu0 0
    %1704 = vmatprep.subr.bf16.mxu0 0
    %1705 = vmatpush1.bf16.msra.mxu0 0
    %1706 = vmatprep.mubr.bf16.mxu0 0
    %1707 = vmatmul.mubr.bf16.gmra.mrb[0].mxu0 %v1651
    %v1708 = vpop.f32.mrb[0].mxu0
    %v1709 = vadd.f32 %v1576, %v1708
    %v1710 = vpop.f32.mrb[0].mxu0
    %v1711 = vpop.f32.mrb[0].mxu0
    %v1712 = vadd.f32 %v1579, %v1711
    %v1713 = vpop.f32.mrb[0].mxu0
    %1714 = vmatprep.mubr.bf16.mxu0 0
    %1715 = vmatmul.mubr.bf16.gmra.mrb[0].mxu0 %v1654
    %v1716 = vpop.f32.mrb[0].mxu0
    %v1717 = vadd.f32 %v1584, %v1716
    %v1718 = vpop.f32.mrb[0].mxu0
    %v1719 = vpop.f32.mrb[0].mxu0
    %v1720 = vadd.f32 %v1587, %v1719
    %v1721 = vpop.f32.mrb[0].mxu0
    %1722 = vmatprep.mubr.bf16.mxu0 0
    %1723 = vmatmul.mubr.bf16.gmra.mrb[0].mxu0 %v1657
    %v1724 = vpop.f32.mrb[0].mxu0
    %v1725 = vadd.f32 %v1592, %v1724
    %v1726 = vpop.f32.mrb[0].mxu0
    %v1727 = vpop.f32.mrb[0].mxu0
    %v1728 = vadd.f32 %v1595, %v1727
    %v1729 = vpop.f32.mrb[0].mxu0
    %1730 = vmatprep.mubr.bf16.mxu0 0
    %1731 = vmatmul.mubr.bf16.gmra.mrb[0].mxu0 %v1660
    %v1732 = vpop.f32.mrb[0].mxu0
    %v1733 = vadd.f32 %v1600, %v1732
    %v1734 = vpop.f32.mrb[0].mxu0
    %v1735 = vpop.f32.mrb[0].mxu0
    %v1736 = vadd.f32 %v1603, %v1735
    %v1737 = vpop.f32.mrb[0].mxu0
    %1738 = vmatprep.mubr.bf16.mxu0 0
    %1739 = vmatmul.mubr.bf16.gmra.mrb[0].mxu0 %v1663
    %v1740 = vpop.f32.mrb[0].mxu0
    %v1741 = vadd.f32 %v1608, %v1740
    %v1742 = vpop.f32.mrb[0].mxu0
    %v1743 = vpop.f32.mrb[0].mxu0
    %v1744 = vadd.f32 %v1611, %v1743
    %v1745 = vpop.f32.mrb[0].mxu0
    %1746 = vmatprep.mubr.bf16.mxu0 0
    %1747 = vmatmul.mubr.bf16.gmra.mrb[0].mxu0 %v1666
    %v1748 = vpop.f32.mrb[0].mxu0
    %v1749 = vadd.f32 %v1616, %v1748
    %v1750 = vpop.f32.mrb[0].mxu0
    %v1751 = vpop.f32.mrb[0].mxu0
    %v1752 = vadd.f32 %v1619, %v1751
    %v1753 = vpop.f32.mrb[0].mxu0
    %1754 = vmatprep.mubr.bf16.mxu0 0
    %1755 = vmatmul.mubr.bf16.gmra.mrb[0].mxu0 %v1669
    %v1756 = vpop.f32.mrb[0].mxu0
    %v1757 = vadd.f32 %v1624, %v1756
    %v1758 = vpop.f32.mrb[0].mxu0
    %v1759 = vpop.f32.mrb[0].mxu0
    %v1760 = vadd.f32 %v1627, %v1759
    %v1761 = vpop.f32.mrb[0].mxu0
    %1762 = vmatprep.mubr.bf16.mxu0 0
    %1763 = vmatmul.mubr.bf16.gmra.mrb[0].mxu0 %v1672
    %v1764 = vpop.f32.mrb[0].mxu0
    %v1765 = vadd.f32 %v1632, %v1764
    %v1766 = vpop.f32.mrb[0].mxu0
    %v1767 = vpop.f32.mrb[0].mxu0
    %v1768 = vadd.f32 %v1635, %v1767
    %v1769 = vpop.f32.mrb[0].mxu0
    %1770 = vdwg.mxu0
    %v1771 = vld [vmem:[#allocation3 + $0x2] sm:$0xff]
    %v1772 = vld [vmem:[#allocation3 + $0x12] sm:$0xff]
    %v1773 = vld [vmem:[#allocation3 + $0x22] sm:$0xff]
    %v1774 = vld [vmem:[#allocation3 + $0x32] sm:$0xff]
    %v1775 = vld [vmem:[#allocation3 + $0x42] sm:$0xff]
    %v1776 = vld [vmem:[#allocation3 + $0x52] sm:$0xff]
    %v1777 = vld [vmem:[#allocation3 + $0x62] sm:$0xff]
    %v1778 = vld [vmem:[#allocation3 + $0x72] sm:$0xff]
    %v1779 = vld [vmem:[#allocation3 + $0xa2] sm:$0xff]
    %v1780 = vld [vmem:[#allocation3 + $0xb2] sm:$0xff]
    %v1781 = vld [vmem:[#allocation3 + $0xc2] sm:$0xff]
    %v1782 = vld [vmem:[#allocation3 + $0xd2] sm:$0xff]
    %v1783 = vld [vmem:[#allocation3 + $0xe2] sm:$0xff]
    %v1784 = vld [vmem:[#allocation3 + $0xf2] sm:$0xff]
    %v1785 = vld [vmem:[#allocation3 + $0x102] sm:$0xff]
    %v1786 = vld [vmem:[#allocation3 + $0x112] sm:$0xff]
    %v1787 = vpack.c.bf16 %v1772, %v1771
    %v1788 = vpack.c.bf16 %v1774, %v1773
    %v1789 = vpack.c.bf16 %v1776, %v1775
    %v1790 = vpack.c.bf16 %v1778, %v1777
    %v1791 = vpack.c.bf16 %v1780, %v1779
    %v1792 = vpack.c.bf16 %v1782, %v1781
    %v1793 = vpack.c.bf16 %v1784, %v1783
    %v1794 = vpack.c.bf16 %v1786, %v1785
    %v1795 = vld [vmem:[%s4 + $0x20] sm:$0xf]
    %v1796 = vld [vmem:[%s4 + $0x24] sm:$0xf]
    %v1797 = vld [vmem:[%s4 + $0x28] sm:$0xf]
    %v1798 = vld [vmem:[%s4 + $0x2c] sm:$0xf]
    %v1803 = vunpack.c.l.b16 %v1795
    %v1804 = vunpack.c.l.b16 %v1796
    %v1805 = vunpack.c.l.b16 %v1797
    %v1806 = vunpack.c.l.b16 %v1798
    %v1807 = vpack.c.b16 %v1804, %v1803
    %v1808 = vpack.c.b16 %v1806, %v1805
    %v1812 = vsel %vm685, %v1787, 0
    %v1815 = vsel %vm685, %v1788, 0
    %v1818 = vsel %vm685, %v1789, 0
    %v1821 = vsel %vm685, %v1790, 0
    %v1824 = vsel %vm685, %v1791, 0
    %v1827 = vsel %vm685, %v1792, 0
    %v1830 = vsel %vm685, %v1793, 0
    %v1833 = vsel %vm685, %v1794, 0
    %1835 = vmatprep.subr.bf16.mxu0 0
    %1836 = vmatpush1.bf16.msra.mxu0 %v1807
    %1837 = vmatprep.subr.bf16.mxu0 0
    %1838 = vmatpush1.bf16.msra.mxu0 %v1808
    %1839 = vmatprep.subr.bf16.mxu0 0
    %1840 = vmatpush1.bf16.msra.mxu0 0
    %1841 = vmatprep.subr.bf16.mxu0 0
    %1842 = vmatpush1.bf16.msra.mxu0 0
    %1843 = vmatprep.subr.bf16.mxu0 0
    %1844 = vmatpush1.bf16.msra.mxu0 0
    %1845 = vmatprep.subr.bf16.mxu0 0
    %1846 = vmatpush1.bf16.msra.mxu0 0
    %1847 = vmatprep.subr.bf16.mxu0 0
    %1848 = vmatpush1.bf16.msra.mxu0 0
    %1849 = vmatprep.subr.bf16.mxu0 0
    %1850 = vmatpush1.bf16.msra.mxu0 0
    %1851 = vmatprep.subr.bf16.mxu0 0
    %1852 = vmatpush1.bf16.msra.mxu0 0
    %1853 = vmatprep.subr.bf16.mxu0 0
    %1854 = vmatpush1.bf16.msra.mxu0 0
    %1855 = vmatprep.subr.bf16.mxu0 0
    %1856 = vmatpush1.bf16.msra.mxu0 0
    %1857 = vmatprep.subr.bf16.mxu0 0
    %1858 = vmatpush1.bf16.msra.mxu0 0
    %1859 = vmatprep.subr.bf16.mxu0 0
    %1860 = vmatpush1.bf16.msra.mxu0 0
    %1861 = vmatprep.subr.bf16.mxu0 0
    %1862 = vmatpush1.bf16.msra.mxu0 0
    %1863 = vmatprep.subr.bf16.mxu0 0
    %1864 = vmatpush1.bf16.msra.mxu0 0
    %1865 = vmatprep.subr.bf16.mxu0 0
    %1866 = vmatpush1.bf16.msra.mxu0 0
    %1867 = vmatprep.mubr.bf16.mxu0 0
    %1868 = vmatmul.mubr.bf16.gmra.mrb[0].mxu0 %v1812
    %v1869 = vpop.f32.mrb[0].mxu0
    %v1870 = vadd.f32 0.0, %v1869
    %v1871 = vpop.f32.mrb[0].mxu0
    %v1872 = vpop.f32.mrb[0].mxu0
    %v1873 = vadd.f32 0.0, %v1872
    %v1874 = vpop.f32.mrb[0].mxu0
    %1875 = vmatprep.mubr.bf16.mxu0 0
    %1876 = vmatmul.mubr.bf16.gmra.mrb[0].mxu0 %v1815
    %v1877 = vpop.f32.mrb[0].mxu0
    %v1878 = vadd.f32 0.0, %v1877
    %v1879 = vpop.f32.mrb[0].mxu0
    %v1880 = vpop.f32.mrb[0].mxu0
    %v1881 = vadd.f32 0.0, %v1880
    %v1882 = vpop.f32.mrb[0].mxu0
    %1883 = vmatprep.mubr.bf16.mxu0 0
    %1884 = vmatmul.mubr.bf16.gmra.mrb[0].mxu0 %v1818
    %v1885 = vpop.f32.mrb[0].mxu0
    %v1886 = vadd.f32 0.0, %v1885
    %v1887 = vpop.f32.mrb[0].mxu0
    %v1888 = vpop.f32.mrb[0].mxu0
    %v1889 = vadd.f32 0.0, %v1888
    %v1890 = vpop.f32.mrb[0].mxu0
    %1891 = vmatprep.mubr.bf16.mxu0 0
    %1892 = vmatmul.mubr.bf16.gmra.mrb[0].mxu0 %v1821
    %v1893 = vpop.f32.mrb[0].mxu0
    %v1894 = vadd.f32 0.0, %v1893
    %v1895 = vpop.f32.mrb[0].mxu0
    %v1896 = vpop.f32.mrb[0].mxu0
    %v1897 = vadd.f32 0.0, %v1896
    %v1898 = vpop.f32.mrb[0].mxu0
    %1899 = vmatprep.mubr.bf16.mxu0 0
    %1900 = vmatmul.mubr.bf16.gmra.mrb[0].mxu0 %v1824
    %v1901 = vpop.f32.mrb[0].mxu0
    %v1902 = vadd.f32 0.0, %v1901
    %v1903 = vpop.f32.mrb[0].mxu0
    %v1904 = vpop.f32.mrb[0].mxu0
    %v1905 = vadd.f32 0.0, %v1904
    %v1906 = vpop.f32.mrb[0].mxu0
    %1907 = vmatprep.mubr.bf16.mxu0 0
    %1908 = vmatmul.mubr.bf16.gmra.mrb[0].mxu0 %v1827
    %v1909 = vpop.f32.mrb[0].mxu0
    %v1910 = vadd.f32 0.0, %v1909
    %v1911 = vpop.f32.mrb[0].mxu0
    %v1912 = vpop.f32.mrb[0].mxu0
    %v1913 = vadd.f32 0.0, %v1912
    %v1914 = vpop.f32.mrb[0].mxu0
    %1915 = vmatprep.mubr.bf16.mxu0 0
    %1916 = vmatmul.mubr.bf16.gmra.mrb[0].mxu0 %v1830
    %v1917 = vpop.f32.mrb[0].mxu0
    %v1918 = vadd.f32 0.0, %v1917
    %v1919 = vpop.f32.mrb[0].mxu0
    %v1920 = vpop.f32.mrb[0].mxu0
    %v1921 = vadd.f32 0.0, %v1920
    %v1922 = vpop.f32.mrb[0].mxu0
    %1923 = vmatprep.mubr.bf16.mxu0 0
    %1924 = vmatmul.mubr.bf16.gmra.mrb[0].mxu0 %v1833
    %v1925 = vpop.f32.mrb[0].mxu0
    %v1926 = vadd.f32 0.0, %v1925
    %v1927 = vpop.f32.mrb[0].mxu0
    %v1928 = vpop.f32.mrb[0].mxu0
    %v1929 = vadd.f32 0.0, %v1928
    %v1930 = vpop.f32.mrb[0].mxu0
    %1931 = vdwg.mxu0
    %v1932 = vadd.f32 %v1709, %v1870
    %v1933 = vadd.f32 %v1712, %v1873
    %v1934 = vadd.f32 %v1717, %v1878
    %v1935 = vadd.f32 %v1720, %v1881
    %v1936 = vadd.f32 %v1725, %v1886
    %v1937 = vadd.f32 %v1728, %v1889
    %v1938 = vadd.f32 %v1733, %v1894
    %v1939 = vadd.f32 %v1736, %v1897
    %v1940 = vadd.f32 %v1741, %v1902
    %v1941 = vadd.f32 %v1744, %v1905
    %v1942 = vadd.f32 %v1749, %v1910
    %v1943 = vadd.f32 %v1752, %v1913
    %v1944 = vadd.f32 %v1757, %v1918
    %v1945 = vadd.f32 %v1760, %v1921
    %v1946 = vadd.f32 %v1765, %v1926
    %v1947 = vadd.f32 %v1768, %v1929
    %v1948 = vld [vmem:[%s1399] sm:$0xff]
    %v1949 = vld [vmem:[%s1399 + $0x10] sm:$0xff]
    %v1950 = vld [vmem:[%s1399 + $0x20] sm:$0xff]
    %v1951 = vld [vmem:[%s1399 + $0x30] sm:$0xff]
    %v1952 = vld [vmem:[%s1399 + $0x40] sm:$0xff]
    %v1953 = vld [vmem:[%s1399 + $0x50] sm:$0xff]
    %v1954 = vld [vmem:[%s1399 + $0x60] sm:$0xff]
    %v1955 = vld [vmem:[%s1399 + $0x70] sm:$0xff]
    %v1956 = vld [vmem:[%s1399 + $0xa0] sm:$0xff]
    %v1957 = vld [vmem:[%s1399 + $0xb0] sm:$0xff]
    %v1958 = vld [vmem:[%s1399 + $0xc0] sm:$0xff]
    %v1959 = vld [vmem:[%s1399 + $0xd0] sm:$0xff]
    %v1960 = vld [vmem:[%s1399 + $0xe0] sm:$0xff]
    %v1961 = vld [vmem:[%s1399 + $0xf0] sm:$0xff]
    %v1962 = vld [vmem:[%s1399 + $0x100] sm:$0xff]
    %v1963 = vld [vmem:[%s1399 + $0x110] sm:$0xff]
    %v1964 = vpack.c.bf16 %v1949, %v1948
    %v1965 = vpack.c.bf16 %v1951, %v1950
    %v1966 = vpack.c.bf16 %v1953, %v1952
    %v1967 = vpack.c.bf16 %v1955, %v1954
    %v1968 = vpack.c.bf16 %v1957, %v1956
    %v1969 = vpack.c.bf16 %v1959, %v1958
    %v1970 = vpack.c.bf16 %v1961, %v1960
    %v1971 = vpack.c.bf16 %v1963, %v1962
    %v1972 = vld [vmem:[%s4 + $0x30] sm:$0xf]
    %v1973 = vld [vmem:[%s4 + $0x34] sm:$0xf]
    %v1974 = vld [vmem:[%s4 + $0x38] sm:$0xf]
    %v1975 = vld [vmem:[%s4 + $0x3c] sm:$0xf]
    %v1980 = vunpack.c.l.b16 %v1972
    %v1981 = vunpack.c.l.b16 %v1973
    %v1982 = vunpack.c.l.b16 %v1974
    %v1983 = vunpack.c.l.b16 %v1975
    %v1984 = vpack.c.b16 %v1981, %v1980
    %v1985 = vpack.c.b16 %v1983, %v1982
    %v1989 = vsel %vm685, %v1964, 0
    %v1992 = vsel %vm685, %v1965, 0
    %v1995 = vsel %vm685, %v1966, 0
    %v1998 = vsel %vm685, %v1967, 0
    %v2001 = vsel %vm685, %v1968, 0
    %v2004 = vsel %vm685, %v1969, 0
    %v2007 = vsel %vm685, %v1970, 0
    %v2010 = vsel %vm685, %v1971, 0
    %2012 = vmatprep.subr.bf16.mxu0 0
    %2013 = vmatpush1.bf16.msra.mxu0 %v1984
    %2014 = vmatprep.subr.bf16.mxu0 0
    %2015 = vmatpush1.bf16.msra.mxu0 %v1985
    %2016 = vmatprep.subr.bf16.mxu0 0
    %2017 = vmatpush1.bf16.msra.mxu0 0
    %2018 = vmatprep.subr.bf16.mxu0 0
    %2019 = vmatpush1.bf16.msra.mxu0 0
    %2020 = vmatprep.subr.bf16.mxu0 0
    %2021 = vmatpush1.bf16.msra.mxu0 0
    %2022 = vmatprep.subr.bf16.mxu0 0
    %2023 = vmatpush1.bf16.msra.mxu0 0
    %2024 = vmatprep.subr.bf16.mxu0 0
    %2025 = vmatpush1.bf16.msra.mxu0 0
    %2026 = vmatprep.subr.bf16.mxu0 0
    %2027 = vmatpush1.bf16.msra.mxu0 0
    %2028 = vmatprep.subr.bf16.mxu0 0
    %2029 = vmatpush1.bf16.msra.mxu0 0
    %2030 = vmatprep.subr.bf16.mxu0 0
    %2031 = vmatpush1.bf16.msra.mxu0 0
    %2032 = vmatprep.subr.bf16.mxu0 0
    %2033 = vmatpush1.bf16.msra.mxu0 0
    %2034 = vmatprep.subr.bf16.mxu0 0
    %2035 = vmatpush1.bf16.msra.mxu0 0
    %2036 = vmatprep.subr.bf16.mxu0 0
    %2037 = vmatpush1.bf16.msra.mxu0 0
    %2038 = vmatprep.subr.bf16.mxu0 0
    %2039 = vmatpush1.bf16.msra.mxu0 0
    %2040 = vmatprep.subr.bf16.mxu0 0
    %2041 = vmatpush1.bf16.msra.mxu0 0
    %2042 = vmatprep.subr.bf16.mxu0 0
    %2043 = vmatpush1.bf16.msra.mxu0 0
    %2044 = vmatprep.mubr.bf16.mxu0 0
    %2045 = vmatmul.mubr.bf16.gmra.mrb[0].mxu0 %v1989
    %v2046 = vpop.f32.mrb[0].mxu0
    %v2047 = vadd.f32 0.0, %v2046
    %v2048 = vpop.f32.mrb[0].mxu0
    %v2049 = vpop.f32.mrb[0].mxu0
    %v2050 = vadd.f32 0.0, %v2049
    %v2051 = vpop.f32.mrb[0].mxu0
    %2052 = vmatprep.mubr.bf16.mxu0 0
    %2053 = vmatmul.mubr.bf16.gmra.mrb[0].mxu0 %v1992
    %v2054 = vpop.f32.mrb[0].mxu0
    %v2055 = vadd.f32 0.0, %v2054
    %v2056 = vpop.f32.mrb[0].mxu0
    %v2057 = vpop.f32.mrb[0].mxu0
    %v2058 = vadd.f32 0.0, %v2057
    %v2059 = vpop.f32.mrb[0].mxu0
    %2060 = vmatprep.mubr.bf16.mxu0 0
    %2061 = vmatmul.mubr.bf16.gmra.mrb[0].mxu0 %v1995
    %v2062 = vpop.f32.mrb[0].mxu0
    %v2063 = vadd.f32 0.0, %v2062
    %v2064 = vpop.f32.mrb[0].mxu0
    %v2065 = vpop.f32.mrb[0].mxu0
    %v2066 = vadd.f32 0.0, %v2065
    %v2067 = vpop.f32.mrb[0].mxu0
    %2068 = vmatprep.mubr.bf16.mxu0 0
    %2069 = vmatmul.mubr.bf16.gmra.mrb[0].mxu0 %v1998
    %v2070 = vpop.f32.mrb[0].mxu0
    %v2071 = vadd.f32 0.0, %v2070
    %v2072 = vpop.f32.mrb[0].mxu0
    %v2073 = vpop.f32.mrb[0].mxu0
    %v2074 = vadd.f32 0.0, %v2073
    %v2075 = vpop.f32.mrb[0].mxu0
    %2076 = vmatprep.mubr.bf16.mxu0 0
    %2077 = vmatmul.mubr.bf16.gmra.mrb[0].mxu0 %v2001
    %v2078 = vpop.f32.mrb[0].mxu0
    %v2079 = vadd.f32 0.0, %v2078
    %v2080 = vpop.f32.mrb[0].mxu0
    %v2081 = vpop.f32.mrb[0].mxu0
    %v2082 = vadd.f32 0.0, %v2081
    %v2083 = vpop.f32.mrb[0].mxu0
    %2084 = vmatprep.mubr.bf16.mxu0 0
    %2085 = vmatmul.mubr.bf16.gmra.mrb[0].mxu0 %v2004
    %v2086 = vpop.f32.mrb[0].mxu0
    %v2087 = vadd.f32 0.0, %v2086
    %v2088 = vpop.f32.mrb[0].mxu0
    %v2089 = vpop.f32.mrb[0].mxu0
    %v2090 = vadd.f32 0.0, %v2089
    %v2091 = vpop.f32.mrb[0].mxu0
    %2092 = vmatprep.mubr.bf16.mxu0 0
    %2093 = vmatmul.mubr.bf16.gmra.mrb[0].mxu0 %v2007
    %v2094 = vpop.f32.mrb[0].mxu0
    %v2095 = vadd.f32 0.0, %v2094
    %v2096 = vpop.f32.mrb[0].mxu0
    %v2097 = vpop.f32.mrb[0].mxu0
    %v2098 = vadd.f32 0.0, %v2097
    %v2099 = vpop.f32.mrb[0].mxu0
    %2100 = vmatprep.mubr.bf16.mxu0 0
    %2101 = vmatmul.mubr.bf16.gmra.mrb[0].mxu0 %v2010
    %v2102 = vpop.f32.mrb[0].mxu0
    %v2103 = vadd.f32 0.0, %v2102
    %v2104 = vpop.f32.mrb[0].mxu0
    %v2105 = vpop.f32.mrb[0].mxu0
    %v2106 = vadd.f32 0.0, %v2105
    %v2107 = vpop.f32.mrb[0].mxu0
    %2108 = vdwg.mxu0
    %v2109 = vadd.f32 %v1932, %v2047
    %v2110 = vadd.f32 %v1933, %v2050
    %v2111 = vadd.f32 %v1934, %v2055
    %v2112 = vadd.f32 %v1935, %v2058
    %v2113 = vadd.f32 %v1936, %v2063
    %v2114 = vadd.f32 %v1937, %v2066
    %v2115 = vadd.f32 %v1938, %v2071
    %v2116 = vadd.f32 %v1939, %v2074
    %v2117 = vadd.f32 %v1940, %v2079
    %v2118 = vadd.f32 %v1941, %v2082
    %v2119 = vadd.f32 %v1942, %v2087
    %v2120 = vadd.f32 %v1943, %v2090
    %v2121 = vadd.f32 %v1944, %v2095
    %v2122 = vadd.f32 %v1945, %v2098
    %v2123 = vadd.f32 %v1946, %v2103
    %v2124 = vadd.f32 %v1947, %v2106
    %v2125 = vld [vmem:[%s1399 + $0x1] sm:$0xff]
    %v2126 = vld [vmem:[%s1399 + $0x11] sm:$0xff]
    %v2127 = vld [vmem:[%s1399 + $0x21] sm:$0xff]
    %v2128 = vld [vmem:[%s1399 + $0x31] sm:$0xff]
    %v2129 = vld [vmem:[%s1399 + $0x41] sm:$0xff]
    %v2130 = vld [vmem:[%s1399 + $0x51] sm:$0xff]
    %v2131 = vld [vmem:[%s1399 + $0x61] sm:$0xff]
    %v2132 = vld [vmem:[%s1399 + $0x71] sm:$0xff]
    %v2133 = vld [vmem:[%s1399 + $0xa1] sm:$0xff]
    %v2134 = vld [vmem:[%s1399 + $0xb1] sm:$0xff]
    %v2135 = vld [vmem:[%s1399 + $0xc1] sm:$0xff]
    %v2136 = vld [vmem:[%s1399 + $0xd1] sm:$0xff]
    %v2137 = vld [vmem:[%s1399 + $0xe1] sm:$0xff]
    %v2138 = vld [vmem:[%s1399 + $0xf1] sm:$0xff]
    %v2139 = vld [vmem:[%s1399 + $0x101] sm:$0xff]
    %v2140 = vld [vmem:[%s1399 + $0x111] sm:$0xff]
    %v2141 = vpack.c.bf16 %v2126, %v2125
    %v2142 = vpack.c.bf16 %v2128, %v2127
    %v2143 = vpack.c.bf16 %v2130, %v2129
    %v2144 = vpack.c.bf16 %v2132, %v2131
    %v2145 = vpack.c.bf16 %v2134, %v2133
    %v2146 = vpack.c.bf16 %v2136, %v2135
    %v2147 = vpack.c.bf16 %v2138, %v2137
    %v2148 = vpack.c.bf16 %v2140, %v2139
    %v2149 = vld [vmem:[%s4 + $0x40] sm:$0xf]
    %v2150 = vld [vmem:[%s4 + $0x44] sm:$0xf]
    %v2151 = vld [vmem:[%s4 + $0x48] sm:$0xf]
    %v2152 = vld [vmem:[%s4 + $0x4c] sm:$0xf]
    %v2157 = vunpack.c.l.b16 %v2149
    %v2158 = vunpack.c.l.b16 %v2150
    %v2159 = vunpack.c.l.b16 %v2151
    %v2160 = vunpack.c.l.b16 %v2152
    %v2161 = vpack.c.b16 %v2158, %v2157
    %v2162 = vpack.c.b16 %v2160, %v2159
    %v2166 = vsel %vm685, %v2141, 0
    %v2169 = vsel %vm685, %v2142, 0
    %v2172 = vsel %vm685, %v2143, 0
    %v2175 = vsel %vm685, %v2144, 0
    %v2178 = vsel %vm685, %v2145, 0
    %v2181 = vsel %vm685, %v2146, 0
    %v2184 = vsel %vm685, %v2147, 0
    %v2187 = vsel %vm685, %v2148, 0
    %2189 = vmatprep.subr.bf16.mxu0 0
    %2190 = vmatpush1.bf16.msra.mxu0 %v2161
    %2191 = vmatprep.subr.bf16.mxu0 0
    %2192 = vmatpush1.bf16.msra.mxu0 %v2162
    %2193 = vmatprep.subr.bf16.mxu0 0
    %2194 = vmatpush1.bf16.msra.mxu0 0
    %2195 = vmatprep.subr.bf16.mxu0 0
    %2196 = vmatpush1.bf16.msra.mxu0 0
    %2197 = vmatprep.subr.bf16.mxu0 0
    %2198 = vmatpush1.bf16.msra.mxu0 0
    %2199 = vmatprep.subr.bf16.mxu0 0
    %2200 = vmatpush1.bf16.msra.mxu0 0
    %2201 = vmatprep.subr.bf16.mxu0 0
    %2202 = vmatpush1.bf16.msra.mxu0 0
    %2203 = vmatprep.subr.bf16.mxu0 0
    %2204 = vmatpush1.bf16.msra.mxu0 0
    %2205 = vmatprep.subr.bf16.mxu0 0
    %2206 = vmatpush1.bf16.msra.mxu0 0
    %2207 = vmatprep.subr.bf16.mxu0 0
    %2208 = vmatpush1.bf16.msra.mxu0 0
    %2209 = vmatprep.subr.bf16.mxu0 0
    %2210 = vmatpush1.bf16.msra.mxu0 0
    %2211 = vmatprep.subr.bf16.mxu0 0
    %2212 = vmatpush1.bf16.msra.mxu0 0
    %2213 = vmatprep.subr.bf16.mxu0 0
    %2214 = vmatpush1.bf16.msra.mxu0 0
    %2215 = vmatprep.subr.bf16.mxu0 0
    %2216 = vmatpush1.bf16.msra.mxu0 0
    %2217 = vmatprep.subr.bf16.mxu0 0
    %2218 = vmatpush1.bf16.msra.mxu0 0
    %2219 = vmatprep.subr.bf16.mxu0 0
    %2220 = vmatpush1.bf16.msra.mxu0 0
    %2221 = vmatprep.mubr.bf16.mxu0 0
    %2222 = vmatmul.mubr.bf16.gmra.mrb[0].mxu0 %v2166
    %v2223 = vpop.f32.mrb[0].mxu0
    %v2224 = vadd.f32 0.0, %v2223
    %v2225 = vpop.f32.mrb[0].mxu0
    %v2226 = vpop.f32.mrb[0].mxu0
    %v2227 = vadd.f32 0.0, %v2226
    %v2228 = vpop.f32.mrb[0].mxu0
    %2229 = vmatprep.mubr.bf16.mxu0 0
    %2230 = vmatmul.mubr.bf16.gmra.mrb[0].mxu0 %v2169
    %v2231 = vpop.f32.mrb[0].mxu0
    %v2232 = vadd.f32 0.0, %v2231
    %v2233 = vpop.f32.mrb[0].mxu0
    %v2234 = vpop.f32.mrb[0].mxu0
    %v2235 = vadd.f32 0.0, %v2234
    %v2236 = vpop.f32.mrb[0].mxu0
    %2237 = vmatprep.mubr.bf16.mxu0 0
    %2238 = vmatmul.mubr.bf16.gmra.mrb[0].mxu0 %v2172
    %v2239 = vpop.f32.mrb[0].mxu0
    %v2240 = vadd.f32 0.0, %v2239
    %v2241 = vpop.f32.mrb[0].mxu0
    %v2242 = vpop.f32.mrb[0].mxu0
    %v2243 = vadd.f32 0.0, %v2242
    %v2244 = vpop.f32.mrb[0].mxu0
    %2245 = vmatprep.mubr.bf16.mxu0 0
    %2246 = vmatmul.mubr.bf16.gmra.mrb[0].mxu0 %v2175
    %v2247 = vpop.f32.mrb[0].mxu0
    %v2248 = vadd.f32 0.0, %v2247
    %v2249 = vpop.f32.mrb[0].mxu0
    %v2250 = vpop.f32.mrb[0].mxu0
    %v2251 = vadd.f32 0.0, %v2250
    %v2252 = vpop.f32.mrb[0].mxu0
    %2253 = vmatprep.mubr.bf16.mxu0 0
    %2254 = vmatmul.mubr.bf16.gmra.mrb[0].mxu0 %v2178
    %v2255 = vpop.f32.mrb[0].mxu0
    %v2256 = vadd.f32 0.0, %v2255
    %v2257 = vpop.f32.mrb[0].mxu0
    %v2258 = vpop.f32.mrb[0].mxu0
    %v2259 = vadd.f32 0.0, %v2258
    %v2260 = vpop.f32.mrb[0].mxu0
    %2261 = vmatprep.mubr.bf16.mxu0 0
    %2262 = vmatmul.mubr.bf16.gmra.mrb[0].mxu0 %v2181
    %v2263 = vpop.f32.mrb[0].mxu0
    %v2264 = vadd.f32 0.0, %v2263
    %v2265 = vpop.f32.mrb[0].mxu0
    %v2266 = vpop.f32.mrb[0].mxu0
    %v2267 = vadd.f32 0.0, %v2266
    %v2268 = vpop.f32.mrb[0].mxu0
    %2269 = vmatprep.mubr.bf16.mxu0 0
    %2270 = vmatmul.mubr.bf16.gmra.mrb[0].mxu0 %v2184
    %v2271 = vpop.f32.mrb[0].mxu0
    %v2272 = vadd.f32 0.0, %v2271
    %v2273 = vpop.f32.mrb[0].mxu0
    %v2274 = vpop.f32.mrb[0].mxu0
    %v2275 = vadd.f32 0.0, %v2274
    %v2276 = vpop.f32.mrb[0].mxu0
    %2277 = vmatprep.mubr.bf16.mxu0 0
    %2278 = vmatmul.mubr.bf16.gmra.mrb[0].mxu0 %v2187
    %v2279 = vpop.f32.mrb[0].mxu0
    %v2280 = vadd.f32 0.0, %v2279
    %v2281 = vpop.f32.mrb[0].mxu0
    %v2282 = vpop.f32.mrb[0].mxu0
    %v2283 = vadd.f32 0.0, %v2282
    %v2284 = vpop.f32.mrb[0].mxu0
    %2285 = vdwg.mxu0
    %v2286 = vadd.f32 %v2109, %v2224
    %v2287 = vadd.f32 %v2110, %v2227
    %v2288 = vadd.f32 %v2111, %v2232
    %v2289 = vadd.f32 %v2112, %v2235
    %v2290 = vadd.f32 %v2113, %v2240
    %v2291 = vadd.f32 %v2114, %v2243
    %v2292 = vadd.f32 %v2115, %v2248
    %v2293 = vadd.f32 %v2116, %v2251
    %v2294 = vadd.f32 %v2117, %v2256
    %v2295 = vadd.f32 %v2118, %v2259
    %v2296 = vadd.f32 %v2119, %v2264
    %v2297 = vadd.f32 %v2120, %v2267
    %v2298 = vadd.f32 %v2121, %v2272
    %v2299 = vadd.f32 %v2122, %v2275
    %v2300 = vadd.f32 %v2123, %v2280
    %v2301 = vadd.f32 %v2124, %v2283
    %v2302 = vld [vmem:[%s1399 + $0x2] sm:$0xff]
    %v2303 = vld [vmem:[%s1399 + $0x12] sm:$0xff]
    %v2304 = vld [vmem:[%s1399 + $0x22] sm:$0xff]
    %v2305 = vld [vmem:[%s1399 + $0x32] sm:$0xff]
    %v2306 = vld [vmem:[%s1399 + $0x42] sm:$0xff]
    %v2307 = vld [vmem:[%s1399 + $0x52] sm:$0xff]
    %v2308 = vld [vmem:[%s1399 + $0x62] sm:$0xff]
    %v2309 = vld [vmem:[%s1399 + $0x72] sm:$0xff]
    %v2310 = vld [vmem:[%s1399 + $0xa2] sm:$0xff]
    %v2311 = vld [vmem:[%s1399 + $0xb2] sm:$0xff]
    %v2312 = vld [vmem:[%s1399 + $0xc2] sm:$0xff]
    %v2313 = vld [vmem:[%s1399 + $0xd2] sm:$0xff]
    %v2314 = vld [vmem:[%s1399 + $0xe2] sm:$0xff]
    %v2315 = vld [vmem:[%s1399 + $0xf2] sm:$0xff]
    %v2316 = vld [vmem:[%s1399 + $0x102] sm:$0xff]
    %v2317 = vld [vmem:[%s1399 + $0x112] sm:$0xff]
    %v2318 = vpack.c.bf16 %v2303, %v2302
    %v2319 = vpack.c.bf16 %v2305, %v2304
    %v2320 = vpack.c.bf16 %v2307, %v2306
    %v2321 = vpack.c.bf16 %v2309, %v2308
    %v2322 = vpack.c.bf16 %v2311, %v2310
    %v2323 = vpack.c.bf16 %v2313, %v2312
    %v2324 = vpack.c.bf16 %v2315, %v2314
    %v2325 = vpack.c.bf16 %v2317, %v2316
    %v2326 = vld [vmem:[%s4 + $0x50] sm:$0xf]
    %v2327 = vld [vmem:[%s4 + $0x54] sm:$0xf]
    %v2328 = vld [vmem:[%s4 + $0x58] sm:$0xf]
    %v2329 = vld [vmem:[%s4 + $0x5c] sm:$0xf]
    %v2334 = vunpack.c.l.b16 %v2326
    %v2335 = vunpack.c.l.b16 %v2327
    %v2336 = vunpack.c.l.b16 %v2328
    %v2337 = vunpack.c.l.b16 %v2329
    %v2338 = vpack.c.b16 %v2335, %v2334
    %v2339 = vpack.c.b16 %v2337, %v2336
    %v2343 = vsel %vm685, %v2318, 0
    %v2346 = vsel %vm685, %v2319, 0
    %v2349 = vsel %vm685, %v2320, 0
    %v2352 = vsel %vm685, %v2321, 0
    %v2355 = vsel %vm685, %v2322, 0
    %v2358 = vsel %vm685, %v2323, 0
    %v2361 = vsel %vm685, %v2324, 0
    %v2364 = vsel %vm685, %v2325, 0
    %2366 = vmatprep.subr.bf16.mxu0 0
    %2367 = vmatpush1.bf16.msra.mxu0 %v2338
    %2368 = vmatprep.subr.bf16.mxu0 0
    %2369 = vmatpush1.bf16.msra.mxu0 %v2339
    %2370 = vmatprep.subr.bf16.mxu0 0
    %2371 = vmatpush1.bf16.msra.mxu0 0
    %2372 = vmatprep.subr.bf16.mxu0 0
    %2373 = vmatpush1.bf16.msra.mxu0 0
    %2374 = vmatprep.subr.bf16.mxu0 0
    %2375 = vmatpush1.bf16.msra.mxu0 0
    %2376 = vmatprep.subr.bf16.mxu0 0
    %2377 = vmatpush1.bf16.msra.mxu0 0
    %2378 = vmatprep.subr.bf16.mxu0 0
    %2379 = vmatpush1.bf16.msra.mxu0 0
    %2380 = vmatprep.subr.bf16.mxu0 0
    %2381 = vmatpush1.bf16.msra.mxu0 0
    %2382 = vmatprep.subr.bf16.mxu0 0
    %2383 = vmatpush1.bf16.msra.mxu0 0
    %2384 = vmatprep.subr.bf16.mxu0 0
    %2385 = vmatpush1.bf16.msra.mxu0 0
    %2386 = vmatprep.subr.bf16.mxu0 0
    %2387 = vmatpush1.bf16.msra.mxu0 0
    %2388 = vmatprep.subr.bf16.mxu0 0
    %2389 = vmatpush1.bf16.msra.mxu0 0
    %2390 = vmatprep.subr.bf16.mxu0 0
    %2391 = vmatpush1.bf16.msra.mxu0 0
    %2392 = vmatprep.subr.bf16.mxu0 0
    %2393 = vmatpush1.bf16.msra.mxu0 0
    %2394 = vmatprep.subr.bf16.mxu0 0
    %2395 = vmatpush1.bf16.msra.mxu0 0
    %2396 = vmatprep.subr.bf16.mxu0 0
    %2397 = vmatpush1.bf16.msra.mxu0 0
    %2398 = vmatprep.mubr.bf16.mxu0 0
    %2399 = vmatmul.mubr.bf16.gmra.mrb[0].mxu0 %v2343
    %v2400 = vpop.f32.mrb[0].mxu0
    %v2401 = vadd.f32 0.0, %v2400
    %v2402 = vpop.f32.mrb[0].mxu0
    %v2403 = vpop.f32.mrb[0].mxu0
    %v2404 = vadd.f32 0.0, %v2403
    %v2405 = vpop.f32.mrb[0].mxu0
    %2406 = vmatprep.mubr.bf16.mxu0 0
    %2407 = vmatmul.mubr.bf16.gmra.mrb[0].mxu0 %v2346
    %v2408 = vpop.f32.mrb[0].mxu0
    %v2409 = vadd.f32 0.0, %v2408
    %v2410 = vpop.f32.mrb[0].mxu0
    %v2411 = vpop.f32.mrb[0].mxu0
    %v2412 = vadd.f32 0.0, %v2411
    %v2413 = vpop.f32.mrb[0].mxu0
    %2414 = vmatprep.mubr.bf16.mxu0 0
    %2415 = vmatmul.mubr.bf16.gmra.mrb[0].mxu0 %v2349
    %v2416 = vpop.f32.mrb[0].mxu0
    %v2417 = vadd.f32 0.0, %v2416
    %v2418 = vpop.f32.mrb[0].mxu0
    %v2419 = vpop.f32.mrb[0].mxu0
    %v2420 = vadd.f32 0.0, %v2419
    %v2421 = vpop.f32.mrb[0].mxu0
    %2422 = vmatprep.mubr.bf16.mxu0 0
    %2423 = vmatmul.mubr.bf16.gmra.mrb[0].mxu0 %v2352
    %v2424 = vpop.f32.mrb[0].mxu0
    %v2425 = vadd.f32 0.0, %v2424
    %v2426 = vpop.f32.mrb[0].mxu0
    %v2427 = vpop.f32.mrb[0].mxu0
    %v2428 = vadd.f32 0.0, %v2427
    %v2429 = vpop.f32.mrb[0].mxu0
    %2430 = vmatprep.mubr.bf16.mxu0 0
    %2431 = vmatmul.mubr.bf16.gmra.mrb[0].mxu0 %v2355
    %v2432 = vpop.f32.mrb[0].mxu0
    %v2433 = vadd.f32 0.0, %v2432
    %v2434 = vpop.f32.mrb[0].mxu0
    %v2435 = vpop.f32.mrb[0].mxu0
    %v2436 = vadd.f32 0.0, %v2435
    %v2437 = vpop.f32.mrb[0].mxu0
    %2438 = vmatprep.mubr.bf16.mxu0 0
    %2439 = vmatmul.mubr.bf16.gmra.mrb[0].mxu0 %v2358
    %v2440 = vpop.f32.mrb[0].mxu0
    %v2441 = vadd.f32 0.0, %v2440
    %v2442 = vpop.f32.mrb[0].mxu0
    %v2443 = vpop.f32.mrb[0].mxu0
    %v2444 = vadd.f32 0.0, %v2443
    %v2445 = vpop.f32.mrb[0].mxu0
    %2446 = vmatprep.mubr.bf16.mxu0 0
    %2447 = vmatmul.mubr.bf16.gmra.mrb[0].mxu0 %v2361
    %v2448 = vpop.f32.mrb[0].mxu0
    %v2449 = vadd.f32 0.0, %v2448
    %v2450 = vpop.f32.mrb[0].mxu0
    %v2451 = vpop.f32.mrb[0].mxu0
    %v2452 = vadd.f32 0.0, %v2451
    %v2453 = vpop.f32.mrb[0].mxu0
    %2454 = vmatprep.mubr.bf16.mxu0 0
    %2455 = vmatmul.mubr.bf16.gmra.mrb[0].mxu0 %v2364
    %v2456 = vpop.f32.mrb[0].mxu0
    %v2457 = vadd.f32 0.0, %v2456
    %v2458 = vpop.f32.mrb[0].mxu0
    %v2459 = vpop.f32.mrb[0].mxu0
    %v2460 = vadd.f32 0.0, %v2459
    %v2461 = vpop.f32.mrb[0].mxu0
    %2462 = vdwg.mxu0
    %v2463 = vadd.f32 %v2286, %v2401
    %v2464 = vadd.f32 %v2287, %v2404
    %v2465 = vadd.f32 %v2288, %v2409
    %v2466 = vadd.f32 %v2289, %v2412
    %v2467 = vadd.f32 %v2290, %v2417
    %v2468 = vadd.f32 %v2291, %v2420
    %v2469 = vadd.f32 %v2292, %v2425
    %v2470 = vadd.f32 %v2293, %v2428
    %v2471 = vadd.f32 %v2294, %v2433
    %v2472 = vadd.f32 %v2295, %v2436
    %v2473 = vadd.f32 %v2296, %v2441
    %v2474 = vadd.f32 %v2297, %v2444
    %v2475 = vadd.f32 %v2298, %v2449
    %v2476 = vadd.f32 %v2299, %v2452
    %v2477 = vadd.f32 %v2300, %v2457
    %v2478 = vadd.f32 %v2301, %v2460
    %s2479 = scalar_lea.vmem [#allocation3], 32
    %v2480 = vld [vmem:[%s2479] sm:$0xff]
    %v2481 = vld [vmem:[%s2479 + $0x10] sm:$0xff]
    %v2482 = vld [vmem:[%s2479 + $0x20] sm:$0xff]
    %v2483 = vld [vmem:[%s2479 + $0x30] sm:$0xff]
    %v2484 = vld [vmem:[%s2479 + $0x40] sm:$0xff]
    %v2485 = vld [vmem:[%s2479 + $0x50] sm:$0xff]
    %v2486 = vld [vmem:[%s2479 + $0x60] sm:$0xff]
    %v2487 = vld [vmem:[%s2479 + $0x70] sm:$0xff]
    %v2488 = vld [vmem:[%s2479 + $0xa0] sm:$0xff]
    %v2489 = vld [vmem:[%s2479 + $0xb0] sm:$0xff]
    %v2490 = vld [vmem:[%s2479 + $0xc0] sm:$0xff]
    %v2491 = vld [vmem:[%s2479 + $0xd0] sm:$0xff]
    %v2492 = vld [vmem:[%s2479 + $0xe0] sm:$0xff]
    %v2493 = vld [vmem:[%s2479 + $0xf0] sm:$0xff]
    %v2494 = vld [vmem:[%s2479 + $0x100] sm:$0xff]
    %v2495 = vld [vmem:[%s2479 + $0x110] sm:$0xff]
    %v2496 = vpack.c.bf16 %v2481, %v2480
    %v2497 = vpack.c.bf16 %v2483, %v2482
    %v2498 = vpack.c.bf16 %v2485, %v2484
    %v2499 = vpack.c.bf16 %v2487, %v2486
    %v2500 = vpack.c.bf16 %v2489, %v2488
    %v2501 = vpack.c.bf16 %v2491, %v2490
    %v2502 = vpack.c.bf16 %v2493, %v2492
    %v2503 = vpack.c.bf16 %v2495, %v2494
    %v2504 = vld [vmem:[%s4 + $0x60] sm:$0xf]
    %v2505 = vld [vmem:[%s4 + $0x64] sm:$0xf]
    %v2506 = vld [vmem:[%s4 + $0x68] sm:$0xf]
    %v2507 = vld [vmem:[%s4 + $0x6c] sm:$0xf]
    %v2512 = vunpack.c.l.b16 %v2504
    %v2513 = vunpack.c.l.b16 %v2505
    %v2514 = vunpack.c.l.b16 %v2506
    %v2515 = vunpack.c.l.b16 %v2507
    %v2516 = vpack.c.b16 %v2513, %v2512
    %v2517 = vpack.c.b16 %v2515, %v2514
    %v2521 = vsel %vm685, %v2496, 0
    %v2524 = vsel %vm685, %v2497, 0
    %v2527 = vsel %vm685, %v2498, 0
    %v2530 = vsel %vm685, %v2499, 0
    %v2533 = vsel %vm685, %v2500, 0
    %v2536 = vsel %vm685, %v2501, 0
    %v2539 = vsel %vm685, %v2502, 0
    %v2542 = vsel %vm685, %v2503, 0
    %2544 = vmatprep.subr.bf16.mxu0 0
    %2545 = vmatpush1.bf16.msra.mxu0 %v2516
    %2546 = vmatprep.subr.bf16.mxu0 0
    %2547 = vmatpush1.bf16.msra.mxu0 %v2517
    %2548 = vmatprep.subr.bf16.mxu0 0
    %2549 = vmatpush1.bf16.msra.mxu0 0
    %2550 = vmatprep.subr.bf16.mxu0 0
    %2551 = vmatpush1.bf16.msra.mxu0 0
    %2552 = vmatprep.subr.bf16.mxu0 0
    %2553 = vmatpush1.bf16.msra.mxu0 0
    %2554 = vmatprep.subr.bf16.mxu0 0
    %2555 = vmatpush1.bf16.msra.mxu0 0
    %2556 = vmatprep.subr.bf16.mxu0 0
    %2557 = vmatpush1.bf16.msra.mxu0 0
    %2558 = vmatprep.subr.bf16.mxu0 0
    %2559 = vmatpush1.bf16.msra.mxu0 0
    %2560 = vmatprep.subr.bf16.mxu0 0
    %2561 = vmatpush1.bf16.msra.mxu0 0
    %2562 = vmatprep.subr.bf16.mxu0 0
    %2563 = vmatpush1.bf16.msra.mxu0 0
    %2564 = vmatprep.subr.bf16.mxu0 0
    %2565 = vmatpush1.bf16.msra.mxu0 0
    %2566 = vmatprep.subr.bf16.mxu0 0
    %2567 = vmatpush1.bf16.msra.mxu0 0
    %2568 = vmatprep.subr.bf16.mxu0 0
    %2569 = vmatpush1.bf16.msra.mxu0 0
    %2570 = vmatprep.subr.bf16.mxu0 0
    %2571 = vmatpush1.bf16.msra.mxu0 0
    %2572 = vmatprep.subr.bf16.mxu0 0
    %2573 = vmatpush1.bf16.msra.mxu0 0
    %2574 = vmatprep.subr.bf16.mxu0 0
    %2575 = vmatpush1.bf16.msra.mxu0 0
    %2576 = vmatprep.mubr.bf16.mxu0 0
    %2577 = vmatmul.mubr.bf16.gmra.mrb[0].mxu0 %v2521
    %v2578 = vpop.f32.mrb[0].mxu0
    %v2579 = vadd.f32 0.0, %v2578
    %v2580 = vpop.f32.mrb[0].mxu0
    %v2581 = vpop.f32.mrb[0].mxu0
    %v2582 = vadd.f32 0.0, %v2581
    %v2583 = vpop.f32.mrb[0].mxu0
    %2584 = vmatprep.mubr.bf16.mxu0 0
    %2585 = vmatmul.mubr.bf16.gmra.mrb[0].mxu0 %v2524
    %v2586 = vpop.f32.mrb[0].mxu0
    %v2587 = vadd.f32 0.0, %v2586
    %v2588 = vpop.f32.mrb[0].mxu0
    %v2589 = vpop.f32.mrb[0].mxu0
    %v2590 = vadd.f32 0.0, %v2589
    %v2591 = vpop.f32.mrb[0].mxu0
    %2592 = vmatprep.mubr.bf16.mxu0 0
    %2593 = vmatmul.mubr.bf16.gmra.mrb[0].mxu0 %v2527
    %v2594 = vpop.f32.mrb[0].mxu0
    %v2595 = vadd.f32 0.0, %v2594
    %v2596 = vpop.f32.mrb[0].mxu0
    %v2597 = vpop.f32.mrb[0].mxu0
    %v2598 = vadd.f32 0.0, %v2597
    %v2599 = vpop.f32.mrb[0].mxu0
    %2600 = vmatprep.mubr.bf16.mxu0 0
    %2601 = vmatmul.mubr.bf16.gmra.mrb[0].mxu0 %v2530
    %v2602 = vpop.f32.mrb[0].mxu0
    %v2603 = vadd.f32 0.0, %v2602
    %v2604 = vpop.f32.mrb[0].mxu0
    %v2605 = vpop.f32.mrb[0].mxu0
    %v2606 = vadd.f32 0.0, %v2605
    %v2607 = vpop.f32.mrb[0].mxu0
    %2608 = vmatprep.mubr.bf16.mxu0 0
    %2609 = vmatmul.mubr.bf16.gmra.mrb[0].mxu0 %v2533
    %v2610 = vpop.f32.mrb[0].mxu0
    %v2611 = vadd.f32 0.0, %v2610
    %v2612 = vpop.f32.mrb[0].mxu0
    %v2613 = vpop.f32.mrb[0].mxu0
    %v2614 = vadd.f32 0.0, %v2613
    %v2615 = vpop.f32.mrb[0].mxu0
    %2616 = vmatprep.mubr.bf16.mxu0 0
    %2617 = vmatmul.mubr.bf16.gmra.mrb[0].mxu0 %v2536
    %v2618 = vpop.f32.mrb[0].mxu0
    %v2619 = vadd.f32 0.0, %v2618
    %v2620 = vpop.f32.mrb[0].mxu0
    %v2621 = vpop.f32.mrb[0].mxu0
    %v2622 = vadd.f32 0.0, %v2621
    %v2623 = vpop.f32.mrb[0].mxu0
    %2624 = vmatprep.mubr.bf16.mxu0 0
    %2625 = vmatmul.mubr.bf16.gmra.mrb[0].mxu0 %v2539
    %v2626 = vpop.f32.mrb[0].mxu0
    %v2627 = vadd.f32 0.0, %v2626
    %v2628 = vpop.f32.mrb[0].mxu0
    %v2629 = vpop.f32.mrb[0].mxu0
    %v2630 = vadd.f32 0.0, %v2629
    %v2631 = vpop.f32.mrb[0].mxu0
    %2632 = vmatprep.mubr.bf16.mxu0 0
    %2633 = vmatmul.mubr.bf16.gmra.mrb[0].mxu0 %v2542
    %v2634 = vpop.f32.mrb[0].mxu0
    %v2635 = vadd.f32 0.0, %v2634
    %v2636 = vpop.f32.mrb[0].mxu0
    %v2637 = vpop.f32.mrb[0].mxu0
    %v2638 = vadd.f32 0.0, %v2637
    %v2639 = vpop.f32.mrb[0].mxu0
    %2640 = vdwg.mxu0
    %v2641 = vadd.f32 %v2463, %v2579
    %v2642 = vadd.f32 %v2464, %v2582
    %v2643 = vadd.f32 %v2465, %v2587
    %v2644 = vadd.f32 %v2466, %v2590
    %v2645 = vadd.f32 %v2467, %v2595
    %v2646 = vadd.f32 %v2468, %v2598
    %v2647 = vadd.f32 %v2469, %v2603
    %v2648 = vadd.f32 %v2470, %v2606
    %v2649 = vadd.f32 %v2471, %v2611
    %v2650 = vadd.f32 %v2472, %v2614
    %v2651 = vadd.f32 %v2473, %v2619
    %v2652 = vadd.f32 %v2474, %v2622
    %v2653 = vadd.f32 %v2475, %v2627
    %v2654 = vadd.f32 %v2476, %v2630
    %v2655 = vadd.f32 %v2477, %v2635
    %v2656 = vadd.f32 %v2478, %v2638
    %v2657 = vld [vmem:[%s2479 + $0x1] sm:$0xff]
    %v2658 = vld [vmem:[%s2479 + $0x11] sm:$0xff]
    %v2659 = vld [vmem:[%s2479 + $0x21] sm:$0xff]
    %v2660 = vld [vmem:[%s2479 + $0x31] sm:$0xff]
    %v2661 = vld [vmem:[%s2479 + $0x41] sm:$0xff]
    %v2662 = vld [vmem:[%s2479 + $0x51] sm:$0xff]
    %v2663 = vld [vmem:[%s2479 + $0x61] sm:$0xff]
    %v2664 = vld [vmem:[%s2479 + $0x71] sm:$0xff]
    %v2665 = vld [vmem:[%s2479 + $0xa1] sm:$0xff]
    %v2666 = vld [vmem:[%s2479 + $0xb1] sm:$0xff]
    %v2667 = vld [vmem:[%s2479 + $0xc1] sm:$0xff]
    %v2668 = vld [vmem:[%s2479 + $0xd1] sm:$0xff]
    %v2669 = vld [vmem:[%s2479 + $0xe1] sm:$0xff]
    %v2670 = vld [vmem:[%s2479 + $0xf1] sm:$0xff]
    %v2671 = vld [vmem:[%s2479 + $0x101] sm:$0xff]
    %v2672 = vld [vmem:[%s2479 + $0x111] sm:$0xff]
    %v2673 = vpack.c.bf16 %v2658, %v2657
    %v2674 = vpack.c.bf16 %v2660, %v2659
    %v2675 = vpack.c.bf16 %v2662, %v2661
    %v2676 = vpack.c.bf16 %v2664, %v2663
    %v2677 = vpack.c.bf16 %v2666, %v2665
    %v2678 = vpack.c.bf16 %v2668, %v2667
    %v2679 = vpack.c.bf16 %v2670, %v2669
    %v2680 = vpack.c.bf16 %v2672, %v2671
    %v2681 = vld [vmem:[%s4 + $0x70] sm:$0xf]
    %v2682 = vld [vmem:[%s4 + $0x74] sm:$0xf]
    %v2683 = vld [vmem:[%s4 + $0x78] sm:$0xf]
    %v2684 = vld [vmem:[%s4 + $0x7c] sm:$0xf]
    %v2689 = vunpack.c.l.b16 %v2681
    %v2690 = vunpack.c.l.b16 %v2682
    %v2691 = vunpack.c.l.b16 %v2683
    %v2692 = vunpack.c.l.b16 %v2684
    %v2693 = vpack.c.b16 %v2690, %v2689
    %v2694 = vpack.c.b16 %v2692, %v2691
    %v2698 = vsel %vm685, %v2673, 0
    %v2701 = vsel %vm685, %v2674, 0
    %v2704 = vsel %vm685, %v2675, 0
    %v2707 = vsel %vm685, %v2676, 0
    %v2710 = vsel %vm685, %v2677, 0
    %v2713 = vsel %vm685, %v2678, 0
    %v2716 = vsel %vm685, %v2679, 0
    %v2719 = vsel %vm685, %v2680, 0
    %2721 = vmatprep.subr.bf16.mxu0 0
    %2722 = vmatpush1.bf16.msra.mxu0 %v2693
    %2723 = vmatprep.subr.bf16.mxu0 0
    %2724 = vmatpush1.bf16.msra.mxu0 %v2694
    %2725 = vmatprep.subr.bf16.mxu0 0
    %2726 = vmatpush1.bf16.msra.mxu0 0
    %2727 = vmatprep.subr.bf16.mxu0 0
    %2728 = vmatpush1.bf16.msra.mxu0 0
    %2729 = vmatprep.subr.bf16.mxu0 0
    %2730 = vmatpush1.bf16.msra.mxu0 0
    %2731 = vmatprep.subr.bf16.mxu0 0
    %2732 = vmatpush1.bf16.msra.mxu0 0
    %2733 = vmatprep.subr.bf16.mxu0 0
    %2734 = vmatpush1.bf16.msra.mxu0 0
    %2735 = vmatprep.subr.bf16.mxu0 0
    %2736 = vmatpush1.bf16.msra.mxu0 0
    %2737 = vmatprep.subr.bf16.mxu0 0
    %2738 = vmatpush1.bf16.msra.mxu0 0
    %2739 = vmatprep.subr.bf16.mxu0 0
    %2740 = vmatpush1.bf16.msra.mxu0 0
    %2741 = vmatprep.subr.bf16.mxu0 0
    %2742 = vmatpush1.bf16.msra.mxu0 0
    %2743 = vmatprep.subr.bf16.mxu0 0
    %2744 = vmatpush1.bf16.msra.mxu0 0
    %2745 = vmatprep.subr.bf16.mxu0 0
    %2746 = vmatpush1.bf16.msra.mxu0 0
    %2747 = vmatprep.subr.bf16.mxu0 0
    %2748 = vmatpush1.bf16.msra.mxu0 0
    %2749 = vmatprep.subr.bf16.mxu0 0
    %2750 = vmatpush1.bf16.msra.mxu0 0
    %2751 = vmatprep.subr.bf16.mxu0 0
    %2752 = vmatpush1.bf16.msra.mxu0 0
    %2753 = vmatprep.mubr.bf16.mxu0 0
    %2754 = vmatmul.mubr.bf16.gmra.mrb[0].mxu0 %v2698
    %v2755 = vpop.f32.mrb[0].mxu0
    %v2756 = vadd.f32 0.0, %v2755
    %v2757 = vpop.f32.mrb[0].mxu0
    %v2758 = vpop.f32.mrb[0].mxu0
    %v2759 = vadd.f32 0.0, %v2758
    %v2760 = vpop.f32.mrb[0].mxu0
    %2761 = vmatprep.mubr.bf16.mxu0 0
    %2762 = vmatmul.mubr.bf16.gmra.mrb[0].mxu0 %v2701
    %v2763 = vpop.f32.mrb[0].mxu0
    %v2764 = vadd.f32 0.0, %v2763
    %v2765 = vpop.f32.mrb[0].mxu0
    %v2766 = vpop.f32.mrb[0].mxu0
    %v2767 = vadd.f32 0.0, %v2766
    %v2768 = vpop.f32.mrb[0].mxu0
    %2769 = vmatprep.mubr.bf16.mxu0 0
    %2770 = vmatmul.mubr.bf16.gmra.mrb[0].mxu0 %v2704
    %v2771 = vpop.f32.mrb[0].mxu0
    %v2772 = vadd.f32 0.0, %v2771
    %v2773 = vpop.f32.mrb[0].mxu0
    %v2774 = vpop.f32.mrb[0].mxu0
    %v2775 = vadd.f32 0.0, %v2774
    %v2776 = vpop.f32.mrb[0].mxu0
    %2777 = vmatprep.mubr.bf16.mxu0 0
    %2778 = vmatmul.mubr.bf16.gmra.mrb[0].mxu0 %v2707
    %v2779 = vpop.f32.mrb[0].mxu0
    %v2780 = vadd.f32 0.0, %v2779
    %v2781 = vpop.f32.mrb[0].mxu0
    %v2782 = vpop.f32.mrb[0].mxu0
    %v2783 = vadd.f32 0.0, %v2782
    %v2784 = vpop.f32.mrb[0].mxu0
    %2785 = vmatprep.mubr.bf16.mxu0 0
    %2786 = vmatmul.mubr.bf16.gmra.mrb[0].mxu0 %v2710
    %v2787 = vpop.f32.mrb[0].mxu0
    %v2788 = vadd.f32 0.0, %v2787
    %v2789 = vpop.f32.mrb[0].mxu0
    %v2790 = vpop.f32.mrb[0].mxu0
    %v2791 = vadd.f32 0.0, %v2790
    %v2792 = vpop.f32.mrb[0].mxu0
    %2793 = vmatprep.mubr.bf16.mxu0 0
    %2794 = vmatmul.mubr.bf16.gmra.mrb[0].mxu0 %v2713
    %v2795 = vpop.f32.mrb[0].mxu0
    %v2796 = vadd.f32 0.0, %v2795
    %v2797 = vpop.f32.mrb[0].mxu0
    %v2798 = vpop.f32.mrb[0].mxu0
    %v2799 = vadd.f32 0.0, %v2798
    %v2800 = vpop.f32.mrb[0].mxu0
    %2801 = vmatprep.mubr.bf16.mxu0 0
    %2802 = vmatmul.mubr.bf16.gmra.mrb[0].mxu0 %v2716
    %v2803 = vpop.f32.mrb[0].mxu0
    %v2804 = vadd.f32 0.0, %v2803
    %v2805 = vpop.f32.mrb[0].mxu0
    %v2806 = vpop.f32.mrb[0].mxu0
    %v2807 = vadd.f32 0.0, %v2806
    %v2808 = vpop.f32.mrb[0].mxu0
    %2809 = vmatprep.mubr.bf16.mxu0 0
    %2810 = vmatmul.mubr.bf16.gmra.mrb[0].mxu0 %v2719
    %v2811 = vpop.f32.mrb[0].mxu0
    %v2812 = vadd.f32 0.0, %v2811
    %v2813 = vpop.f32.mrb[0].mxu0
    %v2814 = vpop.f32.mrb[0].mxu0
    %v2815 = vadd.f32 0.0, %v2814
    %v2816 = vpop.f32.mrb[0].mxu0
    %2817 = vdwg.mxu0
    %v2818 = vadd.f32 %v2641, %v2756
    %v2819 = vadd.f32 %v2642, %v2759
    %v2820 = vadd.f32 %v2643, %v2764
    %v2821 = vadd.f32 %v2644, %v2767
    %v2822 = vadd.f32 %v2645, %v2772
    %v2823 = vadd.f32 %v2646, %v2775
    %v2824 = vadd.f32 %v2647, %v2780
    %v2825 = vadd.f32 %v2648, %v2783
    %v2826 = vadd.f32 %v2649, %v2788
    %v2827 = vadd.f32 %v2650, %v2791
    %v2828 = vadd.f32 %v2651, %v2796
    %v2829 = vadd.f32 %v2652, %v2799
    %v2830 = vadd.f32 %v2653, %v2804
    %v2831 = vadd.f32 %v2654, %v2807
    %v2832 = vadd.f32 %v2655, %v2812
    %v2833 = vadd.f32 %v2656, %v2815
    %v2834 = vld [vmem:[%s2479 + $0x2] sm:$0xff]
    %v2835 = vld [vmem:[%s2479 + $0x12] sm:$0xff]
    %v2836 = vld [vmem:[%s2479 + $0x22] sm:$0xff]
    %v2837 = vld [vmem:[%s2479 + $0x32] sm:$0xff]
    %v2838 = vld [vmem:[%s2479 + $0x42] sm:$0xff]
    %v2839 = vld [vmem:[%s2479 + $0x52] sm:$0xff]
    %v2840 = vld [vmem:[%s2479 + $0x62] sm:$0xff]
    %v2841 = vld [vmem:[%s2479 + $0x72] sm:$0xff]
    %v2842 = vld [vmem:[%s2479 + $0xa2] sm:$0xff]
    %v2843 = vld [vmem:[%s2479 + $0xb2] sm:$0xff]
    %v2844 = vld [vmem:[%s2479 + $0xc2] sm:$0xff]
    %v2845 = vld [vmem:[%s2479 + $0xd2] sm:$0xff]
    %v2846 = vld [vmem:[%s2479 + $0xe2] sm:$0xff]
    %v2847 = vld [vmem:[%s2479 + $0xf2] sm:$0xff]
    %v2848 = vld [vmem:[%s2479 + $0x102] sm:$0xff]
    %v2849 = vld [vmem:[%s2479 + $0x112] sm:$0xff]
    %v2850 = vpack.c.bf16 %v2835, %v2834
    %v2851 = vpack.c.bf16 %v2837, %v2836
    %v2852 = vpack.c.bf16 %v2839, %v2838
    %v2853 = vpack.c.bf16 %v2841, %v2840
    %v2854 = vpack.c.bf16 %v2843, %v2842
    %v2855 = vpack.c.bf16 %v2845, %v2844
    %v2856 = vpack.c.bf16 %v2847, %v2846
    %v2857 = vpack.c.bf16 %v2849, %v2848
    %v2858 = vld [vmem:[%s4 + $0x80] sm:$0xf]
    %v2859 = vld [vmem:[%s4 + $0x84] sm:$0xf]
    %v2860 = vld [vmem:[%s4 + $0x88] sm:$0xf]
    %v2861 = vld [vmem:[%s4 + $0x8c] sm:$0xf]
    %v2866 = vunpack.c.l.b16 %v2858
    %v2867 = vunpack.c.l.b16 %v2859
    %v2868 = vunpack.c.l.b16 %v2860
    %v2869 = vunpack.c.l.b16 %v2861
    %v2870 = vpack.c.b16 %v2867, %v2866
    %v2871 = vpack.c.b16 %v2869, %v2868
    %v2875 = vsel %vm685, %v2850, 0
    %v2878 = vsel %vm685, %v2851, 0
    %v2881 = vsel %vm685, %v2852, 0
    %v2884 = vsel %vm685, %v2853, 0
    %v2887 = vsel %vm685, %v2854, 0
    %v2890 = vsel %vm685, %v2855, 0
    %v2893 = vsel %vm685, %v2856, 0
    %v2896 = vsel %vm685, %v2857, 0
    %2898 = vmatprep.subr.bf16.mxu0 0
    %2899 = vmatpush1.bf16.msra.mxu0 %v2870
    %2900 = vmatprep.subr.bf16.mxu0 0
    %2901 = vmatpush1.bf16.msra.mxu0 %v2871
    %2902 = vmatprep.subr.bf16.mxu0 0
    %2903 = vmatpush1.bf16.msra.mxu0 0
    %2904 = vmatprep.subr.bf16.mxu0 0
    %2905 = vmatpush1.bf16.msra.mxu0 0
    %2906 = vmatprep.subr.bf16.mxu0 0
    %2907 = vmatpush1.bf16.msra.mxu0 0
    %2908 = vmatprep.subr.bf16.mxu0 0
    %2909 = vmatpush1.bf16.msra.mxu0 0
    %2910 = vmatprep.subr.bf16.mxu0 0
    %2911 = vmatpush1.bf16.msra.mxu0 0
    %2912 = vmatprep.subr.bf16.mxu0 0
    %2913 = vmatpush1.bf16.msra.mxu0 0
    %2914 = vmatprep.subr.bf16.mxu0 0
    %2915 = vmatpush1.bf16.msra.mxu0 0
    %2916 = vmatprep.subr.bf16.mxu0 0
    %2917 = vmatpush1.bf16.msra.mxu0 0
    %2918 = vmatprep.subr.bf16.mxu0 0
    %2919 = vmatpush1.bf16.msra.mxu0 0
    %2920 = vmatprep.subr.bf16.mxu0 0
    %2921 = vmatpush1.bf16.msra.mxu0 0
    %2922 = vmatprep.subr.bf16.mxu0 0
    %2923 = vmatpush1.bf16.msra.mxu0 0
    %2924 = vmatprep.subr.bf16.mxu0 0
    %2925 = vmatpush1.bf16.msra.mxu0 0
    %2926 = vmatprep.subr.bf16.mxu0 0
    %2927 = vmatpush1.bf16.msra.mxu0 0
    %2928 = vmatprep.subr.bf16.mxu0 0
    %2929 = vmatpush1.bf16.msra.mxu0 0
    %2930 = vmatprep.mubr.bf16.mxu0 0
    %2931 = vmatmul.mubr.bf16.gmra.mrb[0].mxu0 %v2875
    %v2932 = vpop.f32.mrb[0].mxu0
    %v2933 = vadd.f32 0.0, %v2932
    %v2934 = vpop.f32.mrb[0].mxu0
    %v2935 = vpop.f32.mrb[0].mxu0
    %v2936 = vadd.f32 0.0, %v2935
    %v2937 = vpop.f32.mrb[0].mxu0
    %2938 = vmatprep.mubr.bf16.mxu0 0
    %2939 = vmatmul.mubr.bf16.gmra.mrb[0].mxu0 %v2878
    %v2940 = vpop.f32.mrb[0].mxu0
    %v2941 = vadd.f32 0.0, %v2940
    %v2942 = vpop.f32.mrb[0].mxu0
    %v2943 = vpop.f32.mrb[0].mxu0
    %v2944 = vadd.f32 0.0, %v2943
    %v2945 = vpop.f32.mrb[0].mxu0
    %2946 = vmatprep.mubr.bf16.mxu0 0
    %2947 = vmatmul.mubr.bf16.gmra.mrb[0].mxu0 %v2881
    %v2948 = vpop.f32.mrb[0].mxu0
    %v2949 = vadd.f32 0.0, %v2948
    %v2950 = vpop.f32.mrb[0].mxu0
    %v2951 = vpop.f32.mrb[0].mxu0
    %v2952 = vadd.f32 0.0, %v2951
    %v2953 = vpop.f32.mrb[0].mxu0
    %2954 = vmatprep.mubr.bf16.mxu0 0
    %2955 = vmatmul.mubr.bf16.gmra.mrb[0].mxu0 %v2884
    %v2956 = vpop.f32.mrb[0].mxu0
    %v2957 = vadd.f32 0.0, %v2956
    %v2958 = vpop.f32.mrb[0].mxu0
    %v2959 = vpop.f32.mrb[0].mxu0
    %v2960 = vadd.f32 0.0, %v2959
    %v2961 = vpop.f32.mrb[0].mxu0
    %2962 = vmatprep.mubr.bf16.mxu0 0
    %2963 = vmatmul.mubr.bf16.gmra.mrb[0].mxu0 %v2887
    %v2964 = vpop.f32.mrb[0].mxu0
    %v2965 = vadd.f32 0.0, %v2964
    %v2966 = vpop.f32.mrb[0].mxu0
    %v2967 = vpop.f32.mrb[0].mxu0
    %v2968 = vadd.f32 0.0, %v2967
    %v2969 = vpop.f32.mrb[0].mxu0
    %2970 = vmatprep.mubr.bf16.mxu0 0
    %2971 = vmatmul.mubr.bf16.gmra.mrb[0].mxu0 %v2890
    %v2972 = vpop.f32.mrb[0].mxu0
    %v2973 = vadd.f32 0.0, %v2972
    %v2974 = vpop.f32.mrb[0].mxu0
    %v2975 = vpop.f32.mrb[0].mxu0
    %v2976 = vadd.f32 0.0, %v2975
    %v2977 = vpop.f32.mrb[0].mxu0
    %2978 = vmatprep.mubr.bf16.mxu0 0
    %2979 = vmatmul.mubr.bf16.gmra.mrb[0].mxu0 %v2893
    %v2980 = vpop.f32.mrb[0].mxu0
    %v2981 = vadd.f32 0.0, %v2980
    %v2982 = vpop.f32.mrb[0].mxu0
    %v2983 = vpop.f32.mrb[0].mxu0
    %v2984 = vadd.f32 0.0, %v2983
    %v2985 = vpop.f32.mrb[0].mxu0
    %2986 = vmatprep.mubr.bf16.mxu0 0
    %2987 = vmatmul.mubr.bf16.gmra.mrb[0].mxu0 %v2896
    %v2988 = vpop.f32.mrb[0].mxu0
    %v2989 = vadd.f32 0.0, %v2988
    %v2990 = vpop.f32.mrb[0].mxu0
    %v2991 = vpop.f32.mrb[0].mxu0
    %v2992 = vadd.f32 0.0, %v2991
    %v2993 = vpop.f32.mrb[0].mxu0
    %2994 = vdwg.mxu0
    %v2995 = vadd.f32 %v2818, %v2933
    %v2996 = vadd.f32 %v2819, %v2936
    %v2997 = vadd.f32 %v2820, %v2941
    %v2998 = vadd.f32 %v2821, %v2944
    %v2999 = vadd.f32 %v2822, %v2949
    %v3000 = vadd.f32 %v2823, %v2952
    %v3001 = vadd.f32 %v2824, %v2957
    %v3002 = vadd.f32 %v2825, %v2960
    %v3003 = vadd.f32 %v2826, %v2965
    %v3004 = vadd.f32 %v2827, %v2968
    %v3005 = vadd.f32 %v2828, %v2973
    %v3006 = vadd.f32 %v2829, %v2976
    %v3007 = vadd.f32 %v2830, %v2981
    %v3008 = vadd.f32 %v2831, %v2984
    %v3009 = vadd.f32 %v2832, %v2989
    %v3010 = vadd.f32 %v2833, %v2992
    %v3011 = vld [vmem:[%s5] sm:$0x1]
    %v3012 = vld [vmem:[%s6] sm:$0x1]
    %vm3013 = vcmask 523264
    %v3014 = vsel %vm3013, %v2995, 0.0
    %v3015 = vsel %vm3013, %v2996, 0.0
    %v3016 = vadd.f32 %v3014, %v3015
    %v3017 = vsel %vm3013, %v2997, 0.0
    %v3018 = vadd.f32 %v3016, %v3017
    %v3019 = vsel %vm3013, %v2998, 0.0
    %v3020 = vadd.f32 %v3018, %v3019
    %v3021 = vsel %vm3013, %v2999, 0.0
    %v3022 = vadd.f32 %v3020, %v3021
    %v3023 = vsel %vm3013, %v3000, 0.0
    %v3024 = vadd.f32 %v3022, %v3023
    %v3025 = vsel %vm3013, %v3001, 0.0
    %v3026 = vadd.f32 %v3024, %v3025
    %v3027 = vsel %vm3013, %v3002, 0.0
    %v3028 = vadd.f32 %v3026, %v3027
    %v3029 = vsel %vm3013, %v3003, 0.0
    %v3030 = vadd.f32 %v3028, %v3029
    %v3031 = vsel %vm3013, %v3004, 0.0
    %v3032 = vadd.f32 %v3030, %v3031
    %v3033 = vsel %vm3013, %v3005, 0.0
    %v3034 = vadd.f32 %v3032, %v3033
    %v3035 = vsel %vm3013, %v3006, 0.0
    %v3036 = vadd.f32 %v3034, %v3035
    %v3037 = vsel %vm3013, %v3007, 0.0
    %v3038 = vadd.f32 %v3036, %v3037
    %v3039 = vsel %vm3013, %v3008, 0.0
    %v3040 = vadd.f32 %v3038, %v3039
    %v3041 = vsel %vm3013, %v3009, 0.0
    %v3042 = vadd.f32 %v3040, %v3041
    %v3043 = vsel %vm3013, %v3010, 0.0
    %v3044 = vadd.f32 %v3042, %v3043
    %v3045 = vrot.slane %v3044, 4
    %v3046 = vadd.f32 %v3044, %v3045
    %v3047 = vrot.slane %v3046, 2
    %v3048 = vadd.f32 %v3046, %v3047
    %v3049 = vrot.slane %v3048, 1
    %v3050 = vadd.f32 %v3048, %v3049
    %v3051 = vmul.f32 %v3050, 0.0078125
    %v3052 = vmul.f32 %v2995, %v2995
    %v3053 = vmul.f32 %v2996, %v2996
    %v3054 = vmul.f32 %v2997, %v2997
    %v3055 = vmul.f32 %v2998, %v2998
    %v3056 = vmul.f32 %v2999, %v2999
    %v3057 = vmul.f32 %v3000, %v3000
    %v3058 = vmul.f32 %v3001, %v3001
    %v3059 = vmul.f32 %v3002, %v3002
    %v3060 = vmul.f32 %v3003, %v3003
    %v3061 = vmul.f32 %v3004, %v3004
    %v3062 = vmul.f32 %v3005, %v3005
    %v3063 = vmul.f32 %v3006, %v3006
    %v3064 = vmul.f32 %v3007, %v3007
    %v3065 = vmul.f32 %v3008, %v3008
    %v3066 = vmul.f32 %v3009, %v3009
    %v3067 = vmul.f32 %v3010, %v3010
    %v3068 = vsel %vm3013, %v3052, 0.0
    %v3069 = vsel %vm3013, %v3053, 0.0
    %v3070 = vadd.f32 %v3068, %v3069
    %v3071 = vsel %vm3013, %v3054, 0.0
    %v3072 = vadd.f32 %v3070, %v3071
    %v3073 = vsel %vm3013, %v3055, 0.0
    %v3074 = vadd.f32 %v3072, %v3073
    %v3075 = vsel %vm3013, %v3056, 0.0
    %v3076 = vadd.f32 %v3074, %v3075
    %v3077 = vsel %vm3013, %v3057, 0.0
    %v3078 = vadd.f32 %v3076, %v3077
    %v3079 = vsel %vm3013, %v3058, 0.0
    %v3080 = vadd.f32 %v3078, %v3079
    %v3081 = vsel %vm3013, %v3059, 0.0
    %v3082 = vadd.f32 %v3080, %v3081
    %v3083 = vsel %vm3013, %v3060, 0.0
    %v3084 = vadd.f32 %v3082, %v3083
    %v3085 = vsel %vm3013, %v3061, 0.0
    %v3086 = vadd.f32 %v3084, %v3085
    %v3087 = vsel %vm3013, %v3062, 0.0
    %v3088 = vadd.f32 %v3086, %v3087
    %v3089 = vsel %vm3013, %v3063, 0.0
    %v3090 = vadd.f32 %v3088, %v3089
    %v3091 = vsel %vm3013, %v3064, 0.0
    %v3092 = vadd.f32 %v3090, %v3091
    %v3093 = vsel %vm3013, %v3065, 0.0
    %v3094 = vadd.f32 %v3092, %v3093
    %v3095 = vsel %vm3013, %v3066, 0.0
    %v3096 = vadd.f32 %v3094, %v3095
    %v3097 = vsel %vm3013, %v3067, 0.0
    %v3098 = vadd.f32 %v3096, %v3097
    %v3099 = vrot.slane %v3098, 4
    %v3100 = vadd.f32 %v3098, %v3099
    %v3101 = vrot.slane %v3100, 2
    %v3102 = vadd.f32 %v3100, %v3101
    %v3103 = vrot.slane %v3102, 1
    %v3104 = vadd.f32 %v3102, %v3103
    %v3105 = vmul.f32 %v3104, 0.0078125
    %v3106 = vmul.f32 %v3051, %v3051
    %v3107 = vsub.f32 %v3105, %v3106
    %v3108 = vmax.f32 %v3107, 0.0
    %v3109 = vadd.f32 %v3108, 1e-05
    %v3110 = vrsqrt.pop %v3109
    %v3111 = vmul.f32 %v3011, %v3110
    %v3112 = vmul.f32 %v3051, %v3111
    %v3113 = vsub.f32 %v3012, %v3112
    %v3115 = vlaneseq
    %v3116 = vshrl.u32 %v3115, 7
    %v3117 = vsub.s32 0, %v3116
    %v3118 = vrot.slane %v3111, %v3117
    %v3120 = vmul.f32 %v2995, %v3118
    %v3121 = vmul.f32 %v2996, %v3118
    %v3122 = vmul.f32 %v2997, %v3118
    %v3123 = vmul.f32 %v2998, %v3118
    %v3124 = vmul.f32 %v2999, %v3118
    %v3125 = vmul.f32 %v3000, %v3118
    %v3126 = vmul.f32 %v3001, %v3118
    %v3127 = vmul.f32 %v3002, %v3118
    %v3128 = vmul.f32 %v3003, %v3118
    %v3129 = vmul.f32 %v3004, %v3118
    %v3130 = vmul.f32 %v3005, %v3118
    %v3131 = vmul.f32 %v3006, %v3118
    %v3132 = vmul.f32 %v3007, %v3118
    %v3133 = vmul.f32 %v3008, %v3118
    %v3134 = vmul.f32 %v3009, %v3118
    %v3135 = vmul.f32 %v3010, %v3118
    %v3137 = vlaneseq
    %v3138 = vshrl.u32 %v3137, 7
    %v3139 = vsub.s32 0, %v3138
    %v3140 = vrot.slane %v3113, %v3139
    %v3142 = vadd.f32 %v3120, %v3140
    %v3143 = vadd.f32 %v3121, %v3140
    %v3144 = vadd.f32 %v3122, %v3140
    %v3145 = vadd.f32 %v3123, %v3140
    %v3146 = vadd.f32 %v3124, %v3140
    %v3147 = vadd.f32 %v3125, %v3140
    %v3148 = vadd.f32 %v3126, %v3140
    %v3149 = vadd.f32 %v3127, %v3140
    %v3150 = vadd.f32 %v3128, %v3140
    %v3151 = vadd.f32 %v3129, %v3140
    %v3152 = vadd.f32 %v3130, %v3140
    %v3153 = vadd.f32 %v3131, %v3140
    %v3154 = vadd.f32 %v3132, %v3140
    %v3155 = vadd.f32 %v3133, %v3140
    %v3156 = vadd.f32 %v3134, %v3140
    %v3157 = vadd.f32 %v3135, %v3140
    %v3158 = vsel %vm3013, %v3142, -inf
    %v3159 = vsel %vm3013, %v3143, -inf
    %v3160 = vmax.f32 %v3158, %v3159
    %v3161 = vsel %vm3013, %v3144, -inf
    %v3162 = vsel %vm3013, %v3145, -inf
    %v3163 = vmax.f32 %v3161, %v3162
    %v3164 = vsel %vm3013, %v3146, -inf
    %v3165 = vsel %vm3013, %v3147, -inf
    %v3166 = vmax.f32 %v3164, %v3165
    %v3167 = vsel %vm3013, %v3148, -inf
    %v3168 = vsel %vm3013, %v3149, -inf
    %v3169 = vmax.f32 %v3167, %v3168
    %v3170 = vsel %vm3013, %v3150, -inf
    %v3171 = vsel %vm3013, %v3151, -inf
    %v3172 = vmax.f32 %v3170, %v3171
    %v3173 = vsel %vm3013, %v3152, -inf
    %v3174 = vsel %vm3013, %v3153, -inf
    %v3175 = vmax.f32 %v3173, %v3174
    %v3176 = vsel %vm3013, %v3154, -inf
    %v3177 = vsel %vm3013, %v3155, -inf
    %v3178 = vmax.f32 %v3176, %v3177
    %v3179 = vsel %vm3013, %v3156, -inf
    %v3180 = vsel %vm3013, %v3157, -inf
    %v3181 = vmax.f32 %v3179, %v3180
    %3182 = vst.msk [vmem:[#allocation4] sm:$0xff] %vm3013, %v3160
    %3183 = vst.msk [vmem:[#allocation4 + $0x8] sm:$0xff] %vm3013, %v3163
    %3184 = vst.msk [vmem:[#allocation4 + $0x10] sm:$0xff] %vm3013, %v3166
    %3185 = vst.msk [vmem:[#allocation4 + $0x18] sm:$0xff] %vm3013, %v3169
    %3186 = vst.msk [vmem:[#allocation4 + $0x20] sm:$0xff] %vm3013, %v3172
    %3187 = vst.msk [vmem:[#allocation4 + $0x28] sm:$0xff] %vm3013, %v3175
    %3188 = vst.msk [vmem:[#allocation4 + $0x30] sm:$0xff] %vm3013, %v3178
    %3189 = vst.msk [vmem:[#allocation4 + $0x38] sm:$0xff] %vm3013, %v3181
    %v3190 = vld [vmem:[#allocation4] ss:$2 sm:$0xf]
    %s3191 = scalar_lea.vmem [#allocation4], 8
    %v3192 = vld [vmem:[%s3191] ss:$2 sm:$0xf]
    %s3193 = scalar_lea.vmem [#allocation4], 16
    %v3194 = vld [vmem:[%s3193] ss:$2 sm:$0xf]
    %s3195 = scalar_lea.vmem [#allocation4], 24
    %v3196 = vld [vmem:[%s3195] ss:$2 sm:$0xf]
    %s3197 = scalar_lea.vmem [#allocation4], 32
    %v3198 = vld [vmem:[%s3197] ss:$2 sm:$0xf]
    %s3199 = scalar_lea.vmem [#allocation4], 40
    %v3200 = vld [vmem:[%s3199] ss:$2 sm:$0xf]
    %s3201 = scalar_lea.vmem [#allocation4], 48
    %v3202 = vld [vmem:[%s3201] ss:$2 sm:$0xf]
    %s3203 = scalar_lea.vmem [#allocation4], 56
    %v3204 = vld [vmem:[%s3203] ss:$2 sm:$0xf]
    %s3205 = scalar_lea.vmem [#allocation4], 1
    %v3206 = vld [vmem:[%s3205] ss:$2 sm:$0xf]
    %s3207 = scalar_lea.vmem [#allocation4], 9
    %v3208 = vld [vmem:[%s3207] ss:$2 sm:$0xf]
    %s3209 = scalar_lea.vmem [#allocation4], 17
    %v3210 = vld [vmem:[%s3209] ss:$2 sm:$0xf]
    %s3211 = scalar_lea.vmem [#allocation4], 25
    %v3212 = vld [vmem:[%s3211] ss:$2 sm:$0xf]
    %s3213 = scalar_lea.vmem [#allocation4], 33
    %v3214 = vld [vmem:[%s3213] ss:$2 sm:$0xf]
    %s3215 = scalar_lea.vmem [#allocation4], 41
    %v3216 = vld [vmem:[%s3215] ss:$2 sm:$0xf]
    %s3217 = scalar_lea.vmem [#allocation4], 49
    %v3218 = vld [vmem:[%s3217] ss:$2 sm:$0xf]
    %s3219 = scalar_lea.vmem [#allocation4], 57
    %v3220 = vld [vmem:[%s3219] ss:$2 sm:$0xf]
    %v3221 = vmax.f32 %v3190, %v3206
    %v3222 = vmax.f32 %v3192, %v3208
    %v3223 = vmax.f32 %v3194, %v3210
    %v3224 = vmax.f32 %v3196, %v3212
    %v3225 = vmax.f32 %v3198, %v3214
    %v3226 = vmax.f32 %v3200, %v3216
    %v3227 = vmax.f32 %v3202, %v3218
    %v3228 = vmax.f32 %v3204, %v3220
    %v3229 = vmax.f32 %v3221, 0.0
    %v3230 = vmax.f32 %v3222, 0.0
    %v3231 = vmax.f32 %v3223, 0.0
    %v3232 = vmax.f32 %v3224, 0.0
    %v3233 = vmax.f32 %v3225, 0.0
    %v3234 = vmax.f32 %v3226, 0.0
    %v3235 = vmax.f32 %v3227, 0.0
    %v3236 = vmax.f32 %v3228, 0.0
    %v3245 = vcombine.low %v3229, %v3230
    %v3246 = vcombine.low %v3231, %v3232
    %v3247 = vcombine.low %v3233, %v3234
    %v3248 = vcombine.low %v3235, %v3236
    %v3253 = vpack.c.bf16 %v3246, %v3245
    %v3254 = vpack.c.bf16 %v3248, %v3247
    %v3255 = vld [vmem:[%s7] sm:$0xf]
    %v3256 = vld [vmem:[%s7 + $0x4] sm:$0xf]
    %v3257 = vld [vmem:[%s7 + $0x8] sm:$0xf]
    %v3258 = vld [vmem:[%s7 + $0xc] sm:$0xf]
    %v3259 = vld [vmem:[%s7 + $0x10] sm:$0xf]
    %v3260 = vld [vmem:[%s7 + $0x14] sm:$0xf]
    %v3261 = vld [vmem:[%s7 + $0x18] sm:$0xf]
    %v3262 = vld [vmem:[%s7 + $0x1c] sm:$0xf]
    %v3271 = vunpack.c.l.b16 %v3255
    %v3272 = vunpack.c.l.b16 %v3256
    %v3273 = vunpack.c.l.b16 %v3257
    %v3274 = vunpack.c.l.b16 %v3258
    %v3275 = vunpack.c.l.b16 %v3259
    %v3276 = vunpack.c.l.b16 %v3260
    %v3277 = vunpack.c.l.b16 %v3261
    %v3278 = vunpack.c.l.b16 %v3262
    %v3279 = vpack.c.b16 %v3272, %v3271
    %v3280 = vpack.c.b16 %v3274, %v3273
    %v3281 = vpack.c.b16 %v3276, %v3275
    %v3282 = vpack.c.b16 %v3278, %v3277
    %v3288 = vsel %vm3013, %v3253, 0
    %v3291 = vsel %vm3013, %v3254, 0
    %3293 = vmatprep.subr.bf16.mxu0 0
    %3294 = vmatpush1.bf16.msra.mxu0 %v3279
    %3295 = vmatprep.subr.bf16.mxu0 0
    %3296 = vmatpush1.bf16.msra.mxu0 %v3280
    %3297 = vmatprep.subr.bf16.mxu0 0
    %3298 = vmatpush1.bf16.msra.mxu0 %v3281
    %3299 = vmatprep.subr.bf16.mxu0 0
    %3300 = vmatpush1.bf16.msra.mxu0 %v3282
    %3301 = vmatprep.subr.bf16.mxu0 0
    %3302 = vmatpush1.bf16.msra.mxu0 0
    %3303 = vmatprep.subr.bf16.mxu0 0
    %3304 = vmatpush1.bf16.msra.mxu0 0
    %3305 = vmatprep.subr.bf16.mxu0 0
    %3306 = vmatpush1.bf16.msra.mxu0 0
    %3307 = vmatprep.subr.bf16.mxu0 0
    %3308 = vmatpush1.bf16.msra.mxu0 0
    %3309 = vmatprep.subr.bf16.mxu0 0
    %3310 = vmatpush1.bf16.msra.mxu0 0
    %3311 = vmatprep.subr.bf16.mxu0 0
    %3312 = vmatpush1.bf16.msra.mxu0 0
    %3313 = vmatprep.subr.bf16.mxu0 0
    %3314 = vmatpush1.bf16.msra.mxu0 0
    %3315 = vmatprep.subr.bf16.mxu0 0
    %3316 = vmatpush1.bf16.msra.mxu0 0
    %3317 = vmatprep.subr.bf16.mxu0 0
    %3318 = vmatpush1.bf16.msra.mxu0 0
    %3319 = vmatprep.subr.bf16.mxu0 0
    %3320 = vmatpush1.bf16.msra.mxu0 0
    %3321 = vmatprep.subr.bf16.mxu0 0
    %3322 = vmatpush1.bf16.msra.mxu0 0
    %3323 = vmatprep.subr.bf16.mxu0 0
    %3324 = vmatpush1.bf16.msra.mxu0 0
    %3325 = vmatprep.mubr.bf16.mxu0 0
    %3326 = vmatmul.mubr.bf16.gmra.mrb[0].mxu0 %v3288
    %v3327 = vpop.f32.mrb[0].mxu0
    %v3328 = vadd.f32 0.0, %v3327
    %v3329 = vpop.f32.mrb[0].mxu0
    %v3330 = vpop.f32.mrb[0].mxu0
    %v3331 = vadd.f32 0.0, %v3330
    %v3332 = vpop.f32.mrb[0].mxu0
    %3333 = vmatprep.mubr.bf16.mxu0 0
    %3334 = vmatmul.mubr.bf16.gmra.mrb[0].mxu0 %v3291
    %v3335 = vpop.f32.mrb[0].mxu0
    %v3336 = vadd.f32 0.0, %v3335
    %v3337 = vpop.f32.mrb[0].mxu0
    %v3338 = vpop.f32.mrb[0].mxu0
    %v3339 = vadd.f32 0.0, %v3338
    %v3340 = vpop.f32.mrb[0].mxu0
    %3341 = vdwg.mxu0
    %v3342 = vld [vmem:[%s8] sm:$0x1]
    %v3343 = vld [vmem:[%s9] sm:$0x1]
    %v3344 = vsel %vm3013, %v3328, 0.0
    %v3345 = vsel %vm3013, %v3331, 0.0
    %v3346 = vadd.f32 %v3344, %v3345
    %v3347 = vsel %vm3013, %v3336, 0.0
    %v3348 = vadd.f32 %v3346, %v3347
    %v3349 = vsel %vm3013, %v3339, 0.0
    %v3350 = vadd.f32 %v3348, %v3349
    %v3351 = vrot.slane %v3350, 4
    %v3352 = vadd.f32 %v3350, %v3351
    %v3353 = vrot.slane %v3352, 2
    %v3354 = vadd.f32 %v3352, %v3353
    %v3355 = vrot.slane %v3354, 1
    %v3356 = vadd.f32 %v3354, %v3355
    %v3357 = vmul.f32 %v3356, 0.03125
    %v3358 = vmul.f32 %v3328, %v3328
    %v3359 = vmul.f32 %v3331, %v3331
    %v3360 = vmul.f32 %v3336, %v3336
    %v3361 = vmul.f32 %v3339, %v3339
    %v3362 = vsel %vm3013, %v3358, 0.0
    %v3363 = vsel %vm3013, %v3359, 0.0
    %v3364 = vadd.f32 %v3362, %v3363
    %v3365 = vsel %vm3013, %v3360, 0.0
    %v3366 = vadd.f32 %v3364, %v3365
    %v3367 = vsel %vm3013, %v3361, 0.0
    %v3368 = vadd.f32 %v3366, %v3367
    %v3369 = vrot.slane %v3368, 4
    %v3370 = vadd.f32 %v3368, %v3369
    %v3371 = vrot.slane %v3370, 2
    %v3372 = vadd.f32 %v3370, %v3371
    %v3373 = vrot.slane %v3372, 1
    %v3374 = vadd.f32 %v3372, %v3373
    %v3375 = vmul.f32 %v3374, 0.03125
    %v3376 = vmul.f32 %v3357, %v3357
    %v3377 = vsub.f32 %v3375, %v3376
    %v3378 = vmax.f32 %v3377, 0.0
    %v3379 = vadd.f32 %v3378, 1e-05
    %v3380 = vrsqrt.pop %v3379
    %v3381 = vmul.f32 %v3342, %v3380
    %v3382 = vmul.f32 %v3357, %v3381
    %v3383 = vsub.f32 %v3343, %v3382
    %v3385 = vlaneseq
    %v3386 = vshrl.u32 %v3385, 7
    %v3387 = vsub.s32 0, %v3386
    %v3388 = vrot.slane %v3381, %v3387
    %v3390 = vmul.f32 %v3328, %v3388
    %v3391 = vmul.f32 %v3331, %v3388
    %v3392 = vmul.f32 %v3336, %v3388
    %v3393 = vmul.f32 %v3339, %v3388
    %v3395 = vlaneseq
    %v3396 = vshrl.u32 %v3395, 7
    %v3397 = vsub.s32 0, %v3396
    %v3398 = vrot.slane %v3383, %v3397
    %v3400 = vadd.f32 %v3390, %v3398
    %v3401 = vadd.f32 %v3391, %v3398
    %v3402 = vadd.f32 %v3392, %v3398
    %v3403 = vadd.f32 %v3393, %v3398
    %v3404 = vmax.f32 %v3400, 0.0
    %v3405 = vmax.f32 %v3401, 0.0
    %v3406 = vmax.f32 %v3402, 0.0
    %v3407 = vmax.f32 %v3403, 0.0
    %v3408 = vsel %vm3013, %v3404, 0.0
    %v3409 = vsel %vm3013, %v3405, 0.0
    %v3410 = vadd.f32 %v3408, %v3409
    %v3411 = vrot.slane %v3410, 4
    %v3412 = vadd.f32 %v3410, %v3411
    %v3413 = vrot.slane %v3412, 2
    %v3414 = vadd.f32 %v3412, %v3413
    %v3415 = vrot.slane %v3414, 1
    %v3416 = vadd.f32 %v3414, %v3415
    %v3417 = vsel %vm3013, %v3406, 0.0
    %v3418 = vsel %vm3013, %v3407, 0.0
    %v3419 = vadd.f32 %v3417, %v3418
    %v3420 = vrot.slane %v3419, 4
    %v3421 = vadd.f32 %v3419, %v3420
    %v3422 = vrot.slane %v3421, 2
    %v3423 = vadd.f32 %v3421, %v3422
    %v3424 = vrot.slane %v3423, 1
    %v3425 = vadd.f32 %v3423, %v3424
    %v3426 = vrcp.pop 16.0
    %v3427 = vmul.f32 %v3416, %v3426
    %v3428 = vmul.f32 %v3425, %v3426
    %v3429 = vpack.c.bf16 %v3427, %v3427
    %v3430 = vpack.c.bf16 %v3428, %v3428
    %v3431 = vld [vmem:[%s10] sm:$0xf]
    %v3432 = vld [vmem:[%s10 + $0x4] sm:$0xf]
    %v3433 = vld [vmem:[%s10 + $0x8] sm:$0xf]
    %v3434 = vld [vmem:[%s10 + $0xc] sm:$0xf]
    %v3435 = vld [vmem:[%s10 + $0x10] sm:$0xf]
    %v3436 = vld [vmem:[%s10 + $0x14] sm:$0xf]
    %v3437 = vld [vmem:[%s10 + $0x18] sm:$0xf]
    %v3438 = vld [vmem:[%s10 + $0x1c] sm:$0xf]
    %v3439 = vld [vmem:[%s11] sm:$0x1]
    %v3441 = vlaneseq
    %v3442 = vshrl.u32 %v3441, 7
    %v3443 = vsub.s32 0, %v3442
    %v3444 = vrot.slane %v3439, %v3443
    %v3448 = vunpack.c.l.b16 %v3429
    %v3449 = vunpack.c.l.b16 %v3430
    %vm3450 = vcmask 1041409
    %v3451 = vsel %vm3450, %v3449, %v3448
    %v3452 = vpack.c.b16 %v3451, %v3451
    %v3461 = vunpack.c.l.b16 %v3431
    %v3462 = vunpack.c.l.b16 %v3432
    %v3463 = vunpack.c.l.b16 %v3433
    %v3464 = vunpack.c.l.b16 %v3434
    %v3465 = vunpack.c.l.b16 %v3435
    %v3466 = vunpack.c.l.b16 %v3436
    %v3467 = vunpack.c.l.b16 %v3437
    %v3468 = vunpack.c.l.b16 %v3438
    %v3469 = vpack.c.b16 %v3462, %v3461
    %v3470 = vpack.c.b16 %v3464, %v3463
    %v3471 = vpack.c.b16 %v3466, %v3465
    %v3472 = vpack.c.b16 %v3468, %v3467
    %v3478 = vsel %vm3013, %v3452, 0
    %3480 = vmatprep.subr.bf16.mxu0 0
    %3481 = vmatpush1.bf16.msra.mxu0 %v3469
    %3482 = vmatprep.subr.bf16.mxu0 0
    %3483 = vmatpush1.bf16.msra.mxu0 %v3470
    %3484 = vmatprep.subr.bf16.mxu0 0
    %3485 = vmatpush1.bf16.msra.mxu0 %v3471
    %3486 = vmatprep.subr.bf16.mxu0 0
    %3487 = vmatpush1.bf16.msra.mxu0 %v3472
    %3488 = vmatprep.subr.bf16.mxu0 0
    %3489 = vmatpush1.bf16.msra.mxu0 0
    %3490 = vmatprep.subr.bf16.mxu0 0
    %3491 = vmatpush1.bf16.msra.mxu0 0
    %3492 = vmatprep.subr.bf16.mxu0 0
    %3493 = vmatpush1.bf16.msra.mxu0 0
    %3494 = vmatprep.subr.bf16.mxu0 0
    %3495 = vmatpush1.bf16.msra.mxu0 0
    %3496 = vmatprep.subr.bf16.mxu0 0
    %3497 = vmatpush1.bf16.msra.mxu0 0
    %3498 = vmatprep.subr.bf16.mxu0 0
    %3499 = vmatpush1.bf16.msra.mxu0 0
    %3500 = vmatprep.subr.bf16.mxu0 0
    %3501 = vmatpush1.bf16.msra.mxu0 0
    %3502 = vmatprep.subr.bf16.mxu0 0
    %3503 = vmatpush1.bf16.msra.mxu0 0
    %3504 = vmatprep.subr.bf16.mxu0 0
    %3505 = vmatpush1.bf16.msra.mxu0 0
    %3506 = vmatprep.subr.bf16.mxu0 0
    %3507 = vmatpush1.bf16.msra.mxu0 0
    %3508 = vmatprep.subr.bf16.mxu0 0
    %3509 = vmatpush1.bf16.msra.mxu0 0
    %3510 = vmatprep.subr.bf16.mxu0 0
    %3511 = vmatpush1.bf16.msra.mxu0 0
    %3512 = vmatprep.mubr.bf16.mxu0 0
    %3513 = vmatmul.mubr.bf16.gmra.mrb[0].mxu0 %v3478
    %v3514 = vpop.f32.mrb[0].mxu0
    %v3515 = vadd.f32 %v3444, %v3514
    %v3516 = vpop.f32.mrb[0].mxu0
    %v3517 = vpop.f32.mrb[0].mxu0
    %v3518 = vpop.f32.mrb[0].mxu0
    %3519 = vdwg.mxu0
    %v3520 = vxor.u32 %v3515, 2147483648
    %v3521 = vmul.f32 %v3520, 1.442695
    %v3522 = vpow.pop %v3521
    %v3523 = vadd.f32 %v3522, 1.0
    %v3524 = vrcp.pop %v3523
    %v3525 = vmul.f32 1.0, %v3524
    %v3526 = vpack.c.bf16 %v3525, %v3525
    %v3527 = vld [vmem:[%s12] sm:$0xf]
    %v3528 = vld [vmem:[%s12 + $0x4] sm:$0xf]
    %v3529 = vld [vmem:[%s12 + $0x8] sm:$0xf]
    %v3530 = vld [vmem:[%s12 + $0xc] sm:$0xf]
    %v3531 = vld [vmem:[%s13] sm:$0x1]
    %v3533 = vlaneseq
    %v3534 = vshrl.u32 %v3533, 7
    %v3535 = vsub.s32 0, %v3534
    %v3536 = vrot.slane %v3531, %v3535
    %v3542 = vunpack.c.l.b16 %v3527
    %v3543 = vunpack.c.l.b16 %v3528
    %v3544 = vunpack.c.l.b16 %v3529
    %v3545 = vunpack.c.l.b16 %v3530
    %v3546 = vpack.c.b16 %v3543, %v3542
    %v3547 = vpack.c.b16 %v3545, %v3544
    %v3551 = vsel %vm685, %v3526, 0
    %3553 = vmatprep.subr.bf16.mxu0 0
    %3554 = vmatpush1.bf16.msra.mxu0 %v3546
    %3555 = vmatprep.subr.bf16.mxu0 0
    %3556 = vmatpush1.bf16.msra.mxu0 %v3547
    %3557 = vmatprep.subr.bf16.mxu0 0
    %3558 = vmatpush1.bf16.msra.mxu0 0
    %3559 = vmatprep.subr.bf16.mxu0 0
    %3560 = vmatpush1.bf16.msra.mxu0 0
    %3561 = vmatprep.subr.bf16.mxu0 0
    %3562 = vmatpush1.bf16.msra.mxu0 0
    %3563 = vmatprep.subr.bf16.mxu0 0
    %3564 = vmatpush1.bf16.msra.mxu0 0
    %3565 = vmatprep.subr.bf16.mxu0 0
    %3566 = vmatpush1.bf16.msra.mxu0 0
    %3567 = vmatprep.subr.bf16.mxu0 0
    %3568 = vmatpush1.bf16.msra.mxu0 0
    %3569 = vmatprep.subr.bf16.mxu0 0
    %3570 = vmatpush1.bf16.msra.mxu0 0
    %3571 = vmatprep.subr.bf16.mxu0 0
    %3572 = vmatpush1.bf16.msra.mxu0 0
    %3573 = vmatprep.subr.bf16.mxu0 0
    %3574 = vmatpush1.bf16.msra.mxu0 0
    %3575 = vmatprep.subr.bf16.mxu0 0
    %3576 = vmatpush1.bf16.msra.mxu0 0
    %3577 = vmatprep.subr.bf16.mxu0 0
    %3578 = vmatpush1.bf16.msra.mxu0 0
    %3579 = vmatprep.subr.bf16.mxu0 0
    %3580 = vmatpush1.bf16.msra.mxu0 0
    %3581 = vmatprep.subr.bf16.mxu0 0
    %3582 = vmatpush1.bf16.msra.mxu0 0
    %3583 = vmatprep.subr.bf16.mxu0 0
    %3584 = vmatpush1.bf16.msra.mxu0 0
    %3585 = vmatprep.mubr.bf16.mxu0 0
    %3586 = vmatmul.mubr.bf16.gmra.mrb[0].mxu0 %v3551
    %v3587 = vpop.f32.mrb[0].mxu0
    %v3588 = vadd.f32 %v3536, %v3587
    %v3589 = vpop.f32.mrb[0].mxu0
    %v3590 = vpop.f32.mrb[0].mxu0
    %v3591 = vpop.f32.mrb[0].mxu0
    %3592 = vdwg.mxu0
    %vm3593 = vcmask 74752
    %3594 = vst.msk [vmem:[#allocation5] sm:$0x3] %vm3593, %v3588
    // Predicated region
    $region58: #{convnet_forward.1} parent=1 // pred_check
      _
    $region59: #{convnet_forward.1} parent=1 // pred_check_branch
      %3596 = sbr.rel (0) target = $region61
    $region60: #{convnet_forward.1} parent=1 // pred_region
      %s3598 = ssub.s32 32, 32
      %3599 = vsyncadd [#allocation6], %s3598
      %s3601 = sshll.u32 [#allocation5], 4
      %s3602 = int_to_ptr.vmem [resolvable:$true] %s3601
      %3604 = dma.vmem_to_hbm [thread:$0]  %s3602, 32, %s14, [#allocation6]
    $region61: #{convnet_forward.1} parent=1 // pred_fallthru
      _
    // Predicated region
    $region62: #{convnet_forward.1} parent=1 // pred_check
      _
    $region63: #{convnet_forward.1} parent=1 // pred_check_branch
      %3606 = sbr.rel (0) target = $region65
    $region64: #{convnet_forward.1} parent=1 // pred_region
      %3607 = dma.done [#allocation6], 32
    $region65: #{convnet_forward.1} parent=1 // pred_fallthru
      _
    %3608 = vsyncpa [#allocation6], 1

</llo_original>
